<compile_context>
chip_gen: v7x
topology: tpu7x:2x2x1
jax: 0.10.0
libtpu: 0.0.40
codegen_flags: <defaults>
</compile_context>

<pallas_src>
import functools

import jax
import jax.numpy as jnp
from jax.experimental import pallas as pl
from jax.experimental.pallas import tpu as pltpu


# --------------------------- in-kernel helpers ------------------------------

def _gelu_tanh(x):
    # tanh-form GELU: maps to the EUP slot; |err| vs exact erf-GELU < 1e-3.
    c = 0.7978845608028654  # sqrt(2/pi)
    return 0.5 * x * (1.0 + jnp.tanh(c * (x + 0.044715 * x * x * x)))


def _layernorm(v, g, b, eps=1e-5):
    mu = jnp.mean(v, axis=-1, keepdims=True)
    var = jnp.mean(jnp.square(v - mu), axis=-1, keepdims=True)
    return (v - mu) * jax.lax.rsqrt(var + eps) * g + b


# ------------------------------ fused kernel --------------------------------

def _transformer_block_kernel(x_ref,
                              g1_ref, b1_ref,          # LayerNorm 1
                              wqkv_ref,                 # qkv weight (bf16, q cols pre-scaled)
                              wproj_ref, bproj_ref,     # attn out proj: (nh, hd, C), (1, C)
                              g2_ref, b2_ref,           # LayerNorm 2
                              w1_ref, bfc1_ref,         # MLP fc1
                              w2_ref, bfc2_ref,         # MLP fc2
                              o_ref, *, num_heads, seq_len):
    f32, bf16 = jnp.float32, jnp.bfloat16

    x = x_ref[...].astype(f32)                     # (rows, C), rows = tb * seq_len
    rows, C = x.shape
    tb = rows // seq_len
    hd = C // num_heads

    # -------- attention branch: x = x + bias + sum_h (attn_h @ Wproj_h) ------
    h = _layernorm(x, g1_ref[...], b1_ref[...])
    qkv = jnp.dot(h.astype(bf16), wqkv_ref[...],
                  preferred_element_type=f32)      # (rows, 3C), f32 accumulation

    att = jnp.zeros((rows, C), dtype=f32)
    for hh in range(num_heads):
        # Static lane slices (q|k|v blocks of C, head-contiguous) match the
        # PyTorch reshape(B,N,3,nh,hd).permute(2,0,3,1,4) layout.  At hd>=128
        # these are lane-aligned; at the test hd=4 they are masked but correct.
        q = qkv[:, 0 * C + hh * hd: 0 * C + (hh + 1) * hd].astype(bf16)
        k = qkv[:, 1 * C + hh * hd: 1 * C + (hh + 1) * hd].astype(bf16)
        v = qkv[:, 2 * C + hh * hd: 2 * C + (hh + 1) * hd].astype(bf16)
        q = q.reshape(tb, seq_len, hd)
        k = k.reshape(tb, seq_len, hd)
        v = v.reshape(tb, seq_len, hd)

        # Scale is already folded into the q columns of wqkv (wrapper-side).
        s = jnp.einsum('bqd,bkd->bqk', q, k,
                       preferred_element_type=f32)            # (tb, N, N)
        s = s - jnp.max(s, axis=-1, keepdims=True)
        p = jnp.exp(s)
        p = p * pl.reciprocal(jnp.sum(p, axis=-1, keepdims=True), approx=True)

        o_h = jnp.einsum('bqk,bkd->bqd', p.astype(bf16), v,
                         preferred_element_type=f32)          # (tb, N, hd)
        # Fuse the head-concat into the projection: accumulate into one f32
        # (rows, C) buffer; only one head result is live at a time.
        att = att + jnp.dot(o_h.reshape(rows, hd).astype(bf16), wproj_ref[hh],
                            preferred_element_type=f32)
    x = x + att + bproj_ref[...]

    # -------- MLP branch: x = x + fc2(gelu(fc1(ln2(x)))) ---------------------
    h = _layernorm(x, g2_ref[...], b2_ref[...])
    h = jnp.dot(h.astype(bf16), w1_ref[...],
                preferred_element_type=f32) + bfc1_ref[...]
    h = _gelu_tanh(h)
    h = jnp.dot(h.astype(bf16), w2_ref[...],
                preferred_element_type=f32) + bfc2_ref[...]

    # TODO(synk): at C < 128 this store is a masked vst; keep C a multiple of
    # 128 in production for lane-dense stores.
    o_ref[...] = (x + h).astype(o_ref.dtype)


# ------------------------------- wrapper -------------------------------------

def transformer_block(x, params, *, num_heads=8, block_rows=256):
    """x: (B, N, C) float32.  Returns (B, N, C) float32.

    block_rows: target MXU row-tile (use ~128 on v5e, ~256 on v6e/v7x)."""
    B, N, C = x.shape
    hd = C // num_heads
    scale = hd ** -0.5
    H = params["fc1_w"].shape[1]
    f32, bf16 = jnp.float32, jnp.bfloat16

    # Batch-tile: pack as many whole sequences as fit in ~block_rows rows so
    # every token-parallel matmul feeds the MXU full row tiles.
    tb = max(1, min(B, max(1, block_rows // N)))
    while B % tb:
        tb -= 1
    rows = tb * N
    grid = (B // tb,)

    # Fold the softmax scale into the q columns of the QKV weight (free).
    wqkv = jnp.concatenate([params["qkv_w"][:, :C] * scale,
                            params["qkv_w"][:, C:]], axis=1).astype(bf16)
    # Proj weight as (heads, hd, C) so the head-concat folds into accumulation.
    wproj = params["proj_w"].reshape(num_heads, hd, C).astype(bf16)

    kernel = functools.partial(_transformer_block_kernel,
                               num_heads=num_heads, seq_len=N)

    def wspec(shape):
        # Weights / params: constant block index -> DMA'd once across the grid.
        nd = len(shape)
        return pl.BlockSpec(shape, lambda i: (0,) * nd)

    spec_x = pl.BlockSpec((rows, C), lambda i: (i, 0))

    # Generation-aware VMEM budget: ~80% of capacity (~102 MiB on 128 MiB
    # v5e/v6e, ~51 MiB on 64 MiB v7x), conservative fallback if unknown.
    try:
        vmem_cap = pltpu.get_tpu_info().vmem_capacity_bytes
        vmem_limit = min(int(vmem_cap * 0.80), 112 * 1024 * 1024)
    except Exception:
        vmem_limit = 48 * 1024 * 1024

    out = pl.pallas_call(
        kernel,
        out_shape=jax.ShapeDtypeStruct((B * N, C), f32),
        grid=grid,
        in_specs=[spec_x,
                  wspec((1, C)), wspec((1, C)),            # ln1 gamma/beta
                  wspec((C, 3 * C)),                        # qkv weight (bf16)
                  wspec((num_heads, hd, C)), wspec((1, C)),  # proj weight / bias
                  wspec((1, C)), wspec((1, C)),             # ln2 gamma/beta
                  wspec((C, H)), wspec((1, H)),             # fc1 weight / bias
                  wspec((H, C)), wspec((1, C))],            # fc2 weight / bias
        out_specs=spec_x,
        compiler_params=pltpu.CompilerParams(
            dimension_semantics=("parallel",),              # batch-tiles over TCs
            vmem_limit_bytes=vmem_limit),
    )(x.reshape(B * N, C).astype(f32),
      params["ln1_g"].reshape(1, C).astype(f32),
      params["ln1_b"].reshape(1, C).astype(f32),
      wqkv,
      wproj,
      params["proj_b"].reshape(1, C).astype(f32),
      params["ln2_g"].reshape(1, C).astype(f32),
      params["ln2_b"].reshape(1, C).astype(f32),
      params["fc1_w"].astype(bf16),
      params["fc1_b"].reshape(1, H).astype(f32),
      params["fc2_w"].astype(bf16),
      params["fc2_b"].reshape(1, C).astype(f32))

    return out.reshape(B, N, C)


# --------------------------- pure-JAX reference ------------------------------

def transformer_block_ref(x, p, num_heads):
    B, N, C = x.shape
    hd = C // num_heads
    scale = hd ** -0.5

    def ln(v, g, b, eps=1e-5):
        mu = v.mean(-1, keepdims=True)
        var = ((v - mu) ** 2).mean(-1, keepdims=True)
        return (v - mu) / jnp.sqrt(var + eps) * g + b

    h = ln(x, p["ln1_g"], p["ln1_b"])
    qkv = h @ p["qkv_w"]
    qkv = qkv.reshape(B, N, 3, num_heads, hd).transpose(2, 0, 3, 1, 4)
    q, k, v = qkv[0], qkv[1], qkv[2]
    s = jnp.einsum("bhqd,bhkd->bhqk", q, k) * scale
    attn = jax.nn.softmax(s, axis=-1)
    a = jnp.einsum("bhqk,bhkd->bhqd", attn, v).transpose(0, 2, 1, 3).reshape(B, N, C)
    x = x + (a @ p["proj_w"] + p["proj_b"])
    h = ln(x, p["ln2_g"], p["ln2_b"])
    h = jax.nn.gelu(h @ p["fc1_w"] + p["fc1_b"], approximate=False)
    h = h @ p["fc2_w"] + p["fc2_b"]
    return x + h


# ------------------------------ parameter init -------------------------------

def init_params(key, dim, mlp_ratio=4.0):
    hidden = int(dim * mlp_ratio)
    keys = iter(jax.random.split(key, 16))

    def w(shape, scale=0.05):
        return scale * jax.random.normal(next(keys), shape, jnp.float32)

    return {
        "ln1_g": 1.0 + w((dim,), 0.02), "ln1_b": w((dim,), 0.02),
        "qkv_w": w((dim, 3 * dim)),                 # nn.Linear(dim, 3*dim, bias=False)
        "proj_w": w((dim, dim)), "proj_b": w((dim,), 0.02),
        "ln2_g": 1.0 + w((dim,), 0.02), "ln2_b": w((dim,), 0.02),
        "fc1_w": w((dim, hidden)), "fc1_b": w((hidden,), 0.02),
        "fc2_w": w((hidden, dim)), "fc2_b": w((dim,), 0.02),
    }


if __name__ == "__main__":
    root = jax.random.PRNGKey(0)
    kx, kp = jax.random.split(root)

    B, N, C, num_heads = 2, 16, 32, 8                # dim=32, 8 heads, mlp_ratio=4
    x = jax.random.normal(kx, (B, N, C), jnp.float32)
    params = init_params(kp, dim=C)

    fwd = jax.jit(functools.partial(transformer_block, num_heads=num_heads))
    y = jax.block_until_ready(fwd(x, params))

    assert y.shape == (B, N, C) and y.dtype == jnp.float32
    assert bool(jnp.all(jnp.isfinite(y)))

    y_ref = transformer_block_ref(x, params, num_heads)
    err = float(jnp.max(jnp.abs(y - y_ref)))
    assert err < 5e-2, f"max abs error vs reference: {err}"

    print("KERNEL_OK")
</pallas_src>

<mosaic_0001>
module attributes {stable_mosaic.version = 11 : i64} {
  func.func @_transformer_block_kernel(%arg0: i32, %arg1: memref<32x32xf32, #tpu.memory_space<vmem>>, %arg2: memref<1x32xf32, #tpu.memory_space<vmem>>, %arg3: memref<1x32xf32, #tpu.memory_space<vmem>>, %arg4: memref<32x96xbf16, #tpu.memory_space<vmem>>, %arg5: memref<8x4x32xbf16, #tpu.memory_space<vmem>>, %arg6: memref<1x32xf32, #tpu.memory_space<vmem>>, %arg7: memref<1x32xf32, #tpu.memory_space<vmem>>, %arg8: memref<1x32xf32, #tpu.memory_space<vmem>>, %arg9: memref<32x128xbf16, #tpu.memory_space<vmem>>, %arg10: memref<1x128xf32, #tpu.memory_space<vmem>>, %arg11: memref<128x32xbf16, #tpu.memory_space<vmem>>, %arg12: memref<1x32xf32, #tpu.memory_space<vmem>>, %arg13: memref<32x32xf32, #tpu.memory_space<vmem>>) attributes {dimension_semantics = [#tpu.dimension_semantics<parallel>], iteration_bounds = array<i64: 1>, scalar_prefetch = 0 : i64, scratch_operands = 0 : i64, tpu.core_type = #tpu.core_type<tc>, window_params = [{transform_indices = @transform_0, window_bounds = array<i64: 32, 32>}, {pipeline_mode = #tpu.pipeline_mode<synchronous>, transform_indices = @transform_1, window_bounds = array<i64: 1, 32>}, {pipeline_mode = #tpu.pipeline_mode<synchronous>, transform_indices = @transform_2, window_bounds = array<i64: 1, 32>}, {pipeline_mode = #tpu.pipeline_mode<synchronous>, transform_indices = @transform_3, window_bounds = array<i64: 32, 96>}, {pipeline_mode = #tpu.pipeline_mode<synchronous>, transform_indices = @transform_4, window_bounds = array<i64: 8, 4, 32>}, {pipeline_mode = #tpu.pipeline_mode<synchronous>, transform_indices = @transform_5, window_bounds = array<i64: 1, 32>}, {pipeline_mode = #tpu.pipeline_mode<synchronous>, transform_indices = @transform_6, window_bounds = array<i64: 1, 32>}, {pipeline_mode = #tpu.pipeline_mode<synchronous>, transform_indices = @transform_7, window_bounds = array<i64: 1, 32>}, {pipeline_mode = #tpu.pipeline_mode<synchronous>, transform_indices = @transform_8, window_bounds = array<i64: 32, 128>}, {pipeline_mode = #tpu.pipeline_mode<synchronous>, transform_indices = @transform_9, window_bounds = array<i64: 1, 128>}, {pipeline_mode = #tpu.pipeline_mode<synchronous>, transform_indices = @transform_10, window_bounds = array<i64: 128, 32>}, {pipeline_mode = #tpu.pipeline_mode<synchronous>, transform_indices = @transform_11, window_bounds = array<i64: 1, 32>}, {transform_indices = @transform_12, window_bounds = array<i64: 32, 32>}]} {
    %c0 = arith.constant 0 : index
    %c0_0 = arith.constant 0 : index
    %0 = vector.load %arg1[%c0, %c0_0] : memref<32x32xf32, #tpu.memory_space<vmem>>, vector<32x32xf32>
    %c0_1 = arith.constant 0 : index
    %c0_2 = arith.constant 0 : index
    %1 = vector.load %arg2[%c0_1, %c0_2] : memref<1x32xf32, #tpu.memory_space<vmem>>, vector<1x32xf32>
    %c0_3 = arith.constant 0 : index
    %c0_4 = arith.constant 0 : index
    %2 = vector.load %arg3[%c0_3, %c0_4] : memref<1x32xf32, #tpu.memory_space<vmem>>, vector<1x32xf32>
    %cst = arith.constant dense<0.000000e+00> : vector<32xf32>
    %3 = vector.multi_reduction <add>, %0, %cst [1] : vector<32x32xf32> to vector<32xf32>
    %4 = vector.shape_cast %3 : vector<32xf32> to vector<32x1xf32>
    %cst_5 = arith.constant 3.200000e+01 : f32
    %5 = vector.broadcast %cst_5 : f32 to vector<32x1xf32>
    %6 = arith.divf %4, %5 : vector<32x1xf32>
    %7 = vector.broadcast %6 : vector<32x1xf32> to vector<32x32xf32>
    %8 = arith.subf %0, %7 : vector<32x32xf32>
    %9 = arith.mulf %8, %8 : vector<32x32xf32>
    %cst_6 = arith.constant dense<0.000000e+00> : vector<32xf32>
    %10 = vector.multi_reduction <add>, %9, %cst_6 [1] : vector<32x32xf32> to vector<32xf32>
    %11 = vector.shape_cast %10 : vector<32xf32> to vector<32x1xf32>
    %cst_7 = arith.constant 3.200000e+01 : f32
    %12 = vector.broadcast %cst_7 : f32 to vector<32x1xf32>
    %13 = arith.divf %11, %12 : vector<32x1xf32>
    %14 = vector.broadcast %6 : vector<32x1xf32> to vector<32x32xf32>
    %15 = arith.subf %0, %14 : vector<32x32xf32>
    %cst_8 = arith.constant 9.99999974E-6 : f32
    %16 = vector.broadcast %cst_8 : f32 to vector<32x1xf32>
    %17 = arith.addf %13, %16 : vector<32x1xf32>
    %18 = math.rsqrt %17 : vector<32x1xf32>
    %19 = vector.broadcast %18 : vector<32x1xf32> to vector<32x32xf32>
    %20 = arith.mulf %15, %19 : vector<32x32xf32>
    %21 = vector.broadcast %1 : vector<1x32xf32> to vector<32x32xf32>
    %22 = arith.mulf %20, %21 : vector<32x32xf32>
    %23 = vector.broadcast %2 : vector<1x32xf32> to vector<32x32xf32>
    %24 = arith.addf %22, %23 : vector<32x32xf32>
    %25 = arith.truncf %24 : vector<32x32xf32> to vector<32x32xbf16>
    %c0_9 = arith.constant 0 : index
    %c0_10 = arith.constant 0 : index
    %26 = vector.load %arg4[%c0_9, %c0_10] : memref<32x96xbf16, #tpu.memory_space<vmem>>, vector<32x96xbf16>
    %cst_11 = arith.constant dense<0.000000e+00> : vector<32x96xf32>
    %27 = tpu.matmul %25, %26, %cst_11 {dimension_numbers = #tpu.dot_dimension_numbers<[1], [0], [0], [1], [0, 0, 1, 1], [], []>} : vector<32x32xbf16>, vector<32x96xbf16>, vector<32x96xf32> -> vector<32x96xf32>
    %cst_12 = arith.constant 0.000000e+00 : f32
    %28 = vector.broadcast %cst_12 : f32 to vector<32x32xf32>
    %29 = vector.extract_strided_slice %27 {offsets = [0, 0], sizes = [32, 4], strides = [1, 1]} : vector<32x96xf32> to vector<32x4xf32>
    %30 = arith.truncf %29 : vector<32x4xf32> to vector<32x4xbf16>
    %31 = vector.extract_strided_slice %27 {offsets = [0, 32], sizes = [32, 4], strides = [1, 1]} : vector<32x96xf32> to vector<32x4xf32>
    %32 = arith.truncf %31 : vector<32x4xf32> to vector<32x4xbf16>
    %33 = vector.extract_strided_slice %27 {offsets = [0, 64], sizes = [32, 4], strides = [1, 1]} : vector<32x96xf32> to vector<32x4xf32>
    %34 = arith.truncf %33 : vector<32x4xf32> to vector<32x4xbf16>
    %35 = vector.shape_cast %30 : vector<32x4xbf16> to vector<2x16x4xbf16>
    %36 = vector.shape_cast %32 : vector<32x4xbf16> to vector<2x16x4xbf16>
    %37 = vector.shape_cast %34 : vector<32x4xbf16> to vector<2x16x4xbf16>
    "tpu.trace_start"() <{level = 10 : i32, message = "bqd,bkd->bqk"}> : () -> ()
    %cst_13 = arith.constant dense<0.000000e+00> : vector<2x16x16xf32>
    %38 = tpu.matmul %35, %36, %cst_13 {dimension_numbers = #tpu.dot_dimension_numbers<[2], [2], [1], [1], [0, 0, 0, 1, 1, 1], [0], [0]>} : vector<2x16x4xbf16>, vector<2x16x4xbf16>, vector<2x16x16xf32> -> vector<2x16x16xf32>
    "tpu.trace_stop"() : () -> ()
    %cst_14 = arith.constant dense<0xFF800000> : vector<2x16xf32>
    %39 = vector.multi_reduction <maximumf>, %38, %cst_14 [2] : vector<2x16x16xf32> to vector<2x16xf32>
    %40 = vector.shape_cast %39 : vector<2x16xf32> to vector<2x16x1xf32>
    %41 = vector.broadcast %40 : vector<2x16x1xf32> to vector<2x16x16xf32>
    %42 = arith.subf %38, %41 : vector<2x16x16xf32>
    %43 = math.exp %42 : vector<2x16x16xf32>
    %cst_15 = arith.constant dense<0.000000e+00> : vector<2x16xf32>
    %44 = vector.multi_reduction <add>, %43, %cst_15 [2] : vector<2x16x16xf32> to vector<2x16xf32>
    %45 = vector.shape_cast %44 : vector<2x16xf32> to vector<2x16x1xf32>
    %46 = tpu.reciprocal %45 {approx = true} : vector<2x16x1xf32> -> vector<2x16x1xf32>
    %47 = vector.broadcast %46 : vector<2x16x1xf32> to vector<2x16x16xf32>
    %48 = arith.mulf %43, %47 : vector<2x16x16xf32>
    %49 = arith.truncf %48 : vector<2x16x16xf32> to vector<2x16x16xbf16>
    "tpu.trace_start"() <{level = 10 : i32, message = "bqk,bkd->bqd"}> : () -> ()
    %cst_16 = arith.constant dense<0.000000e+00> : vector<2x16x4xf32>
    %50 = tpu.matmul %49, %37, %cst_16 {dimension_numbers = #tpu.dot_dimension_numbers<[2], [1], [1], [2], [0, 0, 0, 1, 1, 2], [0], [0]>} : vector<2x16x16xbf16>, vector<2x16x4xbf16>, vector<2x16x4xf32> -> vector<2x16x4xf32>
    "tpu.trace_stop"() : () -> ()
    %51 = vector.shape_cast %50 : vector<2x16x4xf32> to vector<32x4xf32>
    %52 = arith.truncf %51 : vector<32x4xf32> to vector<32x4xbf16>
    %c0_17 = arith.constant 0 : index
    %c0_18 = arith.constant 0 : index
    %c0_19 = arith.constant 0 : index
    %53 = vector.load %arg5[%c0_17, %c0_18, %c0_19] : memref<8x4x32xbf16, #tpu.memory_space<vmem>>, vector<1x4x32xbf16>
    %54 = vector.shape_cast %53 : vector<1x4x32xbf16> to vector<4x32xbf16>
    %cst_20 = arith.constant dense<0.000000e+00> : vector<32x32xf32>
    %55 = tpu.matmul %52, %54, %cst_20 {dimension_numbers = #tpu.dot_dimension_numbers<[1], [0], [0], [1], [0, 0, 1, 1], [], []>} : vector<32x4xbf16>, vector<4x32xbf16>, vector<32x32xf32> -> vector<32x32xf32>
    %56 = arith.addf %28, %55 : vector<32x32xf32>
    %57 = vector.extract_strided_slice %27 {offsets = [0, 4], sizes = [32, 4], strides = [1, 1]} : vector<32x96xf32> to vector<32x4xf32>
    %58 = arith.truncf %57 : vector<32x4xf32> to vector<32x4xbf16>
    %59 = vector.extract_strided_slice %27 {offsets = [0, 36], sizes = [32, 4], strides = [1, 1]} : vector<32x96xf32> to vector<32x4xf32>
    %60 = arith.truncf %59 : vector<32x4xf32> to vector<32x4xbf16>
    %61 = vector.extract_strided_slice %27 {offsets = [0, 68], sizes = [32, 4], strides = [1, 1]} : vector<32x96xf32> to vector<32x4xf32>
    %62 = arith.truncf %61 : vector<32x4xf32> to vector<32x4xbf16>
    %63 = vector.shape_cast %58 : vector<32x4xbf16> to vector<2x16x4xbf16>
    %64 = vector.shape_cast %60 : vector<32x4xbf16> to vector<2x16x4xbf16>
    %65 = vector.shape_cast %62 : vector<32x4xbf16> to vector<2x16x4xbf16>
    "tpu.trace_start"() <{level = 10 : i32, message = "bqd,bkd->bqk"}> : () -> ()
    %cst_21 = arith.constant dense<0.000000e+00> : vector<2x16x16xf32>
    %66 = tpu.matmul %63, %64, %cst_21 {dimension_numbers = #tpu.dot_dimension_numbers<[2], [2], [1], [1], [0, 0, 0, 1, 1, 1], [0], [0]>} : vector<2x16x4xbf16>, vector<2x16x4xbf16>, vector<2x16x16xf32> -> vector<2x16x16xf32>
    "tpu.trace_stop"() : () -> ()
    %cst_22 = arith.constant dense<0xFF800000> : vector<2x16xf32>
    %67 = vector.multi_reduction <maximumf>, %66, %cst_22 [2] : vector<2x16x16xf32> to vector<2x16xf32>
    %68 = vector.shape_cast %67 : vector<2x16xf32> to vector<2x16x1xf32>
    %69 = vector.broadcast %68 : vector<2x16x1xf32> to vector<2x16x16xf32>
    %70 = arith.subf %66, %69 : vector<2x16x16xf32>
    %71 = math.exp %70 : vector<2x16x16xf32>
    %cst_23 = arith.constant dense<0.000000e+00> : vector<2x16xf32>
    %72 = vector.multi_reduction <add>, %71, %cst_23 [2] : vector<2x16x16xf32> to vector<2x16xf32>
    %73 = vector.shape_cast %72 : vector<2x16xf32> to vector<2x16x1xf32>
    %74 = tpu.reciprocal %73 {approx = true} : vector<2x16x1xf32> -> vector<2x16x1xf32>
    %75 = vector.broadcast %74 : vector<2x16x1xf32> to vector<2x16x16xf32>
    %76 = arith.mulf %71, %75 : vector<2x16x16xf32>
    %77 = arith.truncf %76 : vector<2x16x16xf32> to vector<2x16x16xbf16>
    "tpu.trace_start"() <{level = 10 : i32, message = "bqk,bkd->bqd"}> : () -> ()
    %cst_24 = arith.constant dense<0.000000e+00> : vector<2x16x4xf32>
    %78 = tpu.matmul %77, %65, %cst_24 {dimension_numbers = #tpu.dot_dimension_numbers<[2], [1], [1], [2], [0, 0, 0, 1, 1, 2], [0], [0]>} : vector<2x16x16xbf16>, vector<2x16x4xbf16>, vector<2x16x4xf32> -> vector<2x16x4xf32>
    "tpu.trace_stop"() : () -> ()
    %79 = vector.shape_cast %78 : vector<2x16x4xf32> to vector<32x4xf32>
    %80 = arith.truncf %79 : vector<32x4xf32> to vector<32x4xbf16>
    %c1 = arith.constant 1 : index
    %c0_25 = arith.constant 0 : index
    %c0_26 = arith.constant 0 : index
    %81 = vector.load %arg5[%c1, %c0_25, %c0_26] : memref<8x4x32xbf16, #tpu.memory_space<vmem>>, vector<1x4x32xbf16>
    %82 = vector.shape_cast %81 : vector<1x4x32xbf16> to vector<4x32xbf16>
    %cst_27 = arith.constant dense<0.000000e+00> : vector<32x32xf32>
    %83 = tpu.matmul %80, %82, %cst_27 {dimension_numbers = #tpu.dot_dimension_numbers<[1], [0], [0], [1], [0, 0, 1, 1], [], []>} : vector<32x4xbf16>, vector<4x32xbf16>, vector<32x32xf32> -> vector<32x32xf32>
    %84 = arith.addf %56, %83 : vector<32x32xf32>
    %85 = vector.extract_strided_slice %27 {offsets = [0, 8], sizes = [32, 4], strides = [1, 1]} : vector<32x96xf32> to vector<32x4xf32>
    %86 = arith.truncf %85 : vector<32x4xf32> to vector<32x4xbf16>
    %87 = vector.extract_strided_slice %27 {offsets = [0, 40], sizes = [32, 4], strides = [1, 1]} : vector<32x96xf32> to vector<32x4xf32>
    %88 = arith.truncf %87 : vector<32x4xf32> to vector<32x4xbf16>
    %89 = vector.extract_strided_slice %27 {offsets = [0, 72], sizes = [32, 4], strides = [1, 1]} : vector<32x96xf32> to vector<32x4xf32>
    %90 = arith.truncf %89 : vector<32x4xf32> to vector<32x4xbf16>
    %91 = vector.shape_cast %86 : vector<32x4xbf16> to vector<2x16x4xbf16>
    %92 = vector.shape_cast %88 : vector<32x4xbf16> to vector<2x16x4xbf16>
    %93 = vector.shape_cast %90 : vector<32x4xbf16> to vector<2x16x4xbf16>
    "tpu.trace_start"() <{level = 10 : i32, message = "bqd,bkd->bqk"}> : () -> ()
    %cst_28 = arith.constant dense<0.000000e+00> : vector<2x16x16xf32>
    %94 = tpu.matmul %91, %92, %cst_28 {dimension_numbers = #tpu.dot_dimension_numbers<[2], [2], [1], [1], [0, 0, 0, 1, 1, 1], [0], [0]>} : vector<2x16x4xbf16>, vector<2x16x4xbf16>, vector<2x16x16xf32> -> vector<2x16x16xf32>
    "tpu.trace_stop"() : () -> ()
    %cst_29 = arith.constant dense<0xFF800000> : vector<2x16xf32>
    %95 = vector.multi_reduction <maximumf>, %94, %cst_29 [2] : vector<2x16x16xf32> to vector<2x16xf32>
    %96 = vector.shape_cast %95 : vector<2x16xf32> to vector<2x16x1xf32>
    %97 = vector.broadcast %96 : vector<2x16x1xf32> to vector<2x16x16xf32>
    %98 = arith.subf %94, %97 : vector<2x16x16xf32>
    %99 = math.exp %98 : vector<2x16x16xf32>
    %cst_30 = arith.constant dense<0.000000e+00> : vector<2x16xf32>
    %100 = vector.multi_reduction <add>, %99, %cst_30 [2] : vector<2x16x16xf32> to vector<2x16xf32>
    %101 = vector.shape_cast %100 : vector<2x16xf32> to vector<2x16x1xf32>
    %102 = tpu.reciprocal %101 {approx = true} : vector<2x16x1xf32> -> vector<2x16x1xf32>
    %103 = vector.broadcast %102 : vector<2x16x1xf32> to vector<2x16x16xf32>
    %104 = arith.mulf %99, %103 : vector<2x16x16xf32>
    %105 = arith.truncf %104 : vector<2x16x16xf32> to vector<2x16x16xbf16>
    "tpu.trace_start"() <{level = 10 : i32, message = "bqk,bkd->bqd"}> : () -> ()
    %cst_31 = arith.constant dense<0.000000e+00> : vector<2x16x4xf32>
    %106 = tpu.matmul %105, %93, %cst_31 {dimension_numbers = #tpu.dot_dimension_numbers<[2], [1], [1], [2], [0, 0, 0, 1, 1, 2], [0], [0]>} : vector<2x16x16xbf16>, vector<2x16x4xbf16>, vector<2x16x4xf32> -> vector<2x16x4xf32>
    "tpu.trace_stop"() : () -> ()
    %107 = vector.shape_cast %106 : vector<2x16x4xf32> to vector<32x4xf32>
    %108 = arith.truncf %107 : vector<32x4xf32> to vector<32x4xbf16>
    %c2 = arith.constant 2 : index
    %c0_32 = arith.constant 0 : index
    %c0_33 = arith.constant 0 : index
    %109 = vector.load %arg5[%c2, %c0_32, %c0_33] : memref<8x4x32xbf16, #tpu.memory_space<vmem>>, vector<1x4x32xbf16>
    %110 = vector.shape_cast %109 : vector<1x4x32xbf16> to vector<4x32xbf16>
    %cst_34 = arith.constant dense<0.000000e+00> : vector<32x32xf32>
    %111 = tpu.matmul %108, %110, %cst_34 {dimension_numbers = #tpu.dot_dimension_numbers<[1], [0], [0], [1], [0, 0, 1, 1], [], []>} : vector<32x4xbf16>, vector<4x32xbf16>, vector<32x32xf32> -> vector<32x32xf32>
    %112 = arith.addf %84, %111 : vector<32x32xf32>
    %113 = vector.extract_strided_slice %27 {offsets = [0, 12], sizes = [32, 4], strides = [1, 1]} : vector<32x96xf32> to vector<32x4xf32>
    %114 = arith.truncf %113 : vector<32x4xf32> to vector<32x4xbf16>
    %115 = vector.extract_strided_slice %27 {offsets = [0, 44], sizes = [32, 4], strides = [1, 1]} : vector<32x96xf32> to vector<32x4xf32>
    %116 = arith.truncf %115 : vector<32x4xf32> to vector<32x4xbf16>
    %117 = vector.extract_strided_slice %27 {offsets = [0, 76], sizes = [32, 4], strides = [1, 1]} : vector<32x96xf32> to vector<32x4xf32>
    %118 = arith.truncf %117 : vector<32x4xf32> to vector<32x4xbf16>
    %119 = vector.shape_cast %114 : vector<32x4xbf16> to vector<2x16x4xbf16>
    %120 = vector.shape_cast %116 : vector<32x4xbf16> to vector<2x16x4xbf16>
    %121 = vector.shape_cast %118 : vector<32x4xbf16> to vector<2x16x4xbf16>
    "tpu.trace_start"() <{level = 10 : i32, message = "bqd,bkd->bqk"}> : () -> ()
    %cst_35 = arith.constant dense<0.000000e+00> : vector<2x16x16xf32>
    %122 = tpu.matmul %119, %120, %cst_35 {dimension_numbers = #tpu.dot_dimension_numbers<[2], [2], [1], [1], [0, 0, 0, 1, 1, 1], [0], [0]>} : vector<2x16x4xbf16>, vector<2x16x4xbf16>, vector<2x16x16xf32> -> vector<2x16x16xf32>
    "tpu.trace_stop"() : () -> ()
    %cst_36 = arith.constant dense<0xFF800000> : vector<2x16xf32>
    %123 = vector.multi_reduction <maximumf>, %122, %cst_36 [2] : vector<2x16x16xf32> to vector<2x16xf32>
    %124 = vector.shape_cast %123 : vector<2x16xf32> to vector<2x16x1xf32>
    %125 = vector.broadcast %124 : vector<2x16x1xf32> to vector<2x16x16xf32>
    %126 = arith.subf %122, %125 : vector<2x16x16xf32>
    %127 = math.exp %126 : vector<2x16x16xf32>
    %cst_37 = arith.constant dense<0.000000e+00> : vector<2x16xf32>
    %128 = vector.multi_reduction <add>, %127, %cst_37 [2] : vector<2x16x16xf32> to vector<2x16xf32>
    %129 = vector.shape_cast %128 : vector<2x16xf32> to vector<2x16x1xf32>
    %130 = tpu.reciprocal %129 {approx = true} : vector<2x16x1xf32> -> vector<2x16x1xf32>
    %131 = vector.broadcast %130 : vector<2x16x1xf32> to vector<2x16x16xf32>
    %132 = arith.mulf %127, %131 : vector<2x16x16xf32>
    %133 = arith.truncf %132 : vector<2x16x16xf32> to vector<2x16x16xbf16>
    "tpu.trace_start"() <{level = 10 : i32, message = "bqk,bkd->bqd"}> : () -> ()
    %cst_38 = arith.constant dense<0.000000e+00> : vector<2x16x4xf32>
    %134 = tpu.matmul %133, %121, %cst_38 {dimension_numbers = #tpu.dot_dimension_numbers<[2], [1], [1], [2], [0, 0, 0, 1, 1, 2], [0], [0]>} : vector<2x16x16xbf16>, vector<2x16x4xbf16>, vector<2x16x4xf32> -> vector<2x16x4xf32>
    "tpu.trace_stop"() : () -> ()
    %135 = vector.shape_cast %134 : vector<2x16x4xf32> to vector<32x4xf32>
    %136 = arith.truncf %135 : vector<32x4xf32> to vector<32x4xbf16>
    %c3 = arith.constant 3 : index
    %c0_39 = arith.constant 0 : index
    %c0_40 = arith.constant 0 : index
    %137 = vector.load %arg5[%c3, %c0_39, %c0_40] : memref<8x4x32xbf16, #tpu.memory_space<vmem>>, vector<1x4x32xbf16>
    %138 = vector.shape_cast %137 : vector<1x4x32xbf16> to vector<4x32xbf16>
    %cst_41 = arith.constant dense<0.000000e+00> : vector<32x32xf32>
    %139 = tpu.matmul %136, %138, %cst_41 {dimension_numbers = #tpu.dot_dimension_numbers<[1], [0], [0], [1], [0, 0, 1, 1], [], []>} : vector<32x4xbf16>, vector<4x32xbf16>, vector<32x32xf32> -> vector<32x32xf32>
    %140 = arith.addf %112, %139 : vector<32x32xf32>
    %141 = vector.extract_strided_slice %27 {offsets = [0, 16], sizes = [32, 4], strides = [1, 1]} : vector<32x96xf32> to vector<32x4xf32>
    %142 = arith.truncf %141 : vector<32x4xf32> to vector<32x4xbf16>
    %143 = vector.extract_strided_slice %27 {offsets = [0, 48], sizes = [32, 4], strides = [1, 1]} : vector<32x96xf32> to vector<32x4xf32>
    %144 = arith.truncf %143 : vector<32x4xf32> to vector<32x4xbf16>
    %145 = vector.extract_strided_slice %27 {offsets = [0, 80], sizes = [32, 4], strides = [1, 1]} : vector<32x96xf32> to vector<32x4xf32>
    %146 = arith.truncf %145 : vector<32x4xf32> to vector<32x4xbf16>
    %147 = vector.shape_cast %142 : vector<32x4xbf16> to vector<2x16x4xbf16>
    %148 = vector.shape_cast %144 : vector<32x4xbf16> to vector<2x16x4xbf16>
    %149 = vector.shape_cast %146 : vector<32x4xbf16> to vector<2x16x4xbf16>
    "tpu.trace_start"() <{level = 10 : i32, message = "bqd,bkd->bqk"}> : () -> ()
    %cst_42 = arith.constant dense<0.000000e+00> : vector<2x16x16xf32>
    %150 = tpu.matmul %147, %148, %cst_42 {dimension_numbers = #tpu.dot_dimension_numbers<[2], [2], [1], [1], [0, 0, 0, 1, 1, 1], [0], [0]>} : vector<2x16x4xbf16>, vector<2x16x4xbf16>, vector<2x16x16xf32> -> vector<2x16x16xf32>
    "tpu.trace_stop"() : () -> ()
    %cst_43 = arith.constant dense<0xFF800000> : vector<2x16xf32>
    %151 = vector.multi_reduction <maximumf>, %150, %cst_43 [2] : vector<2x16x16xf32> to vector<2x16xf32>
    %152 = vector.shape_cast %151 : vector<2x16xf32> to vector<2x16x1xf32>
    %153 = vector.broadcast %152 : vector<2x16x1xf32> to vector<2x16x16xf32>
    %154 = arith.subf %150, %153 : vector<2x16x16xf32>
    %155 = math.exp %154 : vector<2x16x16xf32>
    %cst_44 = arith.constant dense<0.000000e+00> : vector<2x16xf32>
    %156 = vector.multi_reduction <add>, %155, %cst_44 [2] : vector<2x16x16xf32> to vector<2x16xf32>
    %157 = vector.shape_cast %156 : vector<2x16xf32> to vector<2x16x1xf32>
    %158 = tpu.reciprocal %157 {approx = true} : vector<2x16x1xf32> -> vector<2x16x1xf32>
    %159 = vector.broadcast %158 : vector<2x16x1xf32> to vector<2x16x16xf32>
    %160 = arith.mulf %155, %159 : vector<2x16x16xf32>
    %161 = arith.truncf %160 : vector<2x16x16xf32> to vector<2x16x16xbf16>
    "tpu.trace_start"() <{level = 10 : i32, message = "bqk,bkd->bqd"}> : () -> ()
    %cst_45 = arith.constant dense<0.000000e+00> : vector<2x16x4xf32>
    %162 = tpu.matmul %161, %149, %cst_45 {dimension_numbers = #tpu.dot_dimension_numbers<[2], [1], [1], [2], [0, 0, 0, 1, 1, 2], [0], [0]>} : vector<2x16x16xbf16>, vector<2x16x4xbf16>, vector<2x16x4xf32> -> vector<2x16x4xf32>
    "tpu.trace_stop"() : () -> ()
    %163 = vector.shape_cast %162 : vector<2x16x4xf32> to vector<32x4xf32>
    %164 = arith.truncf %163 : vector<32x4xf32> to vector<32x4xbf16>
    %c4 = arith.constant 4 : index
    %c0_46 = arith.constant 0 : index
    %c0_47 = arith.constant 0 : index
    %165 = vector.load %arg5[%c4, %c0_46, %c0_47] : memref<8x4x32xbf16, #tpu.memory_space<vmem>>, vector<1x4x32xbf16>
    %166 = vector.shape_cast %165 : vector<1x4x32xbf16> to vector<4x32xbf16>
    %cst_48 = arith.constant dense<0.000000e+00> : vector<32x32xf32>
    %167 = tpu.matmul %164, %166, %cst_48 {dimension_numbers = #tpu.dot_dimension_numbers<[1], [0], [0], [1], [0, 0, 1, 1], [], []>} : vector<32x4xbf16>, vector<4x32xbf16>, vector<32x32xf32> -> vector<32x32xf32>
    %168 = arith.addf %140, %167 : vector<32x32xf32>
    %169 = vector.extract_strided_slice %27 {offsets = [0, 20], sizes = [32, 4], strides = [1, 1]} : vector<32x96xf32> to vector<32x4xf32>
    %170 = arith.truncf %169 : vector<32x4xf32> to vector<32x4xbf16>
    %171 = vector.extract_strided_slice %27 {offsets = [0, 52], sizes = [32, 4], strides = [1, 1]} : vector<32x96xf32> to vector<32x4xf32>
    %172 = arith.truncf %171 : vector<32x4xf32> to vector<32x4xbf16>
    %173 = vector.extract_strided_slice %27 {offsets = [0, 84], sizes = [32, 4], strides = [1, 1]} : vector<32x96xf32> to vector<32x4xf32>
    %174 = arith.truncf %173 : vector<32x4xf32> to vector<32x4xbf16>
    %175 = vector.shape_cast %170 : vector<32x4xbf16> to vector<2x16x4xbf16>
    %176 = vector.shape_cast %172 : vector<32x4xbf16> to vector<2x16x4xbf16>
    %177 = vector.shape_cast %174 : vector<32x4xbf16> to vector<2x16x4xbf16>
    "tpu.trace_start"() <{level = 10 : i32, message = "bqd,bkd->bqk"}> : () -> ()
    %cst_49 = arith.constant dense<0.000000e+00> : vector<2x16x16xf32>
    %178 = tpu.matmul %175, %176, %cst_49 {dimension_numbers = #tpu.dot_dimension_numbers<[2], [2], [1], [1], [0, 0, 0, 1, 1, 1], [0], [0]>} : vector<2x16x4xbf16>, vector<2x16x4xbf16>, vector<2x16x16xf32> -> vector<2x16x16xf32>
    "tpu.trace_stop"() : () -> ()
    %cst_50 = arith.constant dense<0xFF800000> : vector<2x16xf32>
    %179 = vector.multi_reduction <maximumf>, %178, %cst_50 [2] : vector<2x16x16xf32> to vector<2x16xf32>
    %180 = vector.shape_cast %179 : vector<2x16xf32> to vector<2x16x1xf32>
    %181 = vector.broadcast %180 : vector<2x16x1xf32> to vector<2x16x16xf32>
    %182 = arith.subf %178, %181 : vector<2x16x16xf32>
    %183 = math.exp %182 : vector<2x16x16xf32>
    %cst_51 = arith.constant dense<0.000000e+00> : vector<2x16xf32>
    %184 = vector.multi_reduction <add>, %183, %cst_51 [2] : vector<2x16x16xf32> to vector<2x16xf32>
    %185 = vector.shape_cast %184 : vector<2x16xf32> to vector<2x16x1xf32>
    %186 = tpu.reciprocal %185 {approx = true} : vector<2x16x1xf32> -> vector<2x16x1xf32>
    %187 = vector.broadcast %186 : vector<2x16x1xf32> to vector<2x16x16xf32>
    %188 = arith.mulf %183, %187 : vector<2x16x16xf32>
    %189 = arith.truncf %188 : vector<2x16x16xf32> to vector<2x16x16xbf16>
    "tpu.trace_start"() <{level = 10 : i32, message = "bqk,bkd->bqd"}> : () -> ()
    %cst_52 = arith.constant dense<0.000000e+00> : vector<2x16x4xf32>
    %190 = tpu.matmul %189, %177, %cst_52 {dimension_numbers = #tpu.dot_dimension_numbers<[2], [1], [1], [2], [0, 0, 0, 1, 1, 2], [0], [0]>} : vector<2x16x16xbf16>, vector<2x16x4xbf16>, vector<2x16x4xf32> -> vector<2x16x4xf32>
    "tpu.trace_stop"() : () -> ()
    %191 = vector.shape_cast %190 : vector<2x16x4xf32> to vector<32x4xf32>
    %192 = arith.truncf %191 : vector<32x4xf32> to vector<32x4xbf16>
    %c5 = arith.constant 5 : index
    %c0_53 = arith.constant 0 : index
    %c0_54 = arith.constant 0 : index
    %193 = vector.load %arg5[%c5, %c0_53, %c0_54] : memref<8x4x32xbf16, #tpu.memory_space<vmem>>, vector<1x4x32xbf16>
    %194 = vector.shape_cast %193 : vector<1x4x32xbf16> to vector<4x32xbf16>
    %cst_55 = arith.constant dense<0.000000e+00> : vector<32x32xf32>
    %195 = tpu.matmul %192, %194, %cst_55 {dimension_numbers = #tpu.dot_dimension_numbers<[1], [0], [0], [1], [0, 0, 1, 1], [], []>} : vector<32x4xbf16>, vector<4x32xbf16>, vector<32x32xf32> -> vector<32x32xf32>
    %196 = arith.addf %168, %195 : vector<32x32xf32>
    %197 = vector.extract_strided_slice %27 {offsets = [0, 24], sizes = [32, 4], strides = [1, 1]} : vector<32x96xf32> to vector<32x4xf32>
    %198 = arith.truncf %197 : vector<32x4xf32> to vector<32x4xbf16>
    %199 = vector.extract_strided_slice %27 {offsets = [0, 56], sizes = [32, 4], strides = [1, 1]} : vector<32x96xf32> to vector<32x4xf32>
    %200 = arith.truncf %199 : vector<32x4xf32> to vector<32x4xbf16>
    %201 = vector.extract_strided_slice %27 {offsets = [0, 88], sizes = [32, 4], strides = [1, 1]} : vector<32x96xf32> to vector<32x4xf32>
    %202 = arith.truncf %201 : vector<32x4xf32> to vector<32x4xbf16>
    %203 = vector.shape_cast %198 : vector<32x4xbf16> to vector<2x16x4xbf16>
    %204 = vector.shape_cast %200 : vector<32x4xbf16> to vector<2x16x4xbf16>
    %205 = vector.shape_cast %202 : vector<32x4xbf16> to vector<2x16x4xbf16>
    "tpu.trace_start"() <{level = 10 : i32, message = "bqd,bkd->bqk"}> : () -> ()
    %cst_56 = arith.constant dense<0.000000e+00> : vector<2x16x16xf32>
    %206 = tpu.matmul %203, %204, %cst_56 {dimension_numbers = #tpu.dot_dimension_numbers<[2], [2], [1], [1], [0, 0, 0, 1, 1, 1], [0], [0]>} : vector<2x16x4xbf16>, vector<2x16x4xbf16>, vector<2x16x16xf32> -> vector<2x16x16xf32>
    "tpu.trace_stop"() : () -> ()
    %cst_57 = arith.constant dense<0xFF800000> : vector<2x16xf32>
    %207 = vector.multi_reduction <maximumf>, %206, %cst_57 [2] : vector<2x16x16xf32> to vector<2x16xf32>
    %208 = vector.shape_cast %207 : vector<2x16xf32> to vector<2x16x1xf32>
    %209 = vector.broadcast %208 : vector<2x16x1xf32> to vector<2x16x16xf32>
    %210 = arith.subf %206, %209 : vector<2x16x16xf32>
    %211 = math.exp %210 : vector<2x16x16xf32>
    %cst_58 = arith.constant dense<0.000000e+00> : vector<2x16xf32>
    %212 = vector.multi_reduction <add>, %211, %cst_58 [2] : vector<2x16x16xf32> to vector<2x16xf32>
    %213 = vector.shape_cast %212 : vector<2x16xf32> to vector<2x16x1xf32>
    %214 = tpu.reciprocal %213 {approx = true} : vector<2x16x1xf32> -> vector<2x16x1xf32>
    %215 = vector.broadcast %214 : vector<2x16x1xf32> to vector<2x16x16xf32>
    %216 = arith.mulf %211, %215 : vector<2x16x16xf32>
    %217 = arith.truncf %216 : vector<2x16x16xf32> to vector<2x16x16xbf16>
    "tpu.trace_start"() <{level = 10 : i32, message = "bqk,bkd->bqd"}> : () -> ()
    %cst_59 = arith.constant dense<0.000000e+00> : vector<2x16x4xf32>
    %218 = tpu.matmul %217, %205, %cst_59 {dimension_numbers = #tpu.dot_dimension_numbers<[2], [1], [1], [2], [0, 0, 0, 1, 1, 2], [0], [0]>} : vector<2x16x16xbf16>, vector<2x16x4xbf16>, vector<2x16x4xf32> -> vector<2x16x4xf32>
    "tpu.trace_stop"() : () -> ()
    %219 = vector.shape_cast %218 : vector<2x16x4xf32> to vector<32x4xf32>
    %220 = arith.truncf %219 : vector<32x4xf32> to vector<32x4xbf16>
    %c6 = arith.constant 6 : index
    %c0_60 = arith.constant 0 : index
    %c0_61 = arith.constant 0 : index
    %221 = vector.load %arg5[%c6, %c0_60, %c0_61] : memref<8x4x32xbf16, #tpu.memory_space<vmem>>, vector<1x4x32xbf16>
    %222 = vector.shape_cast %221 : vector<1x4x32xbf16> to vector<4x32xbf16>
    %cst_62 = arith.constant dense<0.000000e+00> : vector<32x32xf32>
    %223 = tpu.matmul %220, %222, %cst_62 {dimension_numbers = #tpu.dot_dimension_numbers<[1], [0], [0], [1], [0, 0, 1, 1], [], []>} : vector<32x4xbf16>, vector<4x32xbf16>, vector<32x32xf32> -> vector<32x32xf32>
    %224 = arith.addf %196, %223 : vector<32x32xf32>
    %225 = vector.extract_strided_slice %27 {offsets = [0, 28], sizes = [32, 4], strides = [1, 1]} : vector<32x96xf32> to vector<32x4xf32>
    %226 = arith.truncf %225 : vector<32x4xf32> to vector<32x4xbf16>
    %227 = vector.extract_strided_slice %27 {offsets = [0, 60], sizes = [32, 4], strides = [1, 1]} : vector<32x96xf32> to vector<32x4xf32>
    %228 = arith.truncf %227 : vector<32x4xf32> to vector<32x4xbf16>
    %229 = vector.extract_strided_slice %27 {offsets = [0, 92], sizes = [32, 4], strides = [1, 1]} : vector<32x96xf32> to vector<32x4xf32>
    %230 = arith.truncf %229 : vector<32x4xf32> to vector<32x4xbf16>
    %231 = vector.shape_cast %226 : vector<32x4xbf16> to vector<2x16x4xbf16>
    %232 = vector.shape_cast %228 : vector<32x4xbf16> to vector<2x16x4xbf16>
    %233 = vector.shape_cast %230 : vector<32x4xbf16> to vector<2x16x4xbf16>
    "tpu.trace_start"() <{level = 10 : i32, message = "bqd,bkd->bqk"}> : () -> ()
    %cst_63 = arith.constant dense<0.000000e+00> : vector<2x16x16xf32>
    %234 = tpu.matmul %231, %232, %cst_63 {dimension_numbers = #tpu.dot_dimension_numbers<[2], [2], [1], [1], [0, 0, 0, 1, 1, 1], [0], [0]>} : vector<2x16x4xbf16>, vector<2x16x4xbf16>, vector<2x16x16xf32> -> vector<2x16x16xf32>
    "tpu.trace_stop"() : () -> ()
    %cst_64 = arith.constant dense<0xFF800000> : vector<2x16xf32>
    %235 = vector.multi_reduction <maximumf>, %234, %cst_64 [2] : vector<2x16x16xf32> to vector<2x16xf32>
    %236 = vector.shape_cast %235 : vector<2x16xf32> to vector<2x16x1xf32>
    %237 = vector.broadcast %236 : vector<2x16x1xf32> to vector<2x16x16xf32>
    %238 = arith.subf %234, %237 : vector<2x16x16xf32>
    %239 = math.exp %238 : vector<2x16x16xf32>
    %cst_65 = arith.constant dense<0.000000e+00> : vector<2x16xf32>
    %240 = vector.multi_reduction <add>, %239, %cst_65 [2] : vector<2x16x16xf32> to vector<2x16xf32>
    %241 = vector.shape_cast %240 : vector<2x16xf32> to vector<2x16x1xf32>
    %242 = tpu.reciprocal %241 {approx = true} : vector<2x16x1xf32> -> vector<2x16x1xf32>
    %243 = vector.broadcast %242 : vector<2x16x1xf32> to vector<2x16x16xf32>
    %244 = arith.mulf %239, %243 : vector<2x16x16xf32>
    %245 = arith.truncf %244 : vector<2x16x16xf32> to vector<2x16x16xbf16>
    "tpu.trace_start"() <{level = 10 : i32, message = "bqk,bkd->bqd"}> : () -> ()
    %cst_66 = arith.constant dense<0.000000e+00> : vector<2x16x4xf32>
    %246 = tpu.matmul %245, %233, %cst_66 {dimension_numbers = #tpu.dot_dimension_numbers<[2], [1], [1], [2], [0, 0, 0, 1, 1, 2], [0], [0]>} : vector<2x16x16xbf16>, vector<2x16x4xbf16>, vector<2x16x4xf32> -> vector<2x16x4xf32>
    "tpu.trace_stop"() : () -> ()
    %247 = vector.shape_cast %246 : vector<2x16x4xf32> to vector<32x4xf32>
    %248 = arith.truncf %247 : vector<32x4xf32> to vector<32x4xbf16>
    %c7 = arith.constant 7 : index
    %c0_67 = arith.constant 0 : index
    %c0_68 = arith.constant 0 : index
    %249 = vector.load %arg5[%c7, %c0_67, %c0_68] : memref<8x4x32xbf16, #tpu.memory_space<vmem>>, vector<1x4x32xbf16>
    %250 = vector.shape_cast %249 : vector<1x4x32xbf16> to vector<4x32xbf16>
    %cst_69 = arith.constant dense<0.000000e+00> : vector<32x32xf32>
    %251 = tpu.matmul %248, %250, %cst_69 {dimension_numbers = #tpu.dot_dimension_numbers<[1], [0], [0], [1], [0, 0, 1, 1], [], []>} : vector<32x4xbf16>, vector<4x32xbf16>, vector<32x32xf32> -> vector<32x32xf32>
    %252 = arith.addf %224, %251 : vector<32x32xf32>
    %253 = arith.addf %0, %252 : vector<32x32xf32>
    %c0_70 = arith.constant 0 : index
    %c0_71 = arith.constant 0 : index
    %254 = vector.load %arg6[%c0_70, %c0_71] : memref<1x32xf32, #tpu.memory_space<vmem>>, vector<1x32xf32>
    %255 = vector.broadcast %254 : vector<1x32xf32> to vector<32x32xf32>
    %256 = arith.addf %253, %255 : vector<32x32xf32>
    %c0_72 = arith.constant 0 : index
    %c0_73 = arith.constant 0 : index
    %257 = vector.load %arg7[%c0_72, %c0_73] : memref<1x32xf32, #tpu.memory_space<vmem>>, vector<1x32xf32>
    %c0_74 = arith.constant 0 : index
    %c0_75 = arith.constant 0 : index
    %258 = vector.load %arg8[%c0_74, %c0_75] : memref<1x32xf32, #tpu.memory_space<vmem>>, vector<1x32xf32>
    %cst_76 = arith.constant dense<0.000000e+00> : vector<32xf32>
    %259 = vector.multi_reduction <add>, %256, %cst_76 [1] : vector<32x32xf32> to vector<32xf32>
    %260 = vector.shape_cast %259 : vector<32xf32> to vector<32x1xf32>
    %cst_77 = arith.constant 3.200000e+01 : f32
    %261 = vector.broadcast %cst_77 : f32 to vector<32x1xf32>
    %262 = arith.divf %260, %261 : vector<32x1xf32>
    %263 = vector.broadcast %262 : vector<32x1xf32> to vector<32x32xf32>
    %264 = arith.subf %256, %263 : vector<32x32xf32>
    %265 = arith.mulf %264, %264 : vector<32x32xf32>
    %cst_78 = arith.constant dense<0.000000e+00> : vector<32xf32>
    %266 = vector.multi_reduction <add>, %265, %cst_78 [1] : vector<32x32xf32> to vector<32xf32>
    %267 = vector.shape_cast %266 : vector<32xf32> to vector<32x1xf32>
    %cst_79 = arith.constant 3.200000e+01 : f32
    %268 = vector.broadcast %cst_79 : f32 to vector<32x1xf32>
    %269 = arith.divf %267, %268 : vector<32x1xf32>
    %270 = vector.broadcast %262 : vector<32x1xf32> to vector<32x32xf32>
    %271 = arith.subf %256, %270 : vector<32x32xf32>
    %cst_80 = arith.constant 9.99999974E-6 : f32
    %272 = vector.broadcast %cst_80 : f32 to vector<32x1xf32>
    %273 = arith.addf %269, %272 : vector<32x1xf32>
    %274 = math.rsqrt %273 : vector<32x1xf32>
    %275 = vector.broadcast %274 : vector<32x1xf32> to vector<32x32xf32>
    %276 = arith.mulf %271, %275 : vector<32x32xf32>
    %277 = vector.broadcast %257 : vector<1x32xf32> to vector<32x32xf32>
    %278 = arith.mulf %276, %277 : vector<32x32xf32>
    %279 = vector.broadcast %258 : vector<1x32xf32> to vector<32x32xf32>
    %280 = arith.addf %278, %279 : vector<32x32xf32>
    %281 = arith.truncf %280 : vector<32x32xf32> to vector<32x32xbf16>
    %c0_81 = arith.constant 0 : index
    %c0_82 = arith.constant 0 : index
    %282 = vector.load %arg9[%c0_81, %c0_82] : memref<32x128xbf16, #tpu.memory_space<vmem>>, vector<32x128xbf16>
    %cst_83 = arith.constant dense<0.000000e+00> : vector<32x128xf32>
    %283 = tpu.matmul %281, %282, %cst_83 {dimension_numbers = #tpu.dot_dimension_numbers<[1], [0], [0], [1], [0, 0, 1, 1], [], []>} : vector<32x32xbf16>, vector<32x128xbf16>, vector<32x128xf32> -> vector<32x128xf32>
    %c0_84 = arith.constant 0 : index
    %c0_85 = arith.constant 0 : index
    %284 = vector.load %arg10[%c0_84, %c0_85] : memref<1x128xf32, #tpu.memory_space<vmem>>, vector<1x128xf32>
    %285 = vector.broadcast %284 : vector<1x128xf32> to vector<32x128xf32>
    %286 = arith.addf %283, %285 : vector<32x128xf32>
    %cst_86 = arith.constant 5.000000e-01 : f32
    %287 = vector.broadcast %cst_86 : f32 to vector<32x128xf32>
    %288 = arith.mulf %287, %286 : vector<32x128xf32>
    %cst_87 = arith.constant 4.471500e-02 : f32
    %289 = vector.broadcast %cst_87 : f32 to vector<32x128xf32>
    %290 = arith.mulf %289, %286 : vector<32x128xf32>
    %291 = arith.mulf %290, %286 : vector<32x128xf32>
    %292 = arith.mulf %291, %286 : vector<32x128xf32>
    %293 = arith.addf %286, %292 : vector<32x128xf32>
    %cst_88 = arith.constant 0.797884583 : f32
    %294 = vector.broadcast %cst_88 : f32 to vector<32x128xf32>
    %295 = arith.mulf %294, %293 : vector<32x128xf32>
    %296 = math.tanh %295 : vector<32x128xf32>
    %cst_89 = arith.constant 1.000000e+00 : f32
    %297 = vector.broadcast %cst_89 : f32 to vector<32x128xf32>
    %298 = arith.addf %297, %296 : vector<32x128xf32>
    %299 = arith.mulf %288, %298 : vector<32x128xf32>
    %300 = arith.truncf %299 : vector<32x128xf32> to vector<32x128xbf16>
    %c0_90 = arith.constant 0 : index
    %c0_91 = arith.constant 0 : index
    %301 = vector.load %arg11[%c0_90, %c0_91] : memref<128x32xbf16, #tpu.memory_space<vmem>>, vector<128x32xbf16>
    %cst_92 = arith.constant dense<0.000000e+00> : vector<32x32xf32>
    %302 = tpu.matmul %300, %301, %cst_92 {dimension_numbers = #tpu.dot_dimension_numbers<[1], [0], [0], [1], [0, 0, 1, 1], [], []>} : vector<32x128xbf16>, vector<128x32xbf16>, vector<32x32xf32> -> vector<32x32xf32>
    %c0_93 = arith.constant 0 : index
    %c0_94 = arith.constant 0 : index
    %303 = vector.load %arg12[%c0_93, %c0_94] : memref<1x32xf32, #tpu.memory_space<vmem>>, vector<1x32xf32>
    %304 = vector.broadcast %303 : vector<1x32xf32> to vector<32x32xf32>
    %305 = arith.addf %302, %304 : vector<32x32xf32>
    %306 = arith.addf %256, %305 : vector<32x32xf32>
    %c0_95 = arith.constant 0 : index
    %c0_96 = arith.constant 0 : index
    %307 = vector.load %arg13[%c0_95, %c0_96] : memref<32x32xf32, #tpu.memory_space<vmem>>, vector<32x32xf32>
    tpu.vector_store %arg13[%c0_95, %c0_96], %306 {strides = array<i32>} : memref<32x32xf32, #tpu.memory_space<vmem>>, vector<32x32xf32>,
    return
  }
  func.func @transform_0(%arg0: i32) -> (i32, i32) {
    %c0_i32 = arith.constant 0 : i32
    %c0_i32_0 = arith.constant 0 : i32
    return %arg0, %c0_i32 : i32, i32
  }
  func.func @transform_1(%arg0: i32) -> (i32, i32) {
    %c0_i32 = arith.constant 0 : i32
    %c0_i32_0 = arith.constant 0 : i32
    %c0_i32_1 = arith.constant 0 : i32
    return %c0_i32, %c0_i32_0 : i32, i32
  }
  func.func @transform_2(%arg0: i32) -> (i32, i32) {
    %c0_i32 = arith.constant 0 : i32
    %c0_i32_0 = arith.constant 0 : i32
    %c0_i32_1 = arith.constant 0 : i32
    return %c0_i32, %c0_i32_0 : i32, i32
  }
  func.func @transform_3(%arg0: i32) -> (i32, i32) {
    %c0_i32 = arith.constant 0 : i32
    %c0_i32_0 = arith.constant 0 : i32
    %c0_i32_1 = arith.constant 0 : i32
    return %c0_i32, %c0_i32_0 : i32, i32
  }
  func.func @transform_4(%arg0: i32) -> (i32, i32, i32) {
    %c0_i32 = arith.constant 0 : i32
    %c0_i32_0 = arith.constant 0 : i32
    %c0_i32_1 = arith.constant 0 : i32
    %c0_i32_2 = arith.constant 0 : i32
    return %c0_i32, %c0_i32_0, %c0_i32_1 : i32, i32, i32
  }
  func.func @transform_5(%arg0: i32) -> (i32, i32) {
    %c0_i32 = arith.constant 0 : i32
    %c0_i32_0 = arith.constant 0 : i32
    %c0_i32_1 = arith.constant 0 : i32
    return %c0_i32, %c0_i32_0 : i32, i32
  }
  func.func @transform_6(%arg0: i32) -> (i32, i32) {
    %c0_i32 = arith.constant 0 : i32
    %c0_i32_0 = arith.constant 0 : i32
    %c0_i32_1 = arith.constant 0 : i32
    return %c0_i32, %c0_i32_0 : i32, i32
  }
  func.func @transform_7(%arg0: i32) -> (i32, i32) {
    %c0_i32 = arith.constant 0 : i32
    %c0_i32_0 = arith.constant 0 : i32
    %c0_i32_1 = arith.constant 0 : i32
    return %c0_i32, %c0_i32_0 : i32, i32
  }
  func.func @transform_8(%arg0: i32) -> (i32, i32) {
    %c0_i32 = arith.constant 0 : i32
    %c0_i32_0 = arith.constant 0 : i32
    %c0_i32_1 = arith.constant 0 : i32
    return %c0_i32, %c0_i32_0 : i32, i32
  }
  func.func @transform_9(%arg0: i32) -> (i32, i32) {
    %c0_i32 = arith.constant 0 : i32
    %c0_i32_0 = arith.constant 0 : i32
    %c0_i32_1 = arith.constant 0 : i32
    return %c0_i32, %c0_i32_0 : i32, i32
  }
  func.func @transform_10(%arg0: i32) -> (i32, i32) {
    %c0_i32 = arith.constant 0 : i32
    %c0_i32_0 = arith.constant 0 : i32
    %c0_i32_1 = arith.constant 0 : i32
    return %c0_i32, %c0_i32_0 : i32, i32
  }
  func.func @transform_11(%arg0: i32) -> (i32, i32) {
    %c0_i32 = arith.constant 0 : i32
    %c0_i32_0 = arith.constant 0 : i32
    %c0_i32_1 = arith.constant 0 : i32
    return %c0_i32, %c0_i32_0 : i32, i32
  }
  func.func @transform_12(%arg0: i32) -> (i32, i32) {
    %c0_i32 = arith.constant 0 : i32
    %c0_i32_0 = arith.constant 0 : i32
    return %arg0, %c0_i32 : i32, i32
  }
}

</mosaic_0001>

<llo_original>
// kernel: transformer_block.1
$region0: #{transformer_block.1}
  #allocation0 [shape = 'u32[]', space=smem, size = 0x4, offset = 0x4, fixed_abs, tag = 'smem constant byte address 0x4 - core index']
  #allocation1 [shape = 'u32[144,128]{1,0:T(1,128)}', space=vmem, size = 0x12000, scoped, tag = 'internal scratch']
  %s0 = inlined_call_operand.vmem [shape: f32[32,32], index: 0, kind: input, shape index: {}]
  %s1 = inlined_call_operand.vmem [shape: f32[1,32], index: 1, kind: input, shape index: {}]
  %s2 = inlined_call_operand.vmem [shape: f32[1,32], index: 2, kind: input, shape index: {}]
  %s3 = inlined_call_operand.vmem [shape: bf16[32,96], index: 3, kind: input, shape index: {}]
  %s4 = inlined_call_operand.vmem [shape: bf16[8,4,32], index: 4, kind: input, shape index: {}]
  %s5 = inlined_call_operand.vmem [shape: f32[1,32], index: 5, kind: input, shape index: {}]
  %s6 = inlined_call_operand.vmem [shape: f32[1,32], index: 6, kind: input, shape index: {}]
  %s7 = inlined_call_operand.vmem [shape: f32[1,32], index: 7, kind: input, shape index: {}]
  %s8 = inlined_call_operand.vmem [shape: bf16[32,128], index: 8, kind: input, shape index: {}]
  %s9 = inlined_call_operand.vmem [shape: f32[1,128], index: 9, kind: input, shape index: {}]
  %s10 = inlined_call_operand.vmem [shape: bf16[128,32], index: 10, kind: input, shape index: {}]
  %s11 = inlined_call_operand.vmem [shape: f32[1,32], index: 11, kind: input, shape index: {}]
  %s12 = inlined_call_operand.hbm [shape: f32[32,32], index: 12, kind: output, shape index: {}]
  %s13 = sld [smem:[#allocation0]]
  $region58: #{transformer_block.1} parent=0
    _
  %s15 = ssub.s32 1, %s13
  %s16 = scalar_select 0, %s15, %s13
  $region1: #{transformer_block.1} parent=0
    #allocation2 [shape = 'u8[16384]{0}', space=vmem, size = 0x4000, scoped, tag = 'output window, operand 0, single buffered']
    #allocation3 [shape = 's32[1]{0}', space=sflag, size = 0x4, scoped, tag = 'scoped memory for transformer_block.1']
    %17 = vsyncpa [#allocation3], 0
    // Predicated region
    $region2: #{transformer_block.1} parent=1 // pred_check
      _
    $region3: #{transformer_block.1} parent=1 // pred_check_branch
      %19 = sbr.rel (0) target = $region5
    $region4: #{transformer_block.1} parent=1 // pred_region
      _
    $region5: #{transformer_block.1} parent=1 // pred_fallthru
      _
    // Predicated region
    $region6: #{transformer_block.1} parent=1 // pred_check
      _
    $region7: #{transformer_block.1} parent=1 // pred_check_branch
      %21 = sbr.rel (0) target = $region9
    $region8: #{transformer_block.1} parent=1 // pred_region
      _
    $region9: #{transformer_block.1} parent=1 // pred_fallthru
      _
    // Predicated region
    $region10: #{transformer_block.1} parent=1 // pred_check
      _
    $region11: #{transformer_block.1} parent=1 // pred_check_branch
      %23 = sbr.rel (0) target = $region13
    $region12: #{transformer_block.1} parent=1 // pred_region
      _
    $region13: #{transformer_block.1} parent=1 // pred_fallthru
      _
    // Predicated region
    $region14: #{transformer_block.1} parent=1 // pred_check
      _
    $region15: #{transformer_block.1} parent=1 // pred_check_branch
      %25 = sbr.rel (0) target = $region17
    $region16: #{transformer_block.1} parent=1 // pred_region
      _
    $region17: #{transformer_block.1} parent=1 // pred_fallthru
      _
    // Predicated region
    $region18: #{transformer_block.1} parent=1 // pred_check
      _
    $region19: #{transformer_block.1} parent=1 // pred_check_branch
      %27 = sbr.rel (0) target = $region21
    $region20: #{transformer_block.1} parent=1 // pred_region
      _
    $region21: #{transformer_block.1} parent=1 // pred_fallthru
      _
    // Predicated region
    $region22: #{transformer_block.1} parent=1 // pred_check
      _
    $region23: #{transformer_block.1} parent=1 // pred_check_branch
      %29 = sbr.rel (0) target = $region25
    $region24: #{transformer_block.1} parent=1 // pred_region
      _
    $region25: #{transformer_block.1} parent=1 // pred_fallthru
      _
    // Predicated region
    $region26: #{transformer_block.1} parent=1 // pred_check
      _
    $region27: #{transformer_block.1} parent=1 // pred_check_branch
      %31 = sbr.rel (0) target = $region29
    $region28: #{transformer_block.1} parent=1 // pred_region
      _
    $region29: #{transformer_block.1} parent=1 // pred_fallthru
      _
    // Predicated region
    $region30: #{transformer_block.1} parent=1 // pred_check
      _
    $region31: #{transformer_block.1} parent=1 // pred_check_branch
      %33 = sbr.rel (0) target = $region33
    $region32: #{transformer_block.1} parent=1 // pred_region
      _
    $region33: #{transformer_block.1} parent=1 // pred_fallthru
      _
    // Predicated region
    $region34: #{transformer_block.1} parent=1 // pred_check
      _
    $region35: #{transformer_block.1} parent=1 // pred_check_branch
      %35 = sbr.rel (0) target = $region37
    $region36: #{transformer_block.1} parent=1 // pred_region
      _
    $region37: #{transformer_block.1} parent=1 // pred_fallthru
      _
    // Predicated region
    $region38: #{transformer_block.1} parent=1 // pred_check
      _
    $region39: #{transformer_block.1} parent=1 // pred_check_branch
      %37 = sbr.rel (0) target = $region41
    $region40: #{transformer_block.1} parent=1 // pred_region
      _
    $region41: #{transformer_block.1} parent=1 // pred_fallthru
      _
    // Predicated region
    $region42: #{transformer_block.1} parent=1 // pred_check
      _
    $region43: #{transformer_block.1} parent=1 // pred_check_branch
      %39 = sbr.rel (0) target = $region45
    $region44: #{transformer_block.1} parent=1 // pred_region
      _
    $region45: #{transformer_block.1} parent=1 // pred_fallthru
      _
    // Predicated region
    $region46: #{transformer_block.1} parent=1 // pred_check
      _
    $region47: #{transformer_block.1} parent=1 // pred_check_branch
      %41 = sbr.rel (0) target = $region49
    $region48: #{transformer_block.1} parent=1 // pred_region
      _
    $region49: #{transformer_block.1} parent=1 // pred_fallthru
      _
    %v43 = vld [vmem:[%s0] sm:$0xff]
    %v44 = vld [vmem:[%s0 + $0x8] sm:$0xff]
    %v45 = vld [vmem:[%s0 + $0x10] sm:$0xff]
    %v46 = vld [vmem:[%s0 + $0x18] sm:$0xff]
    %v47 = vld [vmem:[%s1] sm:$0x1]
    %v48 = vld [vmem:[%s2] sm:$0x1]
    %vm49 = vcmask 261120
    %v50 = vsel %vm49, %v43, 0.0
    %51 = vadd.xlane.f32.xlu0 %v50
    %v52 = vpop.xlane.xlu0 %51
    %v53 = vsel %vm49, %v44, 0.0
    %54 = vadd.xlane.f32.xlu0 %v53
    %v55 = vpop.xlane.xlu0 %54
    %v56 = vsel %vm49, %v45, 0.0
    %57 = vadd.xlane.f32.xlu0 %v56
    %v58 = vpop.xlane.xlu0 %57
    %v59 = vsel %vm49, %v46, 0.0
    %60 = vadd.xlane.f32.xlu0 %v59
    %v61 = vpop.xlane.xlu0 %60
    %v62 = vrcp.pop 32.0
    %v63 = vmul.f32 %v52, %v62
    %v64 = vmul.f32 %v55, %v62
    %v65 = vmul.f32 %v58, %v62
    %v66 = vmul.f32 %v61, %v62
    %v67 = vsub.f32 %v43, %v63
    %v68 = vsub.f32 %v44, %v64
    %v69 = vsub.f32 %v45, %v65
    %v70 = vsub.f32 %v46, %v66
    %v71 = vmul.f32 %v67, %v67
    %v72 = vmul.f32 %v68, %v68
    %v73 = vmul.f32 %v69, %v69
    %v74 = vmul.f32 %v70, %v70
    %v75 = vsel %vm49, %v71, 0.0
    %76 = vadd.xlane.f32.xlu0 %v75
    %v77 = vpop.xlane.xlu0 %76
    %v78 = vsel %vm49, %v72, 0.0
    %79 = vadd.xlane.f32.xlu0 %v78
    %v80 = vpop.xlane.xlu0 %79
    %v81 = vsel %vm49, %v73, 0.0
    %82 = vadd.xlane.f32.xlu0 %v81
    %v83 = vpop.xlane.xlu0 %82
    %v84 = vsel %vm49, %v74, 0.0
    %85 = vadd.xlane.f32.xlu0 %v84
    %v86 = vpop.xlane.xlu0 %85
    %v87 = vmul.f32 %v77, %v62
    %v88 = vmul.f32 %v80, %v62
    %v89 = vmul.f32 %v83, %v62
    %v90 = vmul.f32 %v86, %v62
    %v91 = vadd.f32 %v87, 1e-05
    %v92 = vadd.f32 %v88, 1e-05
    %v93 = vadd.f32 %v89, 1e-05
    %v94 = vadd.f32 %v90, 1e-05
    %v95 = vrsqrt.pop %v91
    %v96 = vrsqrt.pop %v92
    %v97 = vrsqrt.pop %v93
    %v98 = vrsqrt.pop %v94
    %v99 = vmul.f32 %v67, %v95
    %v100 = vmul.f32 %v68, %v96
    %v101 = vmul.f32 %v69, %v97
    %v102 = vmul.f32 %v70, %v98
    %v104 = vlaneseq
    %v105 = vshrl.u32 %v104, 7
    %v106 = vsub.s32 0, %v105
    %v107 = vrot.slane %v47, %v106
    %v109 = vmul.f32 %v99, %v107
    %v110 = vmul.f32 %v100, %v107
    %v111 = vmul.f32 %v101, %v107
    %v112 = vmul.f32 %v102, %v107
    %v114 = vlaneseq
    %v115 = vshrl.u32 %v114, 7
    %v116 = vsub.s32 0, %v115
    %v117 = vrot.slane %v48, %v116
    %v119 = vadd.f32 %v109, %v117
    %v120 = vadd.f32 %v110, %v117
    %v121 = vadd.f32 %v111, %v117
    %v122 = vadd.f32 %v112, %v117
    %v123 = vpack.c.bf16 %v120, %v119
    %v124 = vpack.c.bf16 %v122, %v121
    %v125 = vld [vmem:[%s3] sm:$0xf]
    %v126 = vld [vmem:[%s3 + $0x4] sm:$0xf]
    %v127 = vld [vmem:[%s3 + $0x8] sm:$0xf]
    %v128 = vld [vmem:[%s3 + $0xc] sm:$0xf]
    %v133 = vunpack.c.l.b16 %v125
    %v134 = vunpack.c.l.b16 %v126
    %v135 = vunpack.c.l.b16 %v127
    %v136 = vunpack.c.l.b16 %v128
    %v137 = vpack.c.b16 %v134, %v133
    %v138 = vpack.c.b16 %v136, %v135
    %v142 = vsel %vm49, %v123, 0
    %v145 = vsel %vm49, %v124, 0
    %147 = vmatprep.subr.bf16.mxu0 0
    %148 = vmatpush1.bf16.msra.mxu0 %v137
    %149 = vmatprep.subr.bf16.mxu0 0
    %150 = vmatpush1.bf16.msra.mxu0 %v138
    %151 = vmatprep.subr.bf16.mxu0 0
    %152 = vmatpush1.bf16.msra.mxu0 0
    %153 = vmatprep.subr.bf16.mxu0 0
    %154 = vmatpush1.bf16.msra.mxu0 0
    %155 = vmatprep.subr.bf16.mxu0 0
    %156 = vmatpush1.bf16.msra.mxu0 0
    %157 = vmatprep.subr.bf16.mxu0 0
    %158 = vmatpush1.bf16.msra.mxu0 0
    %159 = vmatprep.subr.bf16.mxu0 0
    %160 = vmatpush1.bf16.msra.mxu0 0
    %161 = vmatprep.subr.bf16.mxu0 0
    %162 = vmatpush1.bf16.msra.mxu0 0
    %163 = vmatprep.subr.bf16.mxu0 0
    %164 = vmatpush1.bf16.msra.mxu0 0
    %165 = vmatprep.subr.bf16.mxu0 0
    %166 = vmatpush1.bf16.msra.mxu0 0
    %167 = vmatprep.subr.bf16.mxu0 0
    %168 = vmatpush1.bf16.msra.mxu0 0
    %169 = vmatprep.subr.bf16.mxu0 0
    %170 = vmatpush1.bf16.msra.mxu0 0
    %171 = vmatprep.subr.bf16.mxu0 0
    %172 = vmatpush1.bf16.msra.mxu0 0
    %173 = vmatprep.subr.bf16.mxu0 0
    %174 = vmatpush1.bf16.msra.mxu0 0
    %175 = vmatprep.subr.bf16.mxu0 0
    %176 = vmatpush1.bf16.msra.mxu0 0
    %177 = vmatprep.subr.bf16.mxu0 0
    %178 = vmatpush1.bf16.msra.mxu0 0
    %179 = vmatprep.mubr.bf16.mxu0 0
    %180 = vmatmul.mubr.bf16.gmra.mrb[0].mxu0 %v142
    %v181 = vpop.f32.mrb[0].mxu0
    %v182 = vadd.f32 0.0, %v181
    %v183 = vpop.f32.mrb[0].mxu0
    %v184 = vpop.f32.mrb[0].mxu0
    %v185 = vadd.f32 0.0, %v184
    %v186 = vpop.f32.mrb[0].mxu0
    %187 = vmatprep.mubr.bf16.mxu0 0
    %188 = vmatmul.mubr.bf16.gmra.mrb[0].mxu0 %v145
    %v189 = vpop.f32.mrb[0].mxu0
    %v190 = vadd.f32 0.0, %v189
    %v191 = vpop.f32.mrb[0].mxu0
    %v192 = vpop.f32.mrb[0].mxu0
    %v193 = vadd.f32 0.0, %v192
    %v194 = vpop.f32.mrb[0].mxu0
    %195 = vdwg.mxu0
    %v196 = vpack.c.bf16 %v185, %v182
    %v197 = vpack.c.bf16 %v193, %v190
    %199 = vrot.lane.b32.xlu0 %v196, 96
    %v200 = vpop.permute.xlu0 %199
    %vm201 = vcmask 31744
    %v203 = vsel %vm201, %v196, 0
    %v206 = vsel %vm201, %v200, 0
    %208 = vmatprep.subr.bf16.mxu0 0
    %209 = vmatpush1.bf16.xpose.msra.mxu0 %v206
    %210 = vmatprep.subr.bf16.mxu0 0
    %211 = vmatpush1.bf16.xpose.msra.mxu0 0
    %212 = vmatprep.subr.bf16.mxu0 0
    %213 = vmatpush1.bf16.xpose.msra.mxu0 0
    %214 = vmatprep.subr.bf16.mxu0 0
    %215 = vmatpush1.bf16.xpose.msra.mxu0 0
    %216 = vmatprep.subr.bf16.mxu0 0
    %217 = vmatpush1.bf16.xpose.msra.mxu0 0
    %218 = vmatprep.subr.bf16.mxu0 0
    %219 = vmatpush1.bf16.xpose.msra.mxu0 0
    %220 = vmatprep.subr.bf16.mxu0 0
    %221 = vmatpush1.bf16.xpose.msra.mxu0 0
    %222 = vmatprep.subr.bf16.mxu0 0
    %223 = vmatpush1.bf16.xpose.msra.mxu0 0
    %224 = vmatprep.subr.bf16.mxu0 0
    %225 = vmatpush1.bf16.xpose.msra.mxu0 0
    %226 = vmatprep.subr.bf16.mxu0 0
    %227 = vmatpush1.bf16.xpose.msra.mxu0 0
    %228 = vmatprep.subr.bf16.mxu0 0
    %229 = vmatpush1.bf16.xpose.msra.mxu0 0
    %230 = vmatprep.subr.bf16.mxu0 0
    %231 = vmatpush1.bf16.xpose.msra.mxu0 0
    %232 = vmatprep.subr.bf16.mxu0 0
    %233 = vmatpush1.bf16.xpose.msra.mxu0 0
    %234 = vmatprep.subr.bf16.mxu0 0
    %235 = vmatpush1.bf16.xpose.msra.mxu0 0
    %236 = vmatprep.subr.bf16.mxu0 0
    %237 = vmatpush1.bf16.xpose.msra.mxu0 0
    %238 = vmatprep.subr.bf16.mxu0 0
    %239 = vmatpush1.bf16.xpose.msra.mxu0 0
    %240 = vmatprep.mubr.bf16.mxu0 0
    %241 = vmatmul.mubr.bf16.gmra.mrb[0].mxu0 %v203
    %v242 = vpop.f32.mrb[0].mxu0
    %v243 = vadd.f32 0.0, %v242
    %v244 = vpop.f32.mrb[0].mxu0
    %v245 = vpop.f32.mrb[0].mxu0
    %v246 = vadd.f32 0.0, %v245
    %v247 = vpop.f32.mrb[0].mxu0
    %248 = vdwg.mxu0
    %250 = vrot.lane.b32.xlu0 %v197, 96
    %v251 = vpop.permute.xlu0 %250
    %v253 = vsel %vm201, %v197, 0
    %v256 = vsel %vm201, %v251, 0
    %258 = vmatprep.subr.bf16.mxu0 0
    %259 = vmatpush1.bf16.xpose.msra.mxu0 %v256
    %260 = vmatprep.subr.bf16.mxu0 0
    %261 = vmatpush1.bf16.xpose.msra.mxu0 0
    %262 = vmatprep.subr.bf16.mxu0 0
    %263 = vmatpush1.bf16.xpose.msra.mxu0 0
    %264 = vmatprep.subr.bf16.mxu0 0
    %265 = vmatpush1.bf16.xpose.msra.mxu0 0
    %266 = vmatprep.subr.bf16.mxu0 0
    %267 = vmatpush1.bf16.xpose.msra.mxu0 0
    %268 = vmatprep.subr.bf16.mxu0 0
    %269 = vmatpush1.bf16.xpose.msra.mxu0 0
    %270 = vmatprep.subr.bf16.mxu0 0
    %271 = vmatpush1.bf16.xpose.msra.mxu0 0
    %272 = vmatprep.subr.bf16.mxu0 0
    %273 = vmatpush1.bf16.xpose.msra.mxu0 0
    %274 = vmatprep.subr.bf16.mxu0 0
    %275 = vmatpush1.bf16.xpose.msra.mxu0 0
    %276 = vmatprep.subr.bf16.mxu0 0
    %277 = vmatpush1.bf16.xpose.msra.mxu0 0
    %278 = vmatprep.subr.bf16.mxu0 0
    %279 = vmatpush1.bf16.xpose.msra.mxu0 0
    %280 = vmatprep.subr.bf16.mxu0 0
    %281 = vmatpush1.bf16.xpose.msra.mxu0 0
    %282 = vmatprep.subr.bf16.mxu0 0
    %283 = vmatpush1.bf16.xpose.msra.mxu0 0
    %284 = vmatprep.subr.bf16.mxu0 0
    %285 = vmatpush1.bf16.xpose.msra.mxu0 0
    %286 = vmatprep.subr.bf16.mxu0 0
    %287 = vmatpush1.bf16.xpose.msra.mxu0 0
    %288 = vmatprep.subr.bf16.mxu0 0
    %289 = vmatpush1.bf16.xpose.msra.mxu0 0
    %290 = vmatprep.mubr.bf16.mxu0 0
    %291 = vmatmul.mubr.bf16.gmra.mrb[0].mxu0 %v253
    %v292 = vpop.f32.mrb[0].mxu0
    %v293 = vadd.f32 0.0, %v292
    %v294 = vpop.f32.mrb[0].mxu0
    %v295 = vpop.f32.mrb[0].mxu0
    %v296 = vadd.f32 0.0, %v295
    %v297 = vpop.f32.mrb[0].mxu0
    %298 = vdwg.mxu0
    %vm299 = vcmask 130048
    %v300 = vsel %vm299, %v243, -inf
    %301 = vmax.xlane.f32.xlu0 %v300
    %v302 = vpop.xlane.xlu0 %301
    %v303 = vsel %vm299, %v246, -inf
    %304 = vmax.xlane.f32.xlu0 %v303
    %v305 = vpop.xlane.xlu0 %304
    %v306 = vsel %vm299, %v293, -inf
    %307 = vmax.xlane.f32.xlu0 %v306
    %v308 = vpop.xlane.xlu0 %307
    %v309 = vsel %vm299, %v296, -inf
    %310 = vmax.xlane.f32.xlu0 %v309
    %v311 = vpop.xlane.xlu0 %310
    %v312 = vsub.f32 %v243, %v302
    %v313 = vsub.f32 %v246, %v305
    %v314 = vsub.f32 %v293, %v308
    %v315 = vsub.f32 %v296, %v311
    %v316 = vmul.f32 %v312, 1.442695
    %v317 = vpow.pop %v316
    %v318 = vmul.f32 %v313, 1.442695
    %v319 = vpow.pop %v318
    %v320 = vmul.f32 %v314, 1.442695
    %v321 = vpow.pop %v320
    %v322 = vmul.f32 %v315, 1.442695
    %v323 = vpow.pop %v322
    %v324 = vsel %vm299, %v317, 0.0
    %325 = vadd.xlane.f32.xlu0 %v324
    %v326 = vpop.xlane.xlu0 %325
    %v327 = vsel %vm299, %v319, 0.0
    %328 = vadd.xlane.f32.xlu0 %v327
    %v329 = vpop.xlane.xlu0 %328
    %v330 = vsel %vm299, %v321, 0.0
    %331 = vadd.xlane.f32.xlu0 %v330
    %v332 = vpop.xlane.xlu0 %331
    %v333 = vsel %vm299, %v323, 0.0
    %334 = vadd.xlane.f32.xlu0 %v333
    %v335 = vpop.xlane.xlu0 %334
    %v336 = vrcp.pop %v326
    %v337 = vrcp.pop %v329
    %v338 = vrcp.pop %v332
    %v339 = vrcp.pop %v335
    %v340 = vmul.f32 %v317, %v336
    %v341 = vmul.f32 %v319, %v337
    %v342 = vmul.f32 %v321, %v338
    %v343 = vmul.f32 %v323, %v339
    %v344 = vpack.c.bf16 %v341, %v340
    %v345 = vpack.c.bf16 %v343, %v342
    %346 = vrot.lane.b32.xlu0 %v196, 64
    %v347 = vpop.permute.xlu0 %346
    %v350 = vsel %vm299, %v344, 0
    %352 = vmatprep.subr.bf16.mxu0 0
    %353 = vmatpush1.bf16.msra.mxu0 %v347
    %354 = vmatprep.subr.bf16.mxu0 0
    %355 = vmatpush1.bf16.msra.mxu0 0
    %356 = vmatprep.subr.bf16.mxu0 0
    %357 = vmatpush1.bf16.msra.mxu0 0
    %358 = vmatprep.subr.bf16.mxu0 0
    %359 = vmatpush1.bf16.msra.mxu0 0
    %360 = vmatprep.subr.bf16.mxu0 0
    %361 = vmatpush1.bf16.msra.mxu0 0
    %362 = vmatprep.subr.bf16.mxu0 0
    %363 = vmatpush1.bf16.msra.mxu0 0
    %364 = vmatprep.subr.bf16.mxu0 0
    %365 = vmatpush1.bf16.msra.mxu0 0
    %366 = vmatprep.subr.bf16.mxu0 0
    %367 = vmatpush1.bf16.msra.mxu0 0
    %368 = vmatprep.subr.bf16.mxu0 0
    %369 = vmatpush1.bf16.msra.mxu0 0
    %370 = vmatprep.subr.bf16.mxu0 0
    %371 = vmatpush1.bf16.msra.mxu0 0
    %372 = vmatprep.subr.bf16.mxu0 0
    %373 = vmatpush1.bf16.msra.mxu0 0
    %374 = vmatprep.subr.bf16.mxu0 0
    %375 = vmatpush1.bf16.msra.mxu0 0
    %376 = vmatprep.subr.bf16.mxu0 0
    %377 = vmatpush1.bf16.msra.mxu0 0
    %378 = vmatprep.subr.bf16.mxu0 0
    %379 = vmatpush1.bf16.msra.mxu0 0
    %380 = vmatprep.subr.bf16.mxu0 0
    %381 = vmatpush1.bf16.msra.mxu0 0
    %382 = vmatprep.subr.bf16.mxu0 0
    %383 = vmatpush1.bf16.msra.mxu0 0
    %384 = vmatprep.mubr.bf16.mxu0 0
    %385 = vmatmul.mubr.bf16.gmra.mrb[0].mxu0 %v350
    %v386 = vpop.f32.mrb[0].mxu0
    %v387 = vadd.f32 0.0, %v386
    %v388 = vpop.f32.mrb[0].mxu0
    %v389 = vpop.f32.mrb[0].mxu0
    %v390 = vadd.f32 0.0, %v389
    %v391 = vpop.f32.mrb[0].mxu0
    %392 = vdwg.mxu0
    %393 = vrot.lane.b32.xlu0 %v197, 64
    %v394 = vpop.permute.xlu0 %393
    %v397 = vsel %vm299, %v345, 0
    %399 = vmatprep.subr.bf16.mxu0 0
    %400 = vmatpush1.bf16.msra.mxu0 %v394
    %401 = vmatprep.subr.bf16.mxu0 0
    %402 = vmatpush1.bf16.msra.mxu0 0
    %403 = vmatprep.subr.bf16.mxu0 0
    %404 = vmatpush1.bf16.msra.mxu0 0
    %405 = vmatprep.subr.bf16.mxu0 0
    %406 = vmatpush1.bf16.msra.mxu0 0
    %407 = vmatprep.subr.bf16.mxu0 0
    %408 = vmatpush1.bf16.msra.mxu0 0
    %409 = vmatprep.subr.bf16.mxu0 0
    %410 = vmatpush1.bf16.msra.mxu0 0
    %411 = vmatprep.subr.bf16.mxu0 0
    %412 = vmatpush1.bf16.msra.mxu0 0
    %413 = vmatprep.subr.bf16.mxu0 0
    %414 = vmatpush1.bf16.msra.mxu0 0
    %415 = vmatprep.subr.bf16.mxu0 0
    %416 = vmatpush1.bf16.msra.mxu0 0
    %417 = vmatprep.subr.bf16.mxu0 0
    %418 = vmatpush1.bf16.msra.mxu0 0
    %419 = vmatprep.subr.bf16.mxu0 0
    %420 = vmatpush1.bf16.msra.mxu0 0
    %421 = vmatprep.subr.bf16.mxu0 0
    %422 = vmatpush1.bf16.msra.mxu0 0
    %423 = vmatprep.subr.bf16.mxu0 0
    %424 = vmatpush1.bf16.msra.mxu0 0
    %425 = vmatprep.subr.bf16.mxu0 0
    %426 = vmatpush1.bf16.msra.mxu0 0
    %427 = vmatprep.subr.bf16.mxu0 0
    %428 = vmatpush1.bf16.msra.mxu0 0
    %429 = vmatprep.subr.bf16.mxu0 0
    %430 = vmatpush1.bf16.msra.mxu0 0
    %431 = vmatprep.mubr.bf16.mxu0 0
    %432 = vmatmul.mubr.bf16.gmra.mrb[0].mxu0 %v397
    %v433 = vpop.f32.mrb[0].mxu0
    %v434 = vadd.f32 0.0, %v433
    %v435 = vpop.f32.mrb[0].mxu0
    %v436 = vpop.f32.mrb[0].mxu0
    %v437 = vadd.f32 0.0, %v436
    %v438 = vpop.f32.mrb[0].mxu0
    %439 = vdwg.mxu0
    %v440 = vpack.c.bf16 %v390, %v387
    %v441 = vpack.c.bf16 %v437, %v434
    %v442 = vld [vmem:[%s4] sm:$0x3]
    %443 = vrot.lane.b32.xlu0 %v196, 124
    %v444 = vpop.permute.xlu0 %443
    %445 = vrot.lane.b32.xlu0 %v196, 92
    %v446 = vpop.permute.xlu0 %445
    %v448 = vsel %vm201, %v444, 0
    %v451 = vsel %vm201, %v446, 0
    %453 = vmatprep.subr.bf16.mxu0 0
    %454 = vmatpush1.bf16.xpose.msra.mxu0 %v451
    %455 = vmatprep.subr.bf16.mxu0 0
    %456 = vmatpush1.bf16.xpose.msra.mxu0 0
    %457 = vmatprep.subr.bf16.mxu0 0
    %458 = vmatpush1.bf16.xpose.msra.mxu0 0
    %459 = vmatprep.subr.bf16.mxu0 0
    %460 = vmatpush1.bf16.xpose.msra.mxu0 0
    %461 = vmatprep.subr.bf16.mxu0 0
    %462 = vmatpush1.bf16.xpose.msra.mxu0 0
    %463 = vmatprep.subr.bf16.mxu0 0
    %464 = vmatpush1.bf16.xpose.msra.mxu0 0
    %465 = vmatprep.subr.bf16.mxu0 0
    %466 = vmatpush1.bf16.xpose.msra.mxu0 0
    %467 = vmatprep.subr.bf16.mxu0 0
    %468 = vmatpush1.bf16.xpose.msra.mxu0 0
    %469 = vmatprep.subr.bf16.mxu0 0
    %470 = vmatpush1.bf16.xpose.msra.mxu0 0
    %471 = vmatprep.subr.bf16.mxu0 0
    %472 = vmatpush1.bf16.xpose.msra.mxu0 0
    %473 = vmatprep.subr.bf16.mxu0 0
    %474 = vmatpush1.bf16.xpose.msra.mxu0 0
    %475 = vmatprep.subr.bf16.mxu0 0
    %476 = vmatpush1.bf16.xpose.msra.mxu0 0
    %477 = vmatprep.subr.bf16.mxu0 0
    %478 = vmatpush1.bf16.xpose.msra.mxu0 0
    %479 = vmatprep.subr.bf16.mxu0 0
    %480 = vmatpush1.bf16.xpose.msra.mxu0 0
    %481 = vmatprep.subr.bf16.mxu0 0
    %482 = vmatpush1.bf16.xpose.msra.mxu0 0
    %483 = vmatprep.subr.bf16.mxu0 0
    %484 = vmatpush1.bf16.xpose.msra.mxu0 0
    %485 = vmatprep.mubr.bf16.mxu0 0
    %486 = vmatmul.mubr.bf16.gmra.mrb[0].mxu0 %v448
    %v487 = vpop.f32.mrb[0].mxu0
    %v488 = vadd.f32 0.0, %v487
    %v489 = vpop.f32.mrb[0].mxu0
    %v490 = vpop.f32.mrb[0].mxu0
    %v491 = vadd.f32 0.0, %v490
    %v492 = vpop.f32.mrb[0].mxu0
    %493 = vdwg.mxu0
    %494 = vrot.lane.b32.xlu0 %v197, 124
    %v495 = vpop.permute.xlu0 %494
    %496 = vrot.lane.b32.xlu0 %v197, 92
    %v497 = vpop.permute.xlu0 %496
    %v499 = vsel %vm201, %v495, 0
    %v502 = vsel %vm201, %v497, 0
    %504 = vmatprep.subr.bf16.mxu0 0
    %505 = vmatpush1.bf16.xpose.msra.mxu0 %v502
    %506 = vmatprep.subr.bf16.mxu0 0
    %507 = vmatpush1.bf16.xpose.msra.mxu0 0
    %508 = vmatprep.subr.bf16.mxu0 0
    %509 = vmatpush1.bf16.xpose.msra.mxu0 0
    %510 = vmatprep.subr.bf16.mxu0 0
    %511 = vmatpush1.bf16.xpose.msra.mxu0 0
    %512 = vmatprep.subr.bf16.mxu0 0
    %513 = vmatpush1.bf16.xpose.msra.mxu0 0
    %514 = vmatprep.subr.bf16.mxu0 0
    %515 = vmatpush1.bf16.xpose.msra.mxu0 0
    %516 = vmatprep.subr.bf16.mxu0 0
    %517 = vmatpush1.bf16.xpose.msra.mxu0 0
    %518 = vmatprep.subr.bf16.mxu0 0
    %519 = vmatpush1.bf16.xpose.msra.mxu0 0
    %520 = vmatprep.subr.bf16.mxu0 0
    %521 = vmatpush1.bf16.xpose.msra.mxu0 0
    %522 = vmatprep.subr.bf16.mxu0 0
    %523 = vmatpush1.bf16.xpose.msra.mxu0 0
    %524 = vmatprep.subr.bf16.mxu0 0
    %525 = vmatpush1.bf16.xpose.msra.mxu0 0
    %526 = vmatprep.subr.bf16.mxu0 0
    %527 = vmatpush1.bf16.xpose.msra.mxu0 0
    %528 = vmatprep.subr.bf16.mxu0 0
    %529 = vmatpush1.bf16.xpose.msra.mxu0 0
    %530 = vmatprep.subr.bf16.mxu0 0
    %531 = vmatpush1.bf16.xpose.msra.mxu0 0
    %532 = vmatprep.subr.bf16.mxu0 0
    %533 = vmatpush1.bf16.xpose.msra.mxu0 0
    %534 = vmatprep.subr.bf16.mxu0 0
    %535 = vmatpush1.bf16.xpose.msra.mxu0 0
    %536 = vmatprep.mubr.bf16.mxu0 0
    %537 = vmatmul.mubr.bf16.gmra.mrb[0].mxu0 %v499
    %v538 = vpop.f32.mrb[0].mxu0
    %v539 = vadd.f32 0.0, %v538
    %v540 = vpop.f32.mrb[0].mxu0
    %v541 = vpop.f32.mrb[0].mxu0
    %v542 = vadd.f32 0.0, %v541
    %v543 = vpop.f32.mrb[0].mxu0
    %544 = vdwg.mxu0
    %v545 = vsel %vm299, %v488, -inf
    %546 = vmax.xlane.f32.xlu0 %v545
    %v547 = vpop.xlane.xlu0 %546
    %v548 = vsel %vm299, %v491, -inf
    %549 = vmax.xlane.f32.xlu0 %v548
    %v550 = vpop.xlane.xlu0 %549
    %v551 = vsel %vm299, %v539, -inf
    %552 = vmax.xlane.f32.xlu0 %v551
    %v553 = vpop.xlane.xlu0 %552
    %v554 = vsel %vm299, %v542, -inf
    %555 = vmax.xlane.f32.xlu0 %v554
    %v556 = vpop.xlane.xlu0 %555
    %v557 = vsub.f32 %v488, %v547
    %v558 = vsub.f32 %v491, %v550
    %v559 = vsub.f32 %v539, %v553
    %v560 = vsub.f32 %v542, %v556
    %v561 = vmul.f32 %v557, 1.442695
    %v562 = vpow.pop %v561
    %v563 = vmul.f32 %v558, 1.442695
    %v564 = vpow.pop %v563
    %v565 = vmul.f32 %v559, 1.442695
    %v566 = vpow.pop %v565
    %v567 = vmul.f32 %v560, 1.442695
    %v568 = vpow.pop %v567
    %v569 = vsel %vm299, %v562, 0.0
    %570 = vadd.xlane.f32.xlu0 %v569
    %v571 = vpop.xlane.xlu0 %570
    %v572 = vsel %vm299, %v564, 0.0
    %573 = vadd.xlane.f32.xlu0 %v572
    %v574 = vpop.xlane.xlu0 %573
    %v575 = vsel %vm299, %v566, 0.0
    %576 = vadd.xlane.f32.xlu0 %v575
    %v577 = vpop.xlane.xlu0 %576
    %v578 = vsel %vm299, %v568, 0.0
    %579 = vadd.xlane.f32.xlu0 %v578
    %v580 = vpop.xlane.xlu0 %579
    %v581 = vrcp.pop %v571
    %v582 = vrcp.pop %v574
    %v583 = vrcp.pop %v577
    %v584 = vrcp.pop %v580
    %v585 = vmul.f32 %v562, %v581
    %v586 = vmul.f32 %v564, %v582
    %v587 = vmul.f32 %v566, %v583
    %v588 = vmul.f32 %v568, %v584
    %v589 = vpack.c.bf16 %v586, %v585
    %v590 = vpack.c.bf16 %v588, %v587
    %591 = vrot.lane.b32.xlu0 %v196, 60
    %v592 = vpop.permute.xlu0 %591
    %v595 = vsel %vm299, %v589, 0
    %597 = vmatprep.subr.bf16.mxu0 0
    %598 = vmatpush1.bf16.msra.mxu0 %v592
    %599 = vmatprep.subr.bf16.mxu0 0
    %600 = vmatpush1.bf16.msra.mxu0 0
    %601 = vmatprep.subr.bf16.mxu0 0
    %602 = vmatpush1.bf16.msra.mxu0 0
    %603 = vmatprep.subr.bf16.mxu0 0
    %604 = vmatpush1.bf16.msra.mxu0 0
    %605 = vmatprep.subr.bf16.mxu0 0
    %606 = vmatpush1.bf16.msra.mxu0 0
    %607 = vmatprep.subr.bf16.mxu0 0
    %608 = vmatpush1.bf16.msra.mxu0 0
    %609 = vmatprep.subr.bf16.mxu0 0
    %610 = vmatpush1.bf16.msra.mxu0 0
    %611 = vmatprep.subr.bf16.mxu0 0
    %612 = vmatpush1.bf16.msra.mxu0 0
    %613 = vmatprep.subr.bf16.mxu0 0
    %614 = vmatpush1.bf16.msra.mxu0 0
    %615 = vmatprep.subr.bf16.mxu0 0
    %616 = vmatpush1.bf16.msra.mxu0 0
    %617 = vmatprep.subr.bf16.mxu0 0
    %618 = vmatpush1.bf16.msra.mxu0 0
    %619 = vmatprep.subr.bf16.mxu0 0
    %620 = vmatpush1.bf16.msra.mxu0 0
    %621 = vmatprep.subr.bf16.mxu0 0
    %622 = vmatpush1.bf16.msra.mxu0 0
    %623 = vmatprep.subr.bf16.mxu0 0
    %624 = vmatpush1.bf16.msra.mxu0 0
    %625 = vmatprep.subr.bf16.mxu0 0
    %626 = vmatpush1.bf16.msra.mxu0 0
    %627 = vmatprep.subr.bf16.mxu0 0
    %628 = vmatpush1.bf16.msra.mxu0 0
    %629 = vmatprep.mubr.bf16.mxu0 0
    %630 = vmatmul.mubr.bf16.gmra.mrb[0].mxu0 %v595
    %v631 = vpop.f32.mrb[0].mxu0
    %v632 = vadd.f32 0.0, %v631
    %v633 = vpop.f32.mrb[0].mxu0
    %v634 = vpop.f32.mrb[0].mxu0
    %v635 = vadd.f32 0.0, %v634
    %v636 = vpop.f32.mrb[0].mxu0
    %637 = vdwg.mxu0
    %638 = vrot.lane.b32.xlu0 %v197, 60
    %v639 = vpop.permute.xlu0 %638
    %v642 = vsel %vm299, %v590, 0
    %644 = vmatprep.subr.bf16.mxu0 0
    %645 = vmatpush1.bf16.msra.mxu0 %v639
    %646 = vmatprep.subr.bf16.mxu0 0
    %647 = vmatpush1.bf16.msra.mxu0 0
    %648 = vmatprep.subr.bf16.mxu0 0
    %649 = vmatpush1.bf16.msra.mxu0 0
    %650 = vmatprep.subr.bf16.mxu0 0
    %651 = vmatpush1.bf16.msra.mxu0 0
    %652 = vmatprep.subr.bf16.mxu0 0
    %653 = vmatpush1.bf16.msra.mxu0 0
    %654 = vmatprep.subr.bf16.mxu0 0
    %655 = vmatpush1.bf16.msra.mxu0 0
    %656 = vmatprep.subr.bf16.mxu0 0
    %657 = vmatpush1.bf16.msra.mxu0 0
    %658 = vmatprep.subr.bf16.mxu0 0
    %659 = vmatpush1.bf16.msra.mxu0 0
    %660 = vmatprep.subr.bf16.mxu0 0
    %661 = vmatpush1.bf16.msra.mxu0 0
    %662 = vmatprep.subr.bf16.mxu0 0
    %663 = vmatpush1.bf16.msra.mxu0 0
    %664 = vmatprep.subr.bf16.mxu0 0
    %665 = vmatpush1.bf16.msra.mxu0 0
    %666 = vmatprep.subr.bf16.mxu0 0
    %667 = vmatpush1.bf16.msra.mxu0 0
    %668 = vmatprep.subr.bf16.mxu0 0
    %669 = vmatpush1.bf16.msra.mxu0 0
    %670 = vmatprep.subr.bf16.mxu0 0
    %671 = vmatpush1.bf16.msra.mxu0 0
    %672 = vmatprep.subr.bf16.mxu0 0
    %673 = vmatpush1.bf16.msra.mxu0 0
    %674 = vmatprep.subr.bf16.mxu0 0
    %675 = vmatpush1.bf16.msra.mxu0 0
    %676 = vmatprep.mubr.bf16.mxu0 0
    %677 = vmatmul.mubr.bf16.gmra.mrb[0].mxu0 %v642
    %v678 = vpop.f32.mrb[0].mxu0
    %v679 = vadd.f32 0.0, %v678
    %v680 = vpop.f32.mrb[0].mxu0
    %v681 = vpop.f32.mrb[0].mxu0
    %v682 = vadd.f32 0.0, %v681
    %v683 = vpop.f32.mrb[0].mxu0
    %684 = vdwg.mxu0
    %v685 = vpack.c.bf16 %v635, %v632
    %v686 = vpack.c.bf16 %v682, %v679
    %s687 = scalar_lea.vmem %s4, 2
    %v688 = vld [vmem:[%s687] sm:$0x3]
    %v690 = vsel %vm201, %v685, 0
    %v693 = vsel %vm201, %v686, 0
    %vm695 = vcmask 1041408
    %v697 = vsel %vm695, %v688, 0
    %699 = vmatprep.subr.bf16.mxu0 0
    %700 = vmatpush1.bf16.msra.mxu0 %v697
    %701 = vmatprep.subr.bf16.mxu0 0
    %702 = vmatpush1.bf16.msra.mxu0 0
    %703 = vmatprep.subr.bf16.mxu0 0
    %704 = vmatpush1.bf16.msra.mxu0 0
    %705 = vmatprep.subr.bf16.mxu0 0
    %706 = vmatpush1.bf16.msra.mxu0 0
    %707 = vmatprep.subr.bf16.mxu0 0
    %708 = vmatpush1.bf16.msra.mxu0 0
    %709 = vmatprep.subr.bf16.mxu0 0
    %710 = vmatpush1.bf16.msra.mxu0 0
    %711 = vmatprep.subr.bf16.mxu0 0
    %712 = vmatpush1.bf16.msra.mxu0 0
    %713 = vmatprep.subr.bf16.mxu0 0
    %714 = vmatpush1.bf16.msra.mxu0 0
    %715 = vmatprep.subr.bf16.mxu0 0
    %716 = vmatpush1.bf16.msra.mxu0 0
    %717 = vmatprep.subr.bf16.mxu0 0
    %718 = vmatpush1.bf16.msra.mxu0 0
    %719 = vmatprep.subr.bf16.mxu0 0
    %720 = vmatpush1.bf16.msra.mxu0 0
    %721 = vmatprep.subr.bf16.mxu0 0
    %722 = vmatpush1.bf16.msra.mxu0 0
    %723 = vmatprep.subr.bf16.mxu0 0
    %724 = vmatpush1.bf16.msra.mxu0 0
    %725 = vmatprep.subr.bf16.mxu0 0
    %726 = vmatpush1.bf16.msra.mxu0 0
    %727 = vmatprep.subr.bf16.mxu0 0
    %728 = vmatpush1.bf16.msra.mxu0 0
    %729 = vmatprep.subr.bf16.mxu0 0
    %730 = vmatpush1.bf16.msra.mxu0 0
    %731 = vmatprep.mubr.bf16.mxu0 0
    %732 = vmatmul.mubr.bf16.gmra.mrb[0].mxu0 %v690
    %v733 = vpop.f32.mrb[0].mxu0
    %v734 = vadd.f32 0.0, %v733
    %v735 = vpop.f32.mrb[0].mxu0
    %v736 = vpop.f32.mrb[0].mxu0
    %v737 = vadd.f32 0.0, %v736
    %v738 = vpop.f32.mrb[0].mxu0
    %739 = vmatprep.mubr.bf16.mxu0 0
    %740 = vmatmul.mubr.bf16.gmra.mrb[0].mxu0 %v693
    %v741 = vpop.f32.mrb[0].mxu0
    %v742 = vadd.f32 0.0, %v741
    %v743 = vpop.f32.mrb[0].mxu0
    %v744 = vpop.f32.mrb[0].mxu0
    %v745 = vadd.f32 0.0, %v744
    %v746 = vpop.f32.mrb[0].mxu0
    %747 = vdwg.mxu0
    %v749 = vsel %vm201, %v440, 0
    %v752 = vsel %vm201, %v441, 0
    %v755 = vsel %vm695, %v442, 0
    %757 = vmatprep.subr.bf16.mxu0 0
    %758 = vmatpush1.bf16.msra.mxu0 %v755
    %759 = vmatprep.subr.bf16.mxu0 0
    %760 = vmatpush1.bf16.msra.mxu0 0
    %761 = vmatprep.subr.bf16.mxu0 0
    %762 = vmatpush1.bf16.msra.mxu0 0
    %763 = vmatprep.subr.bf16.mxu0 0
    %764 = vmatpush1.bf16.msra.mxu0 0
    %765 = vmatprep.subr.bf16.mxu0 0
    %766 = vmatpush1.bf16.msra.mxu0 0
    %767 = vmatprep.subr.bf16.mxu0 0
    %768 = vmatpush1.bf16.msra.mxu0 0
    %769 = vmatprep.subr.bf16.mxu0 0
    %770 = vmatpush1.bf16.msra.mxu0 0
    %771 = vmatprep.subr.bf16.mxu0 0
    %772 = vmatpush1.bf16.msra.mxu0 0
    %773 = vmatprep.subr.bf16.mxu0 0
    %774 = vmatpush1.bf16.msra.mxu0 0
    %775 = vmatprep.subr.bf16.mxu0 0
    %776 = vmatpush1.bf16.msra.mxu0 0
    %777 = vmatprep.subr.bf16.mxu0 0
    %778 = vmatpush1.bf16.msra.mxu0 0
    %779 = vmatprep.subr.bf16.mxu0 0
    %780 = vmatpush1.bf16.msra.mxu0 0
    %781 = vmatprep.subr.bf16.mxu0 0
    %782 = vmatpush1.bf16.msra.mxu0 0
    %783 = vmatprep.subr.bf16.mxu0 0
    %784 = vmatpush1.bf16.msra.mxu0 0
    %785 = vmatprep.subr.bf16.mxu0 0
    %786 = vmatpush1.bf16.msra.mxu0 0
    %787 = vmatprep.subr.bf16.mxu0 0
    %788 = vmatpush1.bf16.msra.mxu0 0
    %789 = vmatprep.mubr.bf16.mxu0 0
    %790 = vmatmul.mubr.bf16.gmra.mrb[0].mxu0 %v749
    %v791 = vpop.f32.mrb[0].mxu0
    %v792 = vadd.f32 %v734, %v791
    %v793 = vpop.f32.mrb[0].mxu0
    %v794 = vpop.f32.mrb[0].mxu0
    %v795 = vadd.f32 %v737, %v794
    %v796 = vpop.f32.mrb[0].mxu0
    %797 = vmatprep.mubr.bf16.mxu0 0
    %798 = vmatmul.mubr.bf16.gmra.mrb[0].mxu0 %v752
    %v799 = vpop.f32.mrb[0].mxu0
    %v800 = vadd.f32 %v742, %v799
    %v801 = vpop.f32.mrb[0].mxu0
    %v802 = vpop.f32.mrb[0].mxu0
    %v803 = vadd.f32 %v745, %v802
    %v804 = vpop.f32.mrb[0].mxu0
    %805 = vdwg.mxu0
    %806 = vrot.lane.b32.xlu0 %v196, 120
    %v807 = vpop.permute.xlu0 %806
    %808 = vrot.lane.b32.xlu0 %v196, 88
    %v809 = vpop.permute.xlu0 %808
    %v811 = vsel %vm201, %v807, 0
    %v814 = vsel %vm201, %v809, 0
    %816 = vmatprep.subr.bf16.mxu0 0
    %817 = vmatpush1.bf16.xpose.msra.mxu0 %v814
    %818 = vmatprep.subr.bf16.mxu0 0
    %819 = vmatpush1.bf16.xpose.msra.mxu0 0
    %820 = vmatprep.subr.bf16.mxu0 0
    %821 = vmatpush1.bf16.xpose.msra.mxu0 0
    %822 = vmatprep.subr.bf16.mxu0 0
    %823 = vmatpush1.bf16.xpose.msra.mxu0 0
    %824 = vmatprep.subr.bf16.mxu0 0
    %825 = vmatpush1.bf16.xpose.msra.mxu0 0
    %826 = vmatprep.subr.bf16.mxu0 0
    %827 = vmatpush1.bf16.xpose.msra.mxu0 0
    %828 = vmatprep.subr.bf16.mxu0 0
    %829 = vmatpush1.bf16.xpose.msra.mxu0 0
    %830 = vmatprep.subr.bf16.mxu0 0
    %831 = vmatpush1.bf16.xpose.msra.mxu0 0
    %832 = vmatprep.subr.bf16.mxu0 0
    %833 = vmatpush1.bf16.xpose.msra.mxu0 0
    %834 = vmatprep.subr.bf16.mxu0 0
    %835 = vmatpush1.bf16.xpose.msra.mxu0 0
    %836 = vmatprep.subr.bf16.mxu0 0
    %837 = vmatpush1.bf16.xpose.msra.mxu0 0
    %838 = vmatprep.subr.bf16.mxu0 0
    %839 = vmatpush1.bf16.xpose.msra.mxu0 0
    %840 = vmatprep.subr.bf16.mxu0 0
    %841 = vmatpush1.bf16.xpose.msra.mxu0 0
    %842 = vmatprep.subr.bf16.mxu0 0
    %843 = vmatpush1.bf16.xpose.msra.mxu0 0
    %844 = vmatprep.subr.bf16.mxu0 0
    %845 = vmatpush1.bf16.xpose.msra.mxu0 0
    %846 = vmatprep.subr.bf16.mxu0 0
    %847 = vmatpush1.bf16.xpose.msra.mxu0 0
    %848 = vmatprep.mubr.bf16.mxu0 0
    %849 = vmatmul.mubr.bf16.gmra.mrb[0].mxu0 %v811
    %v850 = vpop.f32.mrb[0].mxu0
    %v851 = vadd.f32 0.0, %v850
    %v852 = vpop.f32.mrb[0].mxu0
    %v853 = vpop.f32.mrb[0].mxu0
    %v854 = vadd.f32 0.0, %v853
    %v855 = vpop.f32.mrb[0].mxu0
    %856 = vdwg.mxu0
    %857 = vrot.lane.b32.xlu0 %v197, 120
    %v858 = vpop.permute.xlu0 %857
    %859 = vrot.lane.b32.xlu0 %v197, 88
    %v860 = vpop.permute.xlu0 %859
    %v862 = vsel %vm201, %v858, 0
    %v865 = vsel %vm201, %v860, 0
    %867 = vmatprep.subr.bf16.mxu0 0
    %868 = vmatpush1.bf16.xpose.msra.mxu0 %v865
    %869 = vmatprep.subr.bf16.mxu0 0
    %870 = vmatpush1.bf16.xpose.msra.mxu0 0
    %871 = vmatprep.subr.bf16.mxu0 0
    %872 = vmatpush1.bf16.xpose.msra.mxu0 0
    %873 = vmatprep.subr.bf16.mxu0 0
    %874 = vmatpush1.bf16.xpose.msra.mxu0 0
    %875 = vmatprep.subr.bf16.mxu0 0
    %876 = vmatpush1.bf16.xpose.msra.mxu0 0
    %877 = vmatprep.subr.bf16.mxu0 0
    %878 = vmatpush1.bf16.xpose.msra.mxu0 0
    %879 = vmatprep.subr.bf16.mxu0 0
    %880 = vmatpush1.bf16.xpose.msra.mxu0 0
    %881 = vmatprep.subr.bf16.mxu0 0
    %882 = vmatpush1.bf16.xpose.msra.mxu0 0
    %883 = vmatprep.subr.bf16.mxu0 0
    %884 = vmatpush1.bf16.xpose.msra.mxu0 0
    %885 = vmatprep.subr.bf16.mxu0 0
    %886 = vmatpush1.bf16.xpose.msra.mxu0 0
    %887 = vmatprep.subr.bf16.mxu0 0
    %888 = vmatpush1.bf16.xpose.msra.mxu0 0
    %889 = vmatprep.subr.bf16.mxu0 0
    %890 = vmatpush1.bf16.xpose.msra.mxu0 0
    %891 = vmatprep.subr.bf16.mxu0 0
    %892 = vmatpush1.bf16.xpose.msra.mxu0 0
    %893 = vmatprep.subr.bf16.mxu0 0
    %894 = vmatpush1.bf16.xpose.msra.mxu0 0
    %895 = vmatprep.subr.bf16.mxu0 0
    %896 = vmatpush1.bf16.xpose.msra.mxu0 0
    %897 = vmatprep.subr.bf16.mxu0 0
    %898 = vmatpush1.bf16.xpose.msra.mxu0 0
    %899 = vmatprep.mubr.bf16.mxu0 0
    %900 = vmatmul.mubr.bf16.gmra.mrb[0].mxu0 %v862
    %v901 = vpop.f32.mrb[0].mxu0
    %v902 = vadd.f32 0.0, %v901
    %v903 = vpop.f32.mrb[0].mxu0
    %v904 = vpop.f32.mrb[0].mxu0
    %v905 = vadd.f32 0.0, %v904
    %v906 = vpop.f32.mrb[0].mxu0
    %907 = vdwg.mxu0
    %v908 = vsel %vm299, %v851, -inf
    %909 = vmax.xlane.f32.xlu0 %v908
    %v910 = vpop.xlane.xlu0 %909
    %v911 = vsel %vm299, %v854, -inf
    %912 = vmax.xlane.f32.xlu0 %v911
    %v913 = vpop.xlane.xlu0 %912
    %v914 = vsel %vm299, %v902, -inf
    %915 = vmax.xlane.f32.xlu0 %v914
    %v916 = vpop.xlane.xlu0 %915
    %v917 = vsel %vm299, %v905, -inf
    %918 = vmax.xlane.f32.xlu0 %v917
    %v919 = vpop.xlane.xlu0 %918
    %v920 = vsub.f32 %v851, %v910
    %v921 = vsub.f32 %v854, %v913
    %v922 = vsub.f32 %v902, %v916
    %v923 = vsub.f32 %v905, %v919
    %v924 = vmul.f32 %v920, 1.442695
    %v925 = vpow.pop %v924
    %v926 = vmul.f32 %v921, 1.442695
    %v927 = vpow.pop %v926
    %v928 = vmul.f32 %v922, 1.442695
    %v929 = vpow.pop %v928
    %v930 = vmul.f32 %v923, 1.442695
    %v931 = vpow.pop %v930
    %v932 = vsel %vm299, %v925, 0.0
    %933 = vadd.xlane.f32.xlu0 %v932
    %v934 = vpop.xlane.xlu0 %933
    %v935 = vsel %vm299, %v927, 0.0
    %936 = vadd.xlane.f32.xlu0 %v935
    %v937 = vpop.xlane.xlu0 %936
    %v938 = vsel %vm299, %v929, 0.0
    %939 = vadd.xlane.f32.xlu0 %v938
    %v940 = vpop.xlane.xlu0 %939
    %v941 = vsel %vm299, %v931, 0.0
    %942 = vadd.xlane.f32.xlu0 %v941
    %v943 = vpop.xlane.xlu0 %942
    %v944 = vrcp.pop %v934
    %v945 = vrcp.pop %v937
    %v946 = vrcp.pop %v940
    %v947 = vrcp.pop %v943
    %v948 = vmul.f32 %v925, %v944
    %v949 = vmul.f32 %v927, %v945
    %v950 = vmul.f32 %v929, %v946
    %v951 = vmul.f32 %v931, %v947
    %v952 = vpack.c.bf16 %v949, %v948
    %v953 = vpack.c.bf16 %v951, %v950
    %954 = vrot.lane.b32.xlu0 %v196, 56
    %v955 = vpop.permute.xlu0 %954
    %v958 = vsel %vm299, %v952, 0
    %960 = vmatprep.subr.bf16.mxu0 0
    %961 = vmatpush1.bf16.msra.mxu0 %v955
    %962 = vmatprep.subr.bf16.mxu0 0
    %963 = vmatpush1.bf16.msra.mxu0 0
    %964 = vmatprep.subr.bf16.mxu0 0
    %965 = vmatpush1.bf16.msra.mxu0 0
    %966 = vmatprep.subr.bf16.mxu0 0
    %967 = vmatpush1.bf16.msra.mxu0 0
    %968 = vmatprep.subr.bf16.mxu0 0
    %969 = vmatpush1.bf16.msra.mxu0 0
    %970 = vmatprep.subr.bf16.mxu0 0
    %971 = vmatpush1.bf16.msra.mxu0 0
    %972 = vmatprep.subr.bf16.mxu0 0
    %973 = vmatpush1.bf16.msra.mxu0 0
    %974 = vmatprep.subr.bf16.mxu0 0
    %975 = vmatpush1.bf16.msra.mxu0 0
    %976 = vmatprep.subr.bf16.mxu0 0
    %977 = vmatpush1.bf16.msra.mxu0 0
    %978 = vmatprep.subr.bf16.mxu0 0
    %979 = vmatpush1.bf16.msra.mxu0 0
    %980 = vmatprep.subr.bf16.mxu0 0
    %981 = vmatpush1.bf16.msra.mxu0 0
    %982 = vmatprep.subr.bf16.mxu0 0
    %983 = vmatpush1.bf16.msra.mxu0 0
    %984 = vmatprep.subr.bf16.mxu0 0
    %985 = vmatpush1.bf16.msra.mxu0 0
    %986 = vmatprep.subr.bf16.mxu0 0
    %987 = vmatpush1.bf16.msra.mxu0 0
    %988 = vmatprep.subr.bf16.mxu0 0
    %989 = vmatpush1.bf16.msra.mxu0 0
    %990 = vmatprep.subr.bf16.mxu0 0
    %991 = vmatpush1.bf16.msra.mxu0 0
    %992 = vmatprep.mubr.bf16.mxu0 0
    %993 = vmatmul.mubr.bf16.gmra.mrb[0].mxu0 %v958
    %v994 = vpop.f32.mrb[0].mxu0
    %v995 = vadd.f32 0.0, %v994
    %v996 = vpop.f32.mrb[0].mxu0
    %v997 = vpop.f32.mrb[0].mxu0
    %v998 = vadd.f32 0.0, %v997
    %v999 = vpop.f32.mrb[0].mxu0
    %1000 = vdwg.mxu0
    %1001 = vrot.lane.b32.xlu0 %v197, 56
    %v1002 = vpop.permute.xlu0 %1001
    %v1005 = vsel %vm299, %v953, 0
    %1007 = vmatprep.subr.bf16.mxu0 0
    %1008 = vmatpush1.bf16.msra.mxu0 %v1002
    %1009 = vmatprep.subr.bf16.mxu0 0
    %1010 = vmatpush1.bf16.msra.mxu0 0
    %1011 = vmatprep.subr.bf16.mxu0 0
    %1012 = vmatpush1.bf16.msra.mxu0 0
    %1013 = vmatprep.subr.bf16.mxu0 0
    %1014 = vmatpush1.bf16.msra.mxu0 0
    %1015 = vmatprep.subr.bf16.mxu0 0
    %1016 = vmatpush1.bf16.msra.mxu0 0
    %1017 = vmatprep.subr.bf16.mxu0 0
    %1018 = vmatpush1.bf16.msra.mxu0 0
    %1019 = vmatprep.subr.bf16.mxu0 0
    %1020 = vmatpush1.bf16.msra.mxu0 0
    %1021 = vmatprep.subr.bf16.mxu0 0
    %1022 = vmatpush1.bf16.msra.mxu0 0
    %1023 = vmatprep.subr.bf16.mxu0 0
    %1024 = vmatpush1.bf16.msra.mxu0 0
    %1025 = vmatprep.subr.bf16.mxu0 0
    %1026 = vmatpush1.bf16.msra.mxu0 0
    %1027 = vmatprep.subr.bf16.mxu0 0
    %1028 = vmatpush1.bf16.msra.mxu0 0
    %1029 = vmatprep.subr.bf16.mxu0 0
    %1030 = vmatpush1.bf16.msra.mxu0 0
    %1031 = vmatprep.subr.bf16.mxu0 0
    %1032 = vmatpush1.bf16.msra.mxu0 0
    %1033 = vmatprep.subr.bf16.mxu0 0
    %1034 = vmatpush1.bf16.msra.mxu0 0
    %1035 = vmatprep.subr.bf16.mxu0 0
    %1036 = vmatpush1.bf16.msra.mxu0 0
    %1037 = vmatprep.subr.bf16.mxu0 0
    %1038 = vmatpush1.bf16.msra.mxu0 0
    %1039 = vmatprep.mubr.bf16.mxu0 0
    %1040 = vmatmul.mubr.bf16.gmra.mrb[0].mxu0 %v1005
    %v1041 = vpop.f32.mrb[0].mxu0
    %v1042 = vadd.f32 0.0, %v1041
    %v1043 = vpop.f32.mrb[0].mxu0
    %v1044 = vpop.f32.mrb[0].mxu0
    %v1045 = vadd.f32 0.0, %v1044
    %v1046 = vpop.f32.mrb[0].mxu0
    %1047 = vdwg.mxu0
    %v1048 = vpack.c.bf16 %v998, %v995
    %v1049 = vpack.c.bf16 %v1045, %v1042
    %s1050 = scalar_lea.vmem %s4, 4
    %v1051 = vld [vmem:[%s1050] sm:$0x3]
    %v1053 = vsel %vm201, %v1048, 0
    %v1056 = vsel %vm201, %v1049, 0
    %v1059 = vsel %vm695, %v1051, 0
    %1061 = vmatprep.subr.bf16.mxu0 0
    %1062 = vmatpush1.bf16.msra.mxu0 %v1059
    %1063 = vmatprep.subr.bf16.mxu0 0
    %1064 = vmatpush1.bf16.msra.mxu0 0
    %1065 = vmatprep.subr.bf16.mxu0 0
    %1066 = vmatpush1.bf16.msra.mxu0 0
    %1067 = vmatprep.subr.bf16.mxu0 0
    %1068 = vmatpush1.bf16.msra.mxu0 0
    %1069 = vmatprep.subr.bf16.mxu0 0
    %1070 = vmatpush1.bf16.msra.mxu0 0
    %1071 = vmatprep.subr.bf16.mxu0 0
    %1072 = vmatpush1.bf16.msra.mxu0 0
    %1073 = vmatprep.subr.bf16.mxu0 0
    %1074 = vmatpush1.bf16.msra.mxu0 0
    %1075 = vmatprep.subr.bf16.mxu0 0
    %1076 = vmatpush1.bf16.msra.mxu0 0
    %1077 = vmatprep.subr.bf16.mxu0 0
    %1078 = vmatpush1.bf16.msra.mxu0 0
    %1079 = vmatprep.subr.bf16.mxu0 0
    %1080 = vmatpush1.bf16.msra.mxu0 0
    %1081 = vmatprep.subr.bf16.mxu0 0
    %1082 = vmatpush1.bf16.msra.mxu0 0
    %1083 = vmatprep.subr.bf16.mxu0 0
    %1084 = vmatpush1.bf16.msra.mxu0 0
    %1085 = vmatprep.subr.bf16.mxu0 0
    %1086 = vmatpush1.bf16.msra.mxu0 0
    %1087 = vmatprep.subr.bf16.mxu0 0
    %1088 = vmatpush1.bf16.msra.mxu0 0
    %1089 = vmatprep.subr.bf16.mxu0 0
    %1090 = vmatpush1.bf16.msra.mxu0 0
    %1091 = vmatprep.subr.bf16.mxu0 0
    %1092 = vmatpush1.bf16.msra.mxu0 0
    %1093 = vmatprep.mubr.bf16.mxu0 0
    %1094 = vmatmul.mubr.bf16.gmra.mrb[0].mxu0 %v1053
    %v1095 = vpop.f32.mrb[0].mxu0
    %v1096 = vadd.f32 0.0, %v1095
    %v1097 = vpop.f32.mrb[0].mxu0
    %v1098 = vpop.f32.mrb[0].mxu0
    %v1099 = vadd.f32 0.0, %v1098
    %v1100 = vpop.f32.mrb[0].mxu0
    %1101 = vmatprep.mubr.bf16.mxu0 0
    %1102 = vmatmul.mubr.bf16.gmra.mrb[0].mxu0 %v1056
    %v1103 = vpop.f32.mrb[0].mxu0
    %v1104 = vadd.f32 0.0, %v1103
    %v1105 = vpop.f32.mrb[0].mxu0
    %v1106 = vpop.f32.mrb[0].mxu0
    %v1107 = vadd.f32 0.0, %v1106
    %v1108 = vpop.f32.mrb[0].mxu0
    %1109 = vdwg.mxu0
    %v1110 = vadd.f32 %v792, %v1096
    %v1111 = vadd.f32 %v795, %v1099
    %v1112 = vadd.f32 %v800, %v1104
    %v1113 = vadd.f32 %v803, %v1107
    %1114 = vrot.lane.b32.xlu0 %v196, 116
    %v1115 = vpop.permute.xlu0 %1114
    %1116 = vrot.lane.b32.xlu0 %v196, 84
    %v1117 = vpop.permute.xlu0 %1116
    %v1119 = vsel %vm201, %v1115, 0
    %v1122 = vsel %vm201, %v1117, 0
    %1124 = vmatprep.subr.bf16.mxu0 0
    %1125 = vmatpush1.bf16.xpose.msra.mxu0 %v1122
    %1126 = vmatprep.subr.bf16.mxu0 0
    %1127 = vmatpush1.bf16.xpose.msra.mxu0 0
    %1128 = vmatprep.subr.bf16.mxu0 0
    %1129 = vmatpush1.bf16.xpose.msra.mxu0 0
    %1130 = vmatprep.subr.bf16.mxu0 0
    %1131 = vmatpush1.bf16.xpose.msra.mxu0 0
    %1132 = vmatprep.subr.bf16.mxu0 0
    %1133 = vmatpush1.bf16.xpose.msra.mxu0 0
    %1134 = vmatprep.subr.bf16.mxu0 0
    %1135 = vmatpush1.bf16.xpose.msra.mxu0 0
    %1136 = vmatprep.subr.bf16.mxu0 0
    %1137 = vmatpush1.bf16.xpose.msra.mxu0 0
    %1138 = vmatprep.subr.bf16.mxu0 0
    %1139 = vmatpush1.bf16.xpose.msra.mxu0 0
    %1140 = vmatprep.subr.bf16.mxu0 0
    %1141 = vmatpush1.bf16.xpose.msra.mxu0 0
    %1142 = vmatprep.subr.bf16.mxu0 0
    %1143 = vmatpush1.bf16.xpose.msra.mxu0 0
    %1144 = vmatprep.subr.bf16.mxu0 0
    %1145 = vmatpush1.bf16.xpose.msra.mxu0 0
    %1146 = vmatprep.subr.bf16.mxu0 0
    %1147 = vmatpush1.bf16.xpose.msra.mxu0 0
    %1148 = vmatprep.subr.bf16.mxu0 0
    %1149 = vmatpush1.bf16.xpose.msra.mxu0 0
    %1150 = vmatprep.subr.bf16.mxu0 0
    %1151 = vmatpush1.bf16.xpose.msra.mxu0 0
    %1152 = vmatprep.subr.bf16.mxu0 0
    %1153 = vmatpush1.bf16.xpose.msra.mxu0 0
    %1154 = vmatprep.subr.bf16.mxu0 0
    %1155 = vmatpush1.bf16.xpose.msra.mxu0 0
    %1156 = vmatprep.mubr.bf16.mxu0 0
    %1157 = vmatmul.mubr.bf16.gmra.mrb[0].mxu0 %v1119
    %v1158 = vpop.f32.mrb[0].mxu0
    %v1159 = vadd.f32 0.0, %v1158
    %v1160 = vpop.f32.mrb[0].mxu0
    %v1161 = vpop.f32.mrb[0].mxu0
    %v1162 = vadd.f32 0.0, %v1161
    %v1163 = vpop.f32.mrb[0].mxu0
    %1164 = vdwg.mxu0
    %1165 = vrot.lane.b32.xlu0 %v197, 116
    %v1166 = vpop.permute.xlu0 %1165
    %1167 = vrot.lane.b32.xlu0 %v197, 84
    %v1168 = vpop.permute.xlu0 %1167
    %v1170 = vsel %vm201, %v1166, 0
    %v1173 = vsel %vm201, %v1168, 0
    %1175 = vmatprep.subr.bf16.mxu0 0
    %1176 = vmatpush1.bf16.xpose.msra.mxu0 %v1173
    %1177 = vmatprep.subr.bf16.mxu0 0
    %1178 = vmatpush1.bf16.xpose.msra.mxu0 0
    %1179 = vmatprep.subr.bf16.mxu0 0
    %1180 = vmatpush1.bf16.xpose.msra.mxu0 0
    %1181 = vmatprep.subr.bf16.mxu0 0
    %1182 = vmatpush1.bf16.xpose.msra.mxu0 0
    %1183 = vmatprep.subr.bf16.mxu0 0
    %1184 = vmatpush1.bf16.xpose.msra.mxu0 0
    %1185 = vmatprep.subr.bf16.mxu0 0
    %1186 = vmatpush1.bf16.xpose.msra.mxu0 0
    %1187 = vmatprep.subr.bf16.mxu0 0
    %1188 = vmatpush1.bf16.xpose.msra.mxu0 0
    %1189 = vmatprep.subr.bf16.mxu0 0
    %1190 = vmatpush1.bf16.xpose.msra.mxu0 0
    %1191 = vmatprep.subr.bf16.mxu0 0
    %1192 = vmatpush1.bf16.xpose.msra.mxu0 0
    %1193 = vmatprep.subr.bf16.mxu0 0
    %1194 = vmatpush1.bf16.xpose.msra.mxu0 0
    %1195 = vmatprep.subr.bf16.mxu0 0
    %1196 = vmatpush1.bf16.xpose.msra.mxu0 0
    %1197 = vmatprep.subr.bf16.mxu0 0
    %1198 = vmatpush1.bf16.xpose.msra.mxu0 0
    %1199 = vmatprep.subr.bf16.mxu0 0
    %1200 = vmatpush1.bf16.xpose.msra.mxu0 0
    %1201 = vmatprep.subr.bf16.mxu0 0
    %1202 = vmatpush1.bf16.xpose.msra.mxu0 0
    %1203 = vmatprep.subr.bf16.mxu0 0
    %1204 = vmatpush1.bf16.xpose.msra.mxu0 0
    %1205 = vmatprep.subr.bf16.mxu0 0
    %1206 = vmatpush1.bf16.xpose.msra.mxu0 0
    %1207 = vmatprep.mubr.bf16.mxu0 0
    %1208 = vmatmul.mubr.bf16.gmra.mrb[0].mxu0 %v1170
    %v1209 = vpop.f32.mrb[0].mxu0
    %v1210 = vadd.f32 0.0, %v1209
    %v1211 = vpop.f32.mrb[0].mxu0
    %v1212 = vpop.f32.mrb[0].mxu0
    %v1213 = vadd.f32 0.0, %v1212
    %v1214 = vpop.f32.mrb[0].mxu0
    %1215 = vdwg.mxu0
    %v1216 = vsel %vm299, %v1159, -inf
    %1217 = vmax.xlane.f32.xlu0 %v1216
    %v1218 = vpop.xlane.xlu0 %1217
    %v1219 = vsel %vm299, %v1162, -inf
    %1220 = vmax.xlane.f32.xlu0 %v1219
    %v1221 = vpop.xlane.xlu0 %1220
    %v1222 = vsel %vm299, %v1210, -inf
    %1223 = vmax.xlane.f32.xlu0 %v1222
    %v1224 = vpop.xlane.xlu0 %1223
    %v1225 = vsel %vm299, %v1213, -inf
    %1226 = vmax.xlane.f32.xlu0 %v1225
    %v1227 = vpop.xlane.xlu0 %1226
    %v1228 = vsub.f32 %v1159, %v1218
    %v1229 = vsub.f32 %v1162, %v1221
    %v1230 = vsub.f32 %v1210, %v1224
    %v1231 = vsub.f32 %v1213, %v1227
    %v1232 = vmul.f32 %v1228, 1.442695
    %v1233 = vpow.pop %v1232
    %v1234 = vmul.f32 %v1229, 1.442695
    %v1235 = vpow.pop %v1234
    %v1236 = vmul.f32 %v1230, 1.442695
    %v1237 = vpow.pop %v1236
    %v1238 = vmul.f32 %v1231, 1.442695
    %v1239 = vpow.pop %v1238
    %v1240 = vsel %vm299, %v1233, 0.0
    %1241 = vadd.xlane.f32.xlu0 %v1240
    %v1242 = vpop.xlane.xlu0 %1241
    %v1243 = vsel %vm299, %v1235, 0.0
    %1244 = vadd.xlane.f32.xlu0 %v1243
    %v1245 = vpop.xlane.xlu0 %1244
    %v1246 = vsel %vm299, %v1237, 0.0
    %1247 = vadd.xlane.f32.xlu0 %v1246
    %v1248 = vpop.xlane.xlu0 %1247
    %v1249 = vsel %vm299, %v1239, 0.0
    %1250 = vadd.xlane.f32.xlu0 %v1249
    %v1251 = vpop.xlane.xlu0 %1250
    %v1252 = vrcp.pop %v1242
    %v1253 = vrcp.pop %v1245
    %v1254 = vrcp.pop %v1248
    %v1255 = vrcp.pop %v1251
    %v1256 = vmul.f32 %v1233, %v1252
    %v1257 = vmul.f32 %v1235, %v1253
    %v1258 = vmul.f32 %v1237, %v1254
    %v1259 = vmul.f32 %v1239, %v1255
    %v1260 = vpack.c.bf16 %v1257, %v1256
    %v1261 = vpack.c.bf16 %v1259, %v1258
    %1262 = vrot.lane.b32.xlu0 %v196, 52
    %v1263 = vpop.permute.xlu0 %1262
    %v1266 = vsel %vm299, %v1260, 0
    %1268 = vmatprep.subr.bf16.mxu0 0
    %1269 = vmatpush1.bf16.msra.mxu0 %v1263
    %1270 = vmatprep.subr.bf16.mxu0 0
    %1271 = vmatpush1.bf16.msra.mxu0 0
    %1272 = vmatprep.subr.bf16.mxu0 0
    %1273 = vmatpush1.bf16.msra.mxu0 0
    %1274 = vmatprep.subr.bf16.mxu0 0
    %1275 = vmatpush1.bf16.msra.mxu0 0
    %1276 = vmatprep.subr.bf16.mxu0 0
    %1277 = vmatpush1.bf16.msra.mxu0 0
    %1278 = vmatprep.subr.bf16.mxu0 0
    %1279 = vmatpush1.bf16.msra.mxu0 0
    %1280 = vmatprep.subr.bf16.mxu0 0
    %1281 = vmatpush1.bf16.msra.mxu0 0
    %1282 = vmatprep.subr.bf16.mxu0 0
    %1283 = vmatpush1.bf16.msra.mxu0 0
    %1284 = vmatprep.subr.bf16.mxu0 0
    %1285 = vmatpush1.bf16.msra.mxu0 0
    %1286 = vmatprep.subr.bf16.mxu0 0
    %1287 = vmatpush1.bf16.msra.mxu0 0
    %1288 = vmatprep.subr.bf16.mxu0 0
    %1289 = vmatpush1.bf16.msra.mxu0 0
    %1290 = vmatprep.subr.bf16.mxu0 0
    %1291 = vmatpush1.bf16.msra.mxu0 0
    %1292 = vmatprep.subr.bf16.mxu0 0
    %1293 = vmatpush1.bf16.msra.mxu0 0
    %1294 = vmatprep.subr.bf16.mxu0 0
    %1295 = vmatpush1.bf16.msra.mxu0 0
    %1296 = vmatprep.subr.bf16.mxu0 0
    %1297 = vmatpush1.bf16.msra.mxu0 0
    %1298 = vmatprep.subr.bf16.mxu0 0
    %1299 = vmatpush1.bf16.msra.mxu0 0
    %1300 = vmatprep.mubr.bf16.mxu0 0
    %1301 = vmatmul.mubr.bf16.gmra.mrb[0].mxu0 %v1266
    %v1302 = vpop.f32.mrb[0].mxu0
    %v1303 = vadd.f32 0.0, %v1302
    %v1304 = vpop.f32.mrb[0].mxu0
    %v1305 = vpop.f32.mrb[0].mxu0
    %v1306 = vadd.f32 0.0, %v1305
    %v1307 = vpop.f32.mrb[0].mxu0
    %1308 = vdwg.mxu0
    %1309 = vrot.lane.b32.xlu0 %v197, 52
    %v1310 = vpop.permute.xlu0 %1309
    %v1313 = vsel %vm299, %v1261, 0
    %1315 = vmatprep.subr.bf16.mxu0 0
    %1316 = vmatpush1.bf16.msra.mxu0 %v1310
    %1317 = vmatprep.subr.bf16.mxu0 0
    %1318 = vmatpush1.bf16.msra.mxu0 0
    %1319 = vmatprep.subr.bf16.mxu0 0
    %1320 = vmatpush1.bf16.msra.mxu0 0
    %1321 = vmatprep.subr.bf16.mxu0 0
    %1322 = vmatpush1.bf16.msra.mxu0 0
    %1323 = vmatprep.subr.bf16.mxu0 0
    %1324 = vmatpush1.bf16.msra.mxu0 0
    %1325 = vmatprep.subr.bf16.mxu0 0
    %1326 = vmatpush1.bf16.msra.mxu0 0
    %1327 = vmatprep.subr.bf16.mxu0 0
    %1328 = vmatpush1.bf16.msra.mxu0 0
    %1329 = vmatprep.subr.bf16.mxu0 0
    %1330 = vmatpush1.bf16.msra.mxu0 0
    %1331 = vmatprep.subr.bf16.mxu0 0
    %1332 = vmatpush1.bf16.msra.mxu0 0
    %1333 = vmatprep.subr.bf16.mxu0 0
    %1334 = vmatpush1.bf16.msra.mxu0 0
    %1335 = vmatprep.subr.bf16.mxu0 0
    %1336 = vmatpush1.bf16.msra.mxu0 0
    %1337 = vmatprep.subr.bf16.mxu0 0
    %1338 = vmatpush1.bf16.msra.mxu0 0
    %1339 = vmatprep.subr.bf16.mxu0 0
    %1340 = vmatpush1.bf16.msra.mxu0 0
    %1341 = vmatprep.subr.bf16.mxu0 0
    %1342 = vmatpush1.bf16.msra.mxu0 0
    %1343 = vmatprep.subr.bf16.mxu0 0
    %1344 = vmatpush1.bf16.msra.mxu0 0
    %1345 = vmatprep.subr.bf16.mxu0 0
    %1346 = vmatpush1.bf16.msra.mxu0 0
    %1347 = vmatprep.mubr.bf16.mxu0 0
    %1348 = vmatmul.mubr.bf16.gmra.mrb[0].mxu0 %v1313
    %v1349 = vpop.f32.mrb[0].mxu0
    %v1350 = vadd.f32 0.0, %v1349
    %v1351 = vpop.f32.mrb[0].mxu0
    %v1352 = vpop.f32.mrb[0].mxu0
    %v1353 = vadd.f32 0.0, %v1352
    %v1354 = vpop.f32.mrb[0].mxu0
    %1355 = vdwg.mxu0
    %v1356 = vpack.c.bf16 %v1306, %v1303
    %v1357 = vpack.c.bf16 %v1353, %v1350
    %s1358 = scalar_lea.vmem %s4, 6
    %v1359 = vld [vmem:[%s1358] sm:$0x3]
    %v1361 = vsel %vm201, %v1356, 0
    %v1364 = vsel %vm201, %v1357, 0
    %v1367 = vsel %vm695, %v1359, 0
    %1369 = vmatprep.subr.bf16.mxu0 0
    %1370 = vmatpush1.bf16.msra.mxu0 %v1367
    %1371 = vmatprep.subr.bf16.mxu0 0
    %1372 = vmatpush1.bf16.msra.mxu0 0
    %1373 = vmatprep.subr.bf16.mxu0 0
    %1374 = vmatpush1.bf16.msra.mxu0 0
    %1375 = vmatprep.subr.bf16.mxu0 0
    %1376 = vmatpush1.bf16.msra.mxu0 0
    %1377 = vmatprep.subr.bf16.mxu0 0
    %1378 = vmatpush1.bf16.msra.mxu0 0
    %1379 = vmatprep.subr.bf16.mxu0 0
    %1380 = vmatpush1.bf16.msra.mxu0 0
    %1381 = vmatprep.subr.bf16.mxu0 0
    %1382 = vmatpush1.bf16.msra.mxu0 0
    %1383 = vmatprep.subr.bf16.mxu0 0
    %1384 = vmatpush1.bf16.msra.mxu0 0
    %1385 = vmatprep.subr.bf16.mxu0 0
    %1386 = vmatpush1.bf16.msra.mxu0 0
    %1387 = vmatprep.subr.bf16.mxu0 0
    %1388 = vmatpush1.bf16.msra.mxu0 0
    %1389 = vmatprep.subr.bf16.mxu0 0
    %1390 = vmatpush1.bf16.msra.mxu0 0
    %1391 = vmatprep.subr.bf16.mxu0 0
    %1392 = vmatpush1.bf16.msra.mxu0 0
    %1393 = vmatprep.subr.bf16.mxu0 0
    %1394 = vmatpush1.bf16.msra.mxu0 0
    %1395 = vmatprep.subr.bf16.mxu0 0
    %1396 = vmatpush1.bf16.msra.mxu0 0
    %1397 = vmatprep.subr.bf16.mxu0 0
    %1398 = vmatpush1.bf16.msra.mxu0 0
    %1399 = vmatprep.subr.bf16.mxu0 0
    %1400 = vmatpush1.bf16.msra.mxu0 0
    %1401 = vmatprep.mubr.bf16.mxu0 0
    %1402 = vmatmul.mubr.bf16.gmra.mrb[0].mxu0 %v1361
    %v1403 = vpop.f32.mrb[0].mxu0
    %v1404 = vadd.f32 0.0, %v1403
    %v1405 = vpop.f32.mrb[0].mxu0
    %v1406 = vpop.f32.mrb[0].mxu0
    %v1407 = vadd.f32 0.0, %v1406
    %v1408 = vpop.f32.mrb[0].mxu0
    %1409 = vmatprep.mubr.bf16.mxu0 0
    %1410 = vmatmul.mubr.bf16.gmra.mrb[0].mxu0 %v1364
    %v1411 = vpop.f32.mrb[0].mxu0
    %v1412 = vadd.f32 0.0, %v1411
    %v1413 = vpop.f32.mrb[0].mxu0
    %v1414 = vpop.f32.mrb[0].mxu0
    %v1415 = vadd.f32 0.0, %v1414
    %v1416 = vpop.f32.mrb[0].mxu0
    %1417 = vdwg.mxu0
    %v1418 = vadd.f32 %v1110, %v1404
    %v1419 = vadd.f32 %v1111, %v1407
    %v1420 = vadd.f32 %v1112, %v1412
    %v1421 = vadd.f32 %v1113, %v1415
    %1422 = vrot.lane.b32.xlu0 %v196, 112
    %v1423 = vpop.permute.xlu0 %1422
    %1424 = vrot.lane.b32.xlu0 %v196, 80
    %v1425 = vpop.permute.xlu0 %1424
    %v1427 = vsel %vm201, %v1423, 0
    %v1430 = vsel %vm201, %v1425, 0
    %1432 = vmatprep.subr.bf16.mxu0 0
    %1433 = vmatpush1.bf16.xpose.msra.mxu0 %v1430
    %1434 = vmatprep.subr.bf16.mxu0 0
    %1435 = vmatpush1.bf16.xpose.msra.mxu0 0
    %1436 = vmatprep.subr.bf16.mxu0 0
    %1437 = vmatpush1.bf16.xpose.msra.mxu0 0
    %1438 = vmatprep.subr.bf16.mxu0 0
    %1439 = vmatpush1.bf16.xpose.msra.mxu0 0
    %1440 = vmatprep.subr.bf16.mxu0 0
    %1441 = vmatpush1.bf16.xpose.msra.mxu0 0
    %1442 = vmatprep.subr.bf16.mxu0 0
    %1443 = vmatpush1.bf16.xpose.msra.mxu0 0
    %1444 = vmatprep.subr.bf16.mxu0 0
    %1445 = vmatpush1.bf16.xpose.msra.mxu0 0
    %1446 = vmatprep.subr.bf16.mxu0 0
    %1447 = vmatpush1.bf16.xpose.msra.mxu0 0
    %1448 = vmatprep.subr.bf16.mxu0 0
    %1449 = vmatpush1.bf16.xpose.msra.mxu0 0
    %1450 = vmatprep.subr.bf16.mxu0 0
    %1451 = vmatpush1.bf16.xpose.msra.mxu0 0
    %1452 = vmatprep.subr.bf16.mxu0 0
    %1453 = vmatpush1.bf16.xpose.msra.mxu0 0
    %1454 = vmatprep.subr.bf16.mxu0 0
    %1455 = vmatpush1.bf16.xpose.msra.mxu0 0
    %1456 = vmatprep.subr.bf16.mxu0 0
    %1457 = vmatpush1.bf16.xpose.msra.mxu0 0
    %1458 = vmatprep.subr.bf16.mxu0 0
    %1459 = vmatpush1.bf16.xpose.msra.mxu0 0
    %1460 = vmatprep.subr.bf16.mxu0 0
    %1461 = vmatpush1.bf16.xpose.msra.mxu0 0
    %1462 = vmatprep.subr.bf16.mxu0 0
    %1463 = vmatpush1.bf16.xpose.msra.mxu0 0
    %1464 = vmatprep.mubr.bf16.mxu0 0
    %1465 = vmatmul.mubr.bf16.gmra.mrb[0].mxu0 %v1427
    %v1466 = vpop.f32.mrb[0].mxu0
    %v1467 = vadd.f32 0.0, %v1466
    %v1468 = vpop.f32.mrb[0].mxu0
    %v1469 = vpop.f32.mrb[0].mxu0
    %v1470 = vadd.f32 0.0, %v1469
    %v1471 = vpop.f32.mrb[0].mxu0
    %1472 = vdwg.mxu0
    %1473 = vrot.lane.b32.xlu0 %v197, 112
    %v1474 = vpop.permute.xlu0 %1473
    %1475 = vrot.lane.b32.xlu0 %v197, 80
    %v1476 = vpop.permute.xlu0 %1475
    %v1478 = vsel %vm201, %v1474, 0
    %v1481 = vsel %vm201, %v1476, 0
    %1483 = vmatprep.subr.bf16.mxu0 0
    %1484 = vmatpush1.bf16.xpose.msra.mxu0 %v1481
    %1485 = vmatprep.subr.bf16.mxu0 0
    %1486 = vmatpush1.bf16.xpose.msra.mxu0 0
    %1487 = vmatprep.subr.bf16.mxu0 0
    %1488 = vmatpush1.bf16.xpose.msra.mxu0 0
    %1489 = vmatprep.subr.bf16.mxu0 0
    %1490 = vmatpush1.bf16.xpose.msra.mxu0 0
    %1491 = vmatprep.subr.bf16.mxu0 0
    %1492 = vmatpush1.bf16.xpose.msra.mxu0 0
    %1493 = vmatprep.subr.bf16.mxu0 0
    %1494 = vmatpush1.bf16.xpose.msra.mxu0 0
    %1495 = vmatprep.subr.bf16.mxu0 0
    %1496 = vmatpush1.bf16.xpose.msra.mxu0 0
    %1497 = vmatprep.subr.bf16.mxu0 0
    %1498 = vmatpush1.bf16.xpose.msra.mxu0 0
    %1499 = vmatprep.subr.bf16.mxu0 0
    %1500 = vmatpush1.bf16.xpose.msra.mxu0 0
    %1501 = vmatprep.subr.bf16.mxu0 0
    %1502 = vmatpush1.bf16.xpose.msra.mxu0 0
    %1503 = vmatprep.subr.bf16.mxu0 0
    %1504 = vmatpush1.bf16.xpose.msra.mxu0 0
    %1505 = vmatprep.subr.bf16.mxu0 0
    %1506 = vmatpush1.bf16.xpose.msra.mxu0 0
    %1507 = vmatprep.subr.bf16.mxu0 0
    %1508 = vmatpush1.bf16.xpose.msra.mxu0 0
    %1509 = vmatprep.subr.bf16.mxu0 0
    %1510 = vmatpush1.bf16.xpose.msra.mxu0 0
    %1511 = vmatprep.subr.bf16.mxu0 0
    %1512 = vmatpush1.bf16.xpose.msra.mxu0 0
    %1513 = vmatprep.subr.bf16.mxu0 0
    %1514 = vmatpush1.bf16.xpose.msra.mxu0 0
    %1515 = vmatprep.mubr.bf16.mxu0 0
    %1516 = vmatmul.mubr.bf16.gmra.mrb[0].mxu0 %v1478
    %v1517 = vpop.f32.mrb[0].mxu0
    %v1518 = vadd.f32 0.0, %v1517
    %v1519 = vpop.f32.mrb[0].mxu0
    %v1520 = vpop.f32.mrb[0].mxu0
    %v1521 = vadd.f32 0.0, %v1520
    %v1522 = vpop.f32.mrb[0].mxu0
    %1523 = vdwg.mxu0
    %v1524 = vsel %vm299, %v1467, -inf
    %1525 = vmax.xlane.f32.xlu0 %v1524
    %v1526 = vpop.xlane.xlu0 %1525
    %v1527 = vsel %vm299, %v1470, -inf
    %1528 = vmax.xlane.f32.xlu0 %v1527
    %v1529 = vpop.xlane.xlu0 %1528
    %v1530 = vsel %vm299, %v1518, -inf
    %1531 = vmax.xlane.f32.xlu0 %v1530
    %v1532 = vpop.xlane.xlu0 %1531
    %v1533 = vsel %vm299, %v1521, -inf
    %1534 = vmax.xlane.f32.xlu0 %v1533
    %v1535 = vpop.xlane.xlu0 %1534
    %v1536 = vsub.f32 %v1467, %v1526
    %v1537 = vsub.f32 %v1470, %v1529
    %v1538 = vsub.f32 %v1518, %v1532
    %v1539 = vsub.f32 %v1521, %v1535
    %v1540 = vmul.f32 %v1536, 1.442695
    %v1541 = vpow.pop %v1540
    %v1542 = vmul.f32 %v1537, 1.442695
    %v1543 = vpow.pop %v1542
    %v1544 = vmul.f32 %v1538, 1.442695
    %v1545 = vpow.pop %v1544
    %v1546 = vmul.f32 %v1539, 1.442695
    %v1547 = vpow.pop %v1546
    %v1548 = vsel %vm299, %v1541, 0.0
    %1549 = vadd.xlane.f32.xlu0 %v1548
    %v1550 = vpop.xlane.xlu0 %1549
    %v1551 = vsel %vm299, %v1543, 0.0
    %1552 = vadd.xlane.f32.xlu0 %v1551
    %v1553 = vpop.xlane.xlu0 %1552
    %v1554 = vsel %vm299, %v1545, 0.0
    %1555 = vadd.xlane.f32.xlu0 %v1554
    %v1556 = vpop.xlane.xlu0 %1555
    %v1557 = vsel %vm299, %v1547, 0.0
    %1558 = vadd.xlane.f32.xlu0 %v1557
    %v1559 = vpop.xlane.xlu0 %1558
    %v1560 = vrcp.pop %v1550
    %v1561 = vrcp.pop %v1553
    %v1562 = vrcp.pop %v1556
    %v1563 = vrcp.pop %v1559
    %v1564 = vmul.f32 %v1541, %v1560
    %v1565 = vmul.f32 %v1543, %v1561
    %v1566 = vmul.f32 %v1545, %v1562
    %v1567 = vmul.f32 %v1547, %v1563
    %v1568 = vpack.c.bf16 %v1565, %v1564
    %v1569 = vpack.c.bf16 %v1567, %v1566
    %1570 = vrot.lane.b32.xlu0 %v196, 48
    %v1571 = vpop.permute.xlu0 %1570
    %v1574 = vsel %vm299, %v1568, 0
    %1576 = vmatprep.subr.bf16.mxu0 0
    %1577 = vmatpush1.bf16.msra.mxu0 %v1571
    %1578 = vmatprep.subr.bf16.mxu0 0
    %1579 = vmatpush1.bf16.msra.mxu0 0
    %1580 = vmatprep.subr.bf16.mxu0 0
    %1581 = vmatpush1.bf16.msra.mxu0 0
    %1582 = vmatprep.subr.bf16.mxu0 0
    %1583 = vmatpush1.bf16.msra.mxu0 0
    %1584 = vmatprep.subr.bf16.mxu0 0
    %1585 = vmatpush1.bf16.msra.mxu0 0
    %1586 = vmatprep.subr.bf16.mxu0 0
    %1587 = vmatpush1.bf16.msra.mxu0 0
    %1588 = vmatprep.subr.bf16.mxu0 0
    %1589 = vmatpush1.bf16.msra.mxu0 0
    %1590 = vmatprep.subr.bf16.mxu0 0
    %1591 = vmatpush1.bf16.msra.mxu0 0
    %1592 = vmatprep.subr.bf16.mxu0 0
    %1593 = vmatpush1.bf16.msra.mxu0 0
    %1594 = vmatprep.subr.bf16.mxu0 0
    %1595 = vmatpush1.bf16.msra.mxu0 0
    %1596 = vmatprep.subr.bf16.mxu0 0
    %1597 = vmatpush1.bf16.msra.mxu0 0
    %1598 = vmatprep.subr.bf16.mxu0 0
    %1599 = vmatpush1.bf16.msra.mxu0 0
    %1600 = vmatprep.subr.bf16.mxu0 0
    %1601 = vmatpush1.bf16.msra.mxu0 0
    %1602 = vmatprep.subr.bf16.mxu0 0
    %1603 = vmatpush1.bf16.msra.mxu0 0
    %1604 = vmatprep.subr.bf16.mxu0 0
    %1605 = vmatpush1.bf16.msra.mxu0 0
    %1606 = vmatprep.subr.bf16.mxu0 0
    %1607 = vmatpush1.bf16.msra.mxu0 0
    %1608 = vmatprep.mubr.bf16.mxu0 0
    %1609 = vmatmul.mubr.bf16.gmra.mrb[0].mxu0 %v1574
    %v1610 = vpop.f32.mrb[0].mxu0
    %v1611 = vadd.f32 0.0, %v1610
    %v1612 = vpop.f32.mrb[0].mxu0
    %v1613 = vpop.f32.mrb[0].mxu0
    %v1614 = vadd.f32 0.0, %v1613
    %v1615 = vpop.f32.mrb[0].mxu0
    %1616 = vdwg.mxu0
    %1617 = vrot.lane.b32.xlu0 %v197, 48
    %v1618 = vpop.permute.xlu0 %1617
    %v1621 = vsel %vm299, %v1569, 0
    %1623 = vmatprep.subr.bf16.mxu0 0
    %1624 = vmatpush1.bf16.msra.mxu0 %v1618
    %1625 = vmatprep.subr.bf16.mxu0 0
    %1626 = vmatpush1.bf16.msra.mxu0 0
    %1627 = vmatprep.subr.bf16.mxu0 0
    %1628 = vmatpush1.bf16.msra.mxu0 0
    %1629 = vmatprep.subr.bf16.mxu0 0
    %1630 = vmatpush1.bf16.msra.mxu0 0
    %1631 = vmatprep.subr.bf16.mxu0 0
    %1632 = vmatpush1.bf16.msra.mxu0 0
    %1633 = vmatprep.subr.bf16.mxu0 0
    %1634 = vmatpush1.bf16.msra.mxu0 0
    %1635 = vmatprep.subr.bf16.mxu0 0
    %1636 = vmatpush1.bf16.msra.mxu0 0
    %1637 = vmatprep.subr.bf16.mxu0 0
    %1638 = vmatpush1.bf16.msra.mxu0 0
    %1639 = vmatprep.subr.bf16.mxu0 0
    %1640 = vmatpush1.bf16.msra.mxu0 0
    %1641 = vmatprep.subr.bf16.mxu0 0
    %1642 = vmatpush1.bf16.msra.mxu0 0
    %1643 = vmatprep.subr.bf16.mxu0 0
    %1644 = vmatpush1.bf16.msra.mxu0 0
    %1645 = vmatprep.subr.bf16.mxu0 0
    %1646 = vmatpush1.bf16.msra.mxu0 0
    %1647 = vmatprep.subr.bf16.mxu0 0
    %1648 = vmatpush1.bf16.msra.mxu0 0
    %1649 = vmatprep.subr.bf16.mxu0 0
    %1650 = vmatpush1.bf16.msra.mxu0 0
    %1651 = vmatprep.subr.bf16.mxu0 0
    %1652 = vmatpush1.bf16.msra.mxu0 0
    %1653 = vmatprep.subr.bf16.mxu0 0
    %1654 = vmatpush1.bf16.msra.mxu0 0
    %1655 = vmatprep.mubr.bf16.mxu0 0
    %1656 = vmatmul.mubr.bf16.gmra.mrb[0].mxu0 %v1621
    %v1657 = vpop.f32.mrb[0].mxu0
    %v1658 = vadd.f32 0.0, %v1657
    %v1659 = vpop.f32.mrb[0].mxu0
    %v1660 = vpop.f32.mrb[0].mxu0
    %v1661 = vadd.f32 0.0, %v1660
    %v1662 = vpop.f32.mrb[0].mxu0
    %1663 = vdwg.mxu0
    %v1664 = vpack.c.bf16 %v1614, %v1611
    %v1665 = vpack.c.bf16 %v1661, %v1658
    %s1666 = scalar_lea.vmem %s4, 8
    %v1667 = vld [vmem:[%s1666] sm:$0x3]
    %v1669 = vsel %vm201, %v1664, 0
    %v1672 = vsel %vm201, %v1665, 0
    %v1675 = vsel %vm695, %v1667, 0
    %1677 = vmatprep.subr.bf16.mxu0 0
    %1678 = vmatpush1.bf16.msra.mxu0 %v1675
    %1679 = vmatprep.subr.bf16.mxu0 0
    %1680 = vmatpush1.bf16.msra.mxu0 0
    %1681 = vmatprep.subr.bf16.mxu0 0
    %1682 = vmatpush1.bf16.msra.mxu0 0
    %1683 = vmatprep.subr.bf16.mxu0 0
    %1684 = vmatpush1.bf16.msra.mxu0 0
    %1685 = vmatprep.subr.bf16.mxu0 0
    %1686 = vmatpush1.bf16.msra.mxu0 0
    %1687 = vmatprep.subr.bf16.mxu0 0
    %1688 = vmatpush1.bf16.msra.mxu0 0
    %1689 = vmatprep.subr.bf16.mxu0 0
    %1690 = vmatpush1.bf16.msra.mxu0 0
    %1691 = vmatprep.subr.bf16.mxu0 0
    %1692 = vmatpush1.bf16.msra.mxu0 0
    %1693 = vmatprep.subr.bf16.mxu0 0
    %1694 = vmatpush1.bf16.msra.mxu0 0
    %1695 = vmatprep.subr.bf16.mxu0 0
    %1696 = vmatpush1.bf16.msra.mxu0 0
    %1697 = vmatprep.subr.bf16.mxu0 0
    %1698 = vmatpush1.bf16.msra.mxu0 0
    %1699 = vmatprep.subr.bf16.mxu0 0
    %1700 = vmatpush1.bf16.msra.mxu0 0
    %1701 = vmatprep.subr.bf16.mxu0 0
    %1702 = vmatpush1.bf16.msra.mxu0 0
    %1703 = vmatprep.subr.bf16.mxu0 0
    %1704 = vmatpush1.bf16.msra.mxu0 0
    %1705 = vmatprep.subr.bf16.mxu0 0
    %1706 = vmatpush1.bf16.msra.mxu0 0
    %1707 = vmatprep.subr.bf16.mxu0 0
    %1708 = vmatpush1.bf16.msra.mxu0 0
    %1709 = vmatprep.mubr.bf16.mxu0 0
    %1710 = vmatmul.mubr.bf16.gmra.mrb[0].mxu0 %v1669
    %v1711 = vpop.f32.mrb[0].mxu0
    %v1712 = vadd.f32 0.0, %v1711
    %v1713 = vpop.f32.mrb[0].mxu0
    %v1714 = vpop.f32.mrb[0].mxu0
    %v1715 = vadd.f32 0.0, %v1714
    %v1716 = vpop.f32.mrb[0].mxu0
    %1717 = vmatprep.mubr.bf16.mxu0 0
    %1718 = vmatmul.mubr.bf16.gmra.mrb[0].mxu0 %v1672
    %v1719 = vpop.f32.mrb[0].mxu0
    %v1720 = vadd.f32 0.0, %v1719
    %v1721 = vpop.f32.mrb[0].mxu0
    %v1722 = vpop.f32.mrb[0].mxu0
    %v1723 = vadd.f32 0.0, %v1722
    %v1724 = vpop.f32.mrb[0].mxu0
    %1725 = vdwg.mxu0
    %v1726 = vadd.f32 %v1418, %v1712
    %v1727 = vadd.f32 %v1419, %v1715
    %v1728 = vadd.f32 %v1420, %v1720
    %v1729 = vadd.f32 %v1421, %v1723
    %1730 = vrot.lane.b32.xlu0 %v196, 108
    %v1731 = vpop.permute.xlu0 %1730
    %1732 = vrot.lane.b32.xlu0 %v196, 76
    %v1733 = vpop.permute.xlu0 %1732
    %v1735 = vsel %vm201, %v1731, 0
    %v1738 = vsel %vm201, %v1733, 0
    %1740 = vmatprep.subr.bf16.mxu0 0
    %1741 = vmatpush1.bf16.xpose.msra.mxu0 %v1738
    %1742 = vmatprep.subr.bf16.mxu0 0
    %1743 = vmatpush1.bf16.xpose.msra.mxu0 0
    %1744 = vmatprep.subr.bf16.mxu0 0
    %1745 = vmatpush1.bf16.xpose.msra.mxu0 0
    %1746 = vmatprep.subr.bf16.mxu0 0
    %1747 = vmatpush1.bf16.xpose.msra.mxu0 0
    %1748 = vmatprep.subr.bf16.mxu0 0
    %1749 = vmatpush1.bf16.xpose.msra.mxu0 0
    %1750 = vmatprep.subr.bf16.mxu0 0
    %1751 = vmatpush1.bf16.xpose.msra.mxu0 0
    %1752 = vmatprep.subr.bf16.mxu0 0
    %1753 = vmatpush1.bf16.xpose.msra.mxu0 0
    %1754 = vmatprep.subr.bf16.mxu0 0
    %1755 = vmatpush1.bf16.xpose.msra.mxu0 0
    %1756 = vmatprep.subr.bf16.mxu0 0
    %1757 = vmatpush1.bf16.xpose.msra.mxu0 0
    %1758 = vmatprep.subr.bf16.mxu0 0
    %1759 = vmatpush1.bf16.xpose.msra.mxu0 0
    %1760 = vmatprep.subr.bf16.mxu0 0
    %1761 = vmatpush1.bf16.xpose.msra.mxu0 0
    %1762 = vmatprep.subr.bf16.mxu0 0
    %1763 = vmatpush1.bf16.xpose.msra.mxu0 0
    %1764 = vmatprep.subr.bf16.mxu0 0
    %1765 = vmatpush1.bf16.xpose.msra.mxu0 0
    %1766 = vmatprep.subr.bf16.mxu0 0
    %1767 = vmatpush1.bf16.xpose.msra.mxu0 0
    %1768 = vmatprep.subr.bf16.mxu0 0
    %1769 = vmatpush1.bf16.xpose.msra.mxu0 0
    %1770 = vmatprep.subr.bf16.mxu0 0
    %1771 = vmatpush1.bf16.xpose.msra.mxu0 0
    %1772 = vmatprep.mubr.bf16.mxu0 0
    %1773 = vmatmul.mubr.bf16.gmra.mrb[0].mxu0 %v1735
    %v1774 = vpop.f32.mrb[0].mxu0
    %v1775 = vadd.f32 0.0, %v1774
    %v1776 = vpop.f32.mrb[0].mxu0
    %v1777 = vpop.f32.mrb[0].mxu0
    %v1778 = vadd.f32 0.0, %v1777
    %v1779 = vpop.f32.mrb[0].mxu0
    %1780 = vdwg.mxu0
    %1781 = vrot.lane.b32.xlu0 %v197, 108
    %v1782 = vpop.permute.xlu0 %1781
    %1783 = vrot.lane.b32.xlu0 %v197, 76
    %v1784 = vpop.permute.xlu0 %1783
    %v1786 = vsel %vm201, %v1782, 0
    %v1789 = vsel %vm201, %v1784, 0
    %1791 = vmatprep.subr.bf16.mxu0 0
    %1792 = vmatpush1.bf16.xpose.msra.mxu0 %v1789
    %1793 = vmatprep.subr.bf16.mxu0 0
    %1794 = vmatpush1.bf16.xpose.msra.mxu0 0
    %1795 = vmatprep.subr.bf16.mxu0 0
    %1796 = vmatpush1.bf16.xpose.msra.mxu0 0
    %1797 = vmatprep.subr.bf16.mxu0 0
    %1798 = vmatpush1.bf16.xpose.msra.mxu0 0
    %1799 = vmatprep.subr.bf16.mxu0 0
    %1800 = vmatpush1.bf16.xpose.msra.mxu0 0
    %1801 = vmatprep.subr.bf16.mxu0 0
    %1802 = vmatpush1.bf16.xpose.msra.mxu0 0
    %1803 = vmatprep.subr.bf16.mxu0 0
    %1804 = vmatpush1.bf16.xpose.msra.mxu0 0
    %1805 = vmatprep.subr.bf16.mxu0 0
    %1806 = vmatpush1.bf16.xpose.msra.mxu0 0
    %1807 = vmatprep.subr.bf16.mxu0 0
    %1808 = vmatpush1.bf16.xpose.msra.mxu0 0
    %1809 = vmatprep.subr.bf16.mxu0 0
    %1810 = vmatpush1.bf16.xpose.msra.mxu0 0
    %1811 = vmatprep.subr.bf16.mxu0 0
    %1812 = vmatpush1.bf16.xpose.msra.mxu0 0
    %1813 = vmatprep.subr.bf16.mxu0 0
    %1814 = vmatpush1.bf16.xpose.msra.mxu0 0
    %1815 = vmatprep.subr.bf16.mxu0 0
    %1816 = vmatpush1.bf16.xpose.msra.mxu0 0
    %1817 = vmatprep.subr.bf16.mxu0 0
    %1818 = vmatpush1.bf16.xpose.msra.mxu0 0
    %1819 = vmatprep.subr.bf16.mxu0 0
    %1820 = vmatpush1.bf16.xpose.msra.mxu0 0
    %1821 = vmatprep.subr.bf16.mxu0 0
    %1822 = vmatpush1.bf16.xpose.msra.mxu0 0
    %1823 = vmatprep.mubr.bf16.mxu0 0
    %1824 = vmatmul.mubr.bf16.gmra.mrb[0].mxu0 %v1786
    %v1825 = vpop.f32.mrb[0].mxu0
    %v1826 = vadd.f32 0.0, %v1825
    %v1827 = vpop.f32.mrb[0].mxu0
    %v1828 = vpop.f32.mrb[0].mxu0
    %v1829 = vadd.f32 0.0, %v1828
    %v1830 = vpop.f32.mrb[0].mxu0
    %1831 = vdwg.mxu0
    %v1832 = vsel %vm299, %v1775, -inf
    %1833 = vmax.xlane.f32.xlu0 %v1832
    %v1834 = vpop.xlane.xlu0 %1833
    %v1835 = vsel %vm299, %v1778, -inf
    %1836 = vmax.xlane.f32.xlu0 %v1835
    %v1837 = vpop.xlane.xlu0 %1836
    %v1838 = vsel %vm299, %v1826, -inf
    %1839 = vmax.xlane.f32.xlu0 %v1838
    %v1840 = vpop.xlane.xlu0 %1839
    %v1841 = vsel %vm299, %v1829, -inf
    %1842 = vmax.xlane.f32.xlu0 %v1841
    %v1843 = vpop.xlane.xlu0 %1842
    %v1844 = vsub.f32 %v1775, %v1834
    %v1845 = vsub.f32 %v1778, %v1837
    %v1846 = vsub.f32 %v1826, %v1840
    %v1847 = vsub.f32 %v1829, %v1843
    %v1848 = vmul.f32 %v1844, 1.442695
    %v1849 = vpow.pop %v1848
    %v1850 = vmul.f32 %v1845, 1.442695
    %v1851 = vpow.pop %v1850
    %v1852 = vmul.f32 %v1846, 1.442695
    %v1853 = vpow.pop %v1852
    %v1854 = vmul.f32 %v1847, 1.442695
    %v1855 = vpow.pop %v1854
    %v1856 = vsel %vm299, %v1849, 0.0
    %1857 = vadd.xlane.f32.xlu0 %v1856
    %v1858 = vpop.xlane.xlu0 %1857
    %v1859 = vsel %vm299, %v1851, 0.0
    %1860 = vadd.xlane.f32.xlu0 %v1859
    %v1861 = vpop.xlane.xlu0 %1860
    %v1862 = vsel %vm299, %v1853, 0.0
    %1863 = vadd.xlane.f32.xlu0 %v1862
    %v1864 = vpop.xlane.xlu0 %1863
    %v1865 = vsel %vm299, %v1855, 0.0
    %1866 = vadd.xlane.f32.xlu0 %v1865
    %v1867 = vpop.xlane.xlu0 %1866
    %v1868 = vrcp.pop %v1858
    %v1869 = vrcp.pop %v1861
    %v1870 = vrcp.pop %v1864
    %v1871 = vrcp.pop %v1867
    %v1872 = vmul.f32 %v1849, %v1868
    %v1873 = vmul.f32 %v1851, %v1869
    %v1874 = vmul.f32 %v1853, %v1870
    %v1875 = vmul.f32 %v1855, %v1871
    %v1876 = vpack.c.bf16 %v1873, %v1872
    %v1877 = vpack.c.bf16 %v1875, %v1874
    %1878 = vrot.lane.b32.xlu0 %v196, 44
    %v1879 = vpop.permute.xlu0 %1878
    %v1882 = vsel %vm299, %v1876, 0
    %1884 = vmatprep.subr.bf16.mxu0 0
    %1885 = vmatpush1.bf16.msra.mxu0 %v1879
    %1886 = vmatprep.subr.bf16.mxu0 0
    %1887 = vmatpush1.bf16.msra.mxu0 0
    %1888 = vmatprep.subr.bf16.mxu0 0
    %1889 = vmatpush1.bf16.msra.mxu0 0
    %1890 = vmatprep.subr.bf16.mxu0 0
    %1891 = vmatpush1.bf16.msra.mxu0 0
    %1892 = vmatprep.subr.bf16.mxu0 0
    %1893 = vmatpush1.bf16.msra.mxu0 0
    %1894 = vmatprep.subr.bf16.mxu0 0
    %1895 = vmatpush1.bf16.msra.mxu0 0
    %1896 = vmatprep.subr.bf16.mxu0 0
    %1897 = vmatpush1.bf16.msra.mxu0 0
    %1898 = vmatprep.subr.bf16.mxu0 0
    %1899 = vmatpush1.bf16.msra.mxu0 0
    %1900 = vmatprep.subr.bf16.mxu0 0
    %1901 = vmatpush1.bf16.msra.mxu0 0
    %1902 = vmatprep.subr.bf16.mxu0 0
    %1903 = vmatpush1.bf16.msra.mxu0 0
    %1904 = vmatprep.subr.bf16.mxu0 0
    %1905 = vmatpush1.bf16.msra.mxu0 0
    %1906 = vmatprep.subr.bf16.mxu0 0
    %1907 = vmatpush1.bf16.msra.mxu0 0
    %1908 = vmatprep.subr.bf16.mxu0 0
    %1909 = vmatpush1.bf16.msra.mxu0 0
    %1910 = vmatprep.subr.bf16.mxu0 0
    %1911 = vmatpush1.bf16.msra.mxu0 0
    %1912 = vmatprep.subr.bf16.mxu0 0
    %1913 = vmatpush1.bf16.msra.mxu0 0
    %1914 = vmatprep.subr.bf16.mxu0 0
    %1915 = vmatpush1.bf16.msra.mxu0 0
    %1916 = vmatprep.mubr.bf16.mxu0 0
    %1917 = vmatmul.mubr.bf16.gmra.mrb[0].mxu0 %v1882
    %v1918 = vpop.f32.mrb[0].mxu0
    %v1919 = vadd.f32 0.0, %v1918
    %v1920 = vpop.f32.mrb[0].mxu0
    %v1921 = vpop.f32.mrb[0].mxu0
    %v1922 = vadd.f32 0.0, %v1921
    %v1923 = vpop.f32.mrb[0].mxu0
    %1924 = vdwg.mxu0
    %1925 = vrot.lane.b32.xlu0 %v197, 44
    %v1926 = vpop.permute.xlu0 %1925
    %v1929 = vsel %vm299, %v1877, 0
    %1931 = vmatprep.subr.bf16.mxu0 0
    %1932 = vmatpush1.bf16.msra.mxu0 %v1926
    %1933 = vmatprep.subr.bf16.mxu0 0
    %1934 = vmatpush1.bf16.msra.mxu0 0
    %1935 = vmatprep.subr.bf16.mxu0 0
    %1936 = vmatpush1.bf16.msra.mxu0 0
    %1937 = vmatprep.subr.bf16.mxu0 0
    %1938 = vmatpush1.bf16.msra.mxu0 0
    %1939 = vmatprep.subr.bf16.mxu0 0
    %1940 = vmatpush1.bf16.msra.mxu0 0
    %1941 = vmatprep.subr.bf16.mxu0 0
    %1942 = vmatpush1.bf16.msra.mxu0 0
    %1943 = vmatprep.subr.bf16.mxu0 0
    %1944 = vmatpush1.bf16.msra.mxu0 0
    %1945 = vmatprep.subr.bf16.mxu0 0
    %1946 = vmatpush1.bf16.msra.mxu0 0
    %1947 = vmatprep.subr.bf16.mxu0 0
    %1948 = vmatpush1.bf16.msra.mxu0 0
    %1949 = vmatprep.subr.bf16.mxu0 0
    %1950 = vmatpush1.bf16.msra.mxu0 0
    %1951 = vmatprep.subr.bf16.mxu0 0
    %1952 = vmatpush1.bf16.msra.mxu0 0
    %1953 = vmatprep.subr.bf16.mxu0 0
    %1954 = vmatpush1.bf16.msra.mxu0 0
    %1955 = vmatprep.subr.bf16.mxu0 0
    %1956 = vmatpush1.bf16.msra.mxu0 0
    %1957 = vmatprep.subr.bf16.mxu0 0
    %1958 = vmatpush1.bf16.msra.mxu0 0
    %1959 = vmatprep.subr.bf16.mxu0 0
    %1960 = vmatpush1.bf16.msra.mxu0 0
    %1961 = vmatprep.subr.bf16.mxu0 0
    %1962 = vmatpush1.bf16.msra.mxu0 0
    %1963 = vmatprep.mubr.bf16.mxu0 0
    %1964 = vmatmul.mubr.bf16.gmra.mrb[0].mxu0 %v1929
    %v1965 = vpop.f32.mrb[0].mxu0
    %v1966 = vadd.f32 0.0, %v1965
    %v1967 = vpop.f32.mrb[0].mxu0
    %v1968 = vpop.f32.mrb[0].mxu0
    %v1969 = vadd.f32 0.0, %v1968
    %v1970 = vpop.f32.mrb[0].mxu0
    %1971 = vdwg.mxu0
    %v1972 = vpack.c.bf16 %v1922, %v1919
    %v1973 = vpack.c.bf16 %v1969, %v1966
    %s1974 = scalar_lea.vmem %s4, 10
    %v1975 = vld [vmem:[%s1974] sm:$0x3]
    %v1977 = vsel %vm201, %v1972, 0
    %v1980 = vsel %vm201, %v1973, 0
    %v1983 = vsel %vm695, %v1975, 0
    %1985 = vmatprep.subr.bf16.mxu0 0
    %1986 = vmatpush1.bf16.msra.mxu0 %v1983
    %1987 = vmatprep.subr.bf16.mxu0 0
    %1988 = vmatpush1.bf16.msra.mxu0 0
    %1989 = vmatprep.subr.bf16.mxu0 0
    %1990 = vmatpush1.bf16.msra.mxu0 0
    %1991 = vmatprep.subr.bf16.mxu0 0
    %1992 = vmatpush1.bf16.msra.mxu0 0
    %1993 = vmatprep.subr.bf16.mxu0 0
    %1994 = vmatpush1.bf16.msra.mxu0 0
    %1995 = vmatprep.subr.bf16.mxu0 0
    %1996 = vmatpush1.bf16.msra.mxu0 0
    %1997 = vmatprep.subr.bf16.mxu0 0
    %1998 = vmatpush1.bf16.msra.mxu0 0
    %1999 = vmatprep.subr.bf16.mxu0 0
    %2000 = vmatpush1.bf16.msra.mxu0 0
    %2001 = vmatprep.subr.bf16.mxu0 0
    %2002 = vmatpush1.bf16.msra.mxu0 0
    %2003 = vmatprep.subr.bf16.mxu0 0
    %2004 = vmatpush1.bf16.msra.mxu0 0
    %2005 = vmatprep.subr.bf16.mxu0 0
    %2006 = vmatpush1.bf16.msra.mxu0 0
    %2007 = vmatprep.subr.bf16.mxu0 0
    %2008 = vmatpush1.bf16.msra.mxu0 0
    %2009 = vmatprep.subr.bf16.mxu0 0
    %2010 = vmatpush1.bf16.msra.mxu0 0
    %2011 = vmatprep.subr.bf16.mxu0 0
    %2012 = vmatpush1.bf16.msra.mxu0 0
    %2013 = vmatprep.subr.bf16.mxu0 0
    %2014 = vmatpush1.bf16.msra.mxu0 0
    %2015 = vmatprep.subr.bf16.mxu0 0
    %2016 = vmatpush1.bf16.msra.mxu0 0
    %2017 = vmatprep.mubr.bf16.mxu0 0
    %2018 = vmatmul.mubr.bf16.gmra.mrb[0].mxu0 %v1977
    %v2019 = vpop.f32.mrb[0].mxu0
    %v2020 = vadd.f32 0.0, %v2019
    %v2021 = vpop.f32.mrb[0].mxu0
    %v2022 = vpop.f32.mrb[0].mxu0
    %v2023 = vadd.f32 0.0, %v2022
    %v2024 = vpop.f32.mrb[0].mxu0
    %2025 = vmatprep.mubr.bf16.mxu0 0
    %2026 = vmatmul.mubr.bf16.gmra.mrb[0].mxu0 %v1980
    %v2027 = vpop.f32.mrb[0].mxu0
    %v2028 = vadd.f32 0.0, %v2027
    %v2029 = vpop.f32.mrb[0].mxu0
    %v2030 = vpop.f32.mrb[0].mxu0
    %v2031 = vadd.f32 0.0, %v2030
    %v2032 = vpop.f32.mrb[0].mxu0
    %2033 = vdwg.mxu0
    %v2034 = vadd.f32 %v1726, %v2020
    %v2035 = vadd.f32 %v1727, %v2023
    %v2036 = vadd.f32 %v1728, %v2028
    %v2037 = vadd.f32 %v1729, %v2031
    %2038 = vrot.lane.b32.xlu0 %v196, 104
    %v2039 = vpop.permute.xlu0 %2038
    %2040 = vrot.lane.b32.xlu0 %v196, 72
    %v2041 = vpop.permute.xlu0 %2040
    %v2043 = vsel %vm201, %v2039, 0
    %v2046 = vsel %vm201, %v2041, 0
    %2048 = vmatprep.subr.bf16.mxu0 0
    %2049 = vmatpush1.bf16.xpose.msra.mxu0 %v2046
    %2050 = vmatprep.subr.bf16.mxu0 0
    %2051 = vmatpush1.bf16.xpose.msra.mxu0 0
    %2052 = vmatprep.subr.bf16.mxu0 0
    %2053 = vmatpush1.bf16.xpose.msra.mxu0 0
    %2054 = vmatprep.subr.bf16.mxu0 0
    %2055 = vmatpush1.bf16.xpose.msra.mxu0 0
    %2056 = vmatprep.subr.bf16.mxu0 0
    %2057 = vmatpush1.bf16.xpose.msra.mxu0 0
    %2058 = vmatprep.subr.bf16.mxu0 0
    %2059 = vmatpush1.bf16.xpose.msra.mxu0 0
    %2060 = vmatprep.subr.bf16.mxu0 0
    %2061 = vmatpush1.bf16.xpose.msra.mxu0 0
    %2062 = vmatprep.subr.bf16.mxu0 0
    %2063 = vmatpush1.bf16.xpose.msra.mxu0 0
    %2064 = vmatprep.subr.bf16.mxu0 0
    %2065 = vmatpush1.bf16.xpose.msra.mxu0 0
    %2066 = vmatprep.subr.bf16.mxu0 0
    %2067 = vmatpush1.bf16.xpose.msra.mxu0 0
    %2068 = vmatprep.subr.bf16.mxu0 0
    %2069 = vmatpush1.bf16.xpose.msra.mxu0 0
    %2070 = vmatprep.subr.bf16.mxu0 0
    %2071 = vmatpush1.bf16.xpose.msra.mxu0 0
    %2072 = vmatprep.subr.bf16.mxu0 0
    %2073 = vmatpush1.bf16.xpose.msra.mxu0 0
    %2074 = vmatprep.subr.bf16.mxu0 0
    %2075 = vmatpush1.bf16.xpose.msra.mxu0 0
    %2076 = vmatprep.subr.bf16.mxu0 0
    %2077 = vmatpush1.bf16.xpose.msra.mxu0 0
    %2078 = vmatprep.subr.bf16.mxu0 0
    %2079 = vmatpush1.bf16.xpose.msra.mxu0 0
    %2080 = vmatprep.mubr.bf16.mxu0 0
    %2081 = vmatmul.mubr.bf16.gmra.mrb[0].mxu0 %v2043
    %v2082 = vpop.f32.mrb[0].mxu0
    %v2083 = vadd.f32 0.0, %v2082
    %v2084 = vpop.f32.mrb[0].mxu0
    %v2085 = vpop.f32.mrb[0].mxu0
    %v2086 = vadd.f32 0.0, %v2085
    %v2087 = vpop.f32.mrb[0].mxu0
    %2088 = vdwg.mxu0
    %2089 = vrot.lane.b32.xlu0 %v197, 104
    %v2090 = vpop.permute.xlu0 %2089
    %2091 = vrot.lane.b32.xlu0 %v197, 72
    %v2092 = vpop.permute.xlu0 %2091
    %v2094 = vsel %vm201, %v2090, 0
    %v2097 = vsel %vm201, %v2092, 0
    %2099 = vmatprep.subr.bf16.mxu0 0
    %2100 = vmatpush1.bf16.xpose.msra.mxu0 %v2097
    %2101 = vmatprep.subr.bf16.mxu0 0
    %2102 = vmatpush1.bf16.xpose.msra.mxu0 0
    %2103 = vmatprep.subr.bf16.mxu0 0
    %2104 = vmatpush1.bf16.xpose.msra.mxu0 0
    %2105 = vmatprep.subr.bf16.mxu0 0
    %2106 = vmatpush1.bf16.xpose.msra.mxu0 0
    %2107 = vmatprep.subr.bf16.mxu0 0
    %2108 = vmatpush1.bf16.xpose.msra.mxu0 0
    %2109 = vmatprep.subr.bf16.mxu0 0
    %2110 = vmatpush1.bf16.xpose.msra.mxu0 0
    %2111 = vmatprep.subr.bf16.mxu0 0
    %2112 = vmatpush1.bf16.xpose.msra.mxu0 0
    %2113 = vmatprep.subr.bf16.mxu0 0
    %2114 = vmatpush1.bf16.xpose.msra.mxu0 0
    %2115 = vmatprep.subr.bf16.mxu0 0
    %2116 = vmatpush1.bf16.xpose.msra.mxu0 0
    %2117 = vmatprep.subr.bf16.mxu0 0
    %2118 = vmatpush1.bf16.xpose.msra.mxu0 0
    %2119 = vmatprep.subr.bf16.mxu0 0
    %2120 = vmatpush1.bf16.xpose.msra.mxu0 0
    %2121 = vmatprep.subr.bf16.mxu0 0
    %2122 = vmatpush1.bf16.xpose.msra.mxu0 0
    %2123 = vmatprep.subr.bf16.mxu0 0
    %2124 = vmatpush1.bf16.xpose.msra.mxu0 0
    %2125 = vmatprep.subr.bf16.mxu0 0
    %2126 = vmatpush1.bf16.xpose.msra.mxu0 0
    %2127 = vmatprep.subr.bf16.mxu0 0
    %2128 = vmatpush1.bf16.xpose.msra.mxu0 0
    %2129 = vmatprep.subr.bf16.mxu0 0
    %2130 = vmatpush1.bf16.xpose.msra.mxu0 0
    %2131 = vmatprep.mubr.bf16.mxu0 0
    %2132 = vmatmul.mubr.bf16.gmra.mrb[0].mxu0 %v2094
    %v2133 = vpop.f32.mrb[0].mxu0
    %v2134 = vadd.f32 0.0, %v2133
    %v2135 = vpop.f32.mrb[0].mxu0
    %v2136 = vpop.f32.mrb[0].mxu0
    %v2137 = vadd.f32 0.0, %v2136
    %v2138 = vpop.f32.mrb[0].mxu0
    %2139 = vdwg.mxu0
    %v2140 = vsel %vm299, %v2083, -inf
    %2141 = vmax.xlane.f32.xlu0 %v2140
    %v2142 = vpop.xlane.xlu0 %2141
    %v2143 = vsel %vm299, %v2086, -inf
    %2144 = vmax.xlane.f32.xlu0 %v2143
    %v2145 = vpop.xlane.xlu0 %2144
    %v2146 = vsel %vm299, %v2134, -inf
    %2147 = vmax.xlane.f32.xlu0 %v2146
    %v2148 = vpop.xlane.xlu0 %2147
    %v2149 = vsel %vm299, %v2137, -inf
    %2150 = vmax.xlane.f32.xlu0 %v2149
    %v2151 = vpop.xlane.xlu0 %2150
    %v2152 = vsub.f32 %v2083, %v2142
    %v2153 = vsub.f32 %v2086, %v2145
    %v2154 = vsub.f32 %v2134, %v2148
    %v2155 = vsub.f32 %v2137, %v2151
    %v2156 = vmul.f32 %v2152, 1.442695
    %v2157 = vpow.pop %v2156
    %v2158 = vmul.f32 %v2153, 1.442695
    %v2159 = vpow.pop %v2158
    %v2160 = vmul.f32 %v2154, 1.442695
    %v2161 = vpow.pop %v2160
    %v2162 = vmul.f32 %v2155, 1.442695
    %v2163 = vpow.pop %v2162
    %v2164 = vsel %vm299, %v2157, 0.0
    %2165 = vadd.xlane.f32.xlu0 %v2164
    %v2166 = vpop.xlane.xlu0 %2165
    %v2167 = vsel %vm299, %v2159, 0.0
    %2168 = vadd.xlane.f32.xlu0 %v2167
    %v2169 = vpop.xlane.xlu0 %2168
    %v2170 = vsel %vm299, %v2161, 0.0
    %2171 = vadd.xlane.f32.xlu0 %v2170
    %v2172 = vpop.xlane.xlu0 %2171
    %v2173 = vsel %vm299, %v2163, 0.0
    %2174 = vadd.xlane.f32.xlu0 %v2173
    %v2175 = vpop.xlane.xlu0 %2174
    %v2176 = vrcp.pop %v2166
    %v2177 = vrcp.pop %v2169
    %v2178 = vrcp.pop %v2172
    %v2179 = vrcp.pop %v2175
    %v2180 = vmul.f32 %v2157, %v2176
    %v2181 = vmul.f32 %v2159, %v2177
    %v2182 = vmul.f32 %v2161, %v2178
    %v2183 = vmul.f32 %v2163, %v2179
    %v2184 = vpack.c.bf16 %v2181, %v2180
    %v2185 = vpack.c.bf16 %v2183, %v2182
    %2186 = vrot.lane.b32.xlu0 %v196, 40
    %v2187 = vpop.permute.xlu0 %2186
    %v2190 = vsel %vm299, %v2184, 0
    %2192 = vmatprep.subr.bf16.mxu0 0
    %2193 = vmatpush1.bf16.msra.mxu0 %v2187
    %2194 = vmatprep.subr.bf16.mxu0 0
    %2195 = vmatpush1.bf16.msra.mxu0 0
    %2196 = vmatprep.subr.bf16.mxu0 0
    %2197 = vmatpush1.bf16.msra.mxu0 0
    %2198 = vmatprep.subr.bf16.mxu0 0
    %2199 = vmatpush1.bf16.msra.mxu0 0
    %2200 = vmatprep.subr.bf16.mxu0 0
    %2201 = vmatpush1.bf16.msra.mxu0 0
    %2202 = vmatprep.subr.bf16.mxu0 0
    %2203 = vmatpush1.bf16.msra.mxu0 0
    %2204 = vmatprep.subr.bf16.mxu0 0
    %2205 = vmatpush1.bf16.msra.mxu0 0
    %2206 = vmatprep.subr.bf16.mxu0 0
    %2207 = vmatpush1.bf16.msra.mxu0 0
    %2208 = vmatprep.subr.bf16.mxu0 0
    %2209 = vmatpush1.bf16.msra.mxu0 0
    %2210 = vmatprep.subr.bf16.mxu0 0
    %2211 = vmatpush1.bf16.msra.mxu0 0
    %2212 = vmatprep.subr.bf16.mxu0 0
    %2213 = vmatpush1.bf16.msra.mxu0 0
    %2214 = vmatprep.subr.bf16.mxu0 0
    %2215 = vmatpush1.bf16.msra.mxu0 0
    %2216 = vmatprep.subr.bf16.mxu0 0
    %2217 = vmatpush1.bf16.msra.mxu0 0
    %2218 = vmatprep.subr.bf16.mxu0 0
    %2219 = vmatpush1.bf16.msra.mxu0 0
    %2220 = vmatprep.subr.bf16.mxu0 0
    %2221 = vmatpush1.bf16.msra.mxu0 0
    %2222 = vmatprep.subr.bf16.mxu0 0
    %2223 = vmatpush1.bf16.msra.mxu0 0
    %2224 = vmatprep.mubr.bf16.mxu0 0
    %2225 = vmatmul.mubr.bf16.gmra.mrb[0].mxu0 %v2190
    %v2226 = vpop.f32.mrb[0].mxu0
    %v2227 = vadd.f32 0.0, %v2226
    %v2228 = vpop.f32.mrb[0].mxu0
    %v2229 = vpop.f32.mrb[0].mxu0
    %v2230 = vadd.f32 0.0, %v2229
    %v2231 = vpop.f32.mrb[0].mxu0
    %2232 = vdwg.mxu0
    %2233 = vrot.lane.b32.xlu0 %v197, 40
    %v2234 = vpop.permute.xlu0 %2233
    %v2237 = vsel %vm299, %v2185, 0
    %2239 = vmatprep.subr.bf16.mxu0 0
    %2240 = vmatpush1.bf16.msra.mxu0 %v2234
    %2241 = vmatprep.subr.bf16.mxu0 0
    %2242 = vmatpush1.bf16.msra.mxu0 0
    %2243 = vmatprep.subr.bf16.mxu0 0
    %2244 = vmatpush1.bf16.msra.mxu0 0
    %2245 = vmatprep.subr.bf16.mxu0 0
    %2246 = vmatpush1.bf16.msra.mxu0 0
    %2247 = vmatprep.subr.bf16.mxu0 0
    %2248 = vmatpush1.bf16.msra.mxu0 0
    %2249 = vmatprep.subr.bf16.mxu0 0
    %2250 = vmatpush1.bf16.msra.mxu0 0
    %2251 = vmatprep.subr.bf16.mxu0 0
    %2252 = vmatpush1.bf16.msra.mxu0 0
    %2253 = vmatprep.subr.bf16.mxu0 0
    %2254 = vmatpush1.bf16.msra.mxu0 0
    %2255 = vmatprep.subr.bf16.mxu0 0
    %2256 = vmatpush1.bf16.msra.mxu0 0
    %2257 = vmatprep.subr.bf16.mxu0 0
    %2258 = vmatpush1.bf16.msra.mxu0 0
    %2259 = vmatprep.subr.bf16.mxu0 0
    %2260 = vmatpush1.bf16.msra.mxu0 0
    %2261 = vmatprep.subr.bf16.mxu0 0
    %2262 = vmatpush1.bf16.msra.mxu0 0
    %2263 = vmatprep.subr.bf16.mxu0 0
    %2264 = vmatpush1.bf16.msra.mxu0 0
    %2265 = vmatprep.subr.bf16.mxu0 0
    %2266 = vmatpush1.bf16.msra.mxu0 0
    %2267 = vmatprep.subr.bf16.mxu0 0
    %2268 = vmatpush1.bf16.msra.mxu0 0
    %2269 = vmatprep.subr.bf16.mxu0 0
    %2270 = vmatpush1.bf16.msra.mxu0 0
    %2271 = vmatprep.mubr.bf16.mxu0 0
    %2272 = vmatmul.mubr.bf16.gmra.mrb[0].mxu0 %v2237
    %v2273 = vpop.f32.mrb[0].mxu0
    %v2274 = vadd.f32 0.0, %v2273
    %v2275 = vpop.f32.mrb[0].mxu0
    %v2276 = vpop.f32.mrb[0].mxu0
    %v2277 = vadd.f32 0.0, %v2276
    %v2278 = vpop.f32.mrb[0].mxu0
    %2279 = vdwg.mxu0
    %v2280 = vpack.c.bf16 %v2230, %v2227
    %v2281 = vpack.c.bf16 %v2277, %v2274
    %s2282 = scalar_lea.vmem %s4, 12
    %v2283 = vld [vmem:[%s2282] sm:$0x3]
    %v2285 = vsel %vm201, %v2280, 0
    %v2288 = vsel %vm201, %v2281, 0
    %v2291 = vsel %vm695, %v2283, 0
    %2293 = vmatprep.subr.bf16.mxu0 0
    %2294 = vmatpush1.bf16.msra.mxu0 %v2291
    %2295 = vmatprep.subr.bf16.mxu0 0
    %2296 = vmatpush1.bf16.msra.mxu0 0
    %2297 = vmatprep.subr.bf16.mxu0 0
    %2298 = vmatpush1.bf16.msra.mxu0 0
    %2299 = vmatprep.subr.bf16.mxu0 0
    %2300 = vmatpush1.bf16.msra.mxu0 0
    %2301 = vmatprep.subr.bf16.mxu0 0
    %2302 = vmatpush1.bf16.msra.mxu0 0
    %2303 = vmatprep.subr.bf16.mxu0 0
    %2304 = vmatpush1.bf16.msra.mxu0 0
    %2305 = vmatprep.subr.bf16.mxu0 0
    %2306 = vmatpush1.bf16.msra.mxu0 0
    %2307 = vmatprep.subr.bf16.mxu0 0
    %2308 = vmatpush1.bf16.msra.mxu0 0
    %2309 = vmatprep.subr.bf16.mxu0 0
    %2310 = vmatpush1.bf16.msra.mxu0 0
    %2311 = vmatprep.subr.bf16.mxu0 0
    %2312 = vmatpush1.bf16.msra.mxu0 0
    %2313 = vmatprep.subr.bf16.mxu0 0
    %2314 = vmatpush1.bf16.msra.mxu0 0
    %2315 = vmatprep.subr.bf16.mxu0 0
    %2316 = vmatpush1.bf16.msra.mxu0 0
    %2317 = vmatprep.subr.bf16.mxu0 0
    %2318 = vmatpush1.bf16.msra.mxu0 0
    %2319 = vmatprep.subr.bf16.mxu0 0
    %2320 = vmatpush1.bf16.msra.mxu0 0
    %2321 = vmatprep.subr.bf16.mxu0 0
    %2322 = vmatpush1.bf16.msra.mxu0 0
    %2323 = vmatprep.subr.bf16.mxu0 0
    %2324 = vmatpush1.bf16.msra.mxu0 0
    %2325 = vmatprep.mubr.bf16.mxu0 0
    %2326 = vmatmul.mubr.bf16.gmra.mrb[0].mxu0 %v2285
    %v2327 = vpop.f32.mrb[0].mxu0
    %v2328 = vadd.f32 0.0, %v2327
    %v2329 = vpop.f32.mrb[0].mxu0
    %v2330 = vpop.f32.mrb[0].mxu0
    %v2331 = vadd.f32 0.0, %v2330
    %v2332 = vpop.f32.mrb[0].mxu0
    %2333 = vmatprep.mubr.bf16.mxu0 0
    %2334 = vmatmul.mubr.bf16.gmra.mrb[0].mxu0 %v2288
    %v2335 = vpop.f32.mrb[0].mxu0
    %v2336 = vadd.f32 0.0, %v2335
    %v2337 = vpop.f32.mrb[0].mxu0
    %v2338 = vpop.f32.mrb[0].mxu0
    %v2339 = vadd.f32 0.0, %v2338
    %v2340 = vpop.f32.mrb[0].mxu0
    %2341 = vdwg.mxu0
    %v2342 = vadd.f32 %v2034, %v2328
    %v2343 = vadd.f32 %v2035, %v2331
    %v2344 = vadd.f32 %v2036, %v2336
    %v2345 = vadd.f32 %v2037, %v2339
    %2346 = vrot.lane.b32.xlu0 %v196, 100
    %v2347 = vpop.permute.xlu0 %2346
    %2348 = vrot.lane.b32.xlu0 %v196, 68
    %v2349 = vpop.permute.xlu0 %2348
    %v2351 = vsel %vm201, %v2347, 0
    %v2354 = vsel %vm201, %v2349, 0
    %2356 = vmatprep.subr.bf16.mxu0 0
    %2357 = vmatpush1.bf16.xpose.msra.mxu0 %v2354
    %2358 = vmatprep.subr.bf16.mxu0 0
    %2359 = vmatpush1.bf16.xpose.msra.mxu0 0
    %2360 = vmatprep.subr.bf16.mxu0 0
    %2361 = vmatpush1.bf16.xpose.msra.mxu0 0
    %2362 = vmatprep.subr.bf16.mxu0 0
    %2363 = vmatpush1.bf16.xpose.msra.mxu0 0
    %2364 = vmatprep.subr.bf16.mxu0 0
    %2365 = vmatpush1.bf16.xpose.msra.mxu0 0
    %2366 = vmatprep.subr.bf16.mxu0 0
    %2367 = vmatpush1.bf16.xpose.msra.mxu0 0
    %2368 = vmatprep.subr.bf16.mxu0 0
    %2369 = vmatpush1.bf16.xpose.msra.mxu0 0
    %2370 = vmatprep.subr.bf16.mxu0 0
    %2371 = vmatpush1.bf16.xpose.msra.mxu0 0
    %2372 = vmatprep.subr.bf16.mxu0 0
    %2373 = vmatpush1.bf16.xpose.msra.mxu0 0
    %2374 = vmatprep.subr.bf16.mxu0 0
    %2375 = vmatpush1.bf16.xpose.msra.mxu0 0
    %2376 = vmatprep.subr.bf16.mxu0 0
    %2377 = vmatpush1.bf16.xpose.msra.mxu0 0
    %2378 = vmatprep.subr.bf16.mxu0 0
    %2379 = vmatpush1.bf16.xpose.msra.mxu0 0
    %2380 = vmatprep.subr.bf16.mxu0 0
    %2381 = vmatpush1.bf16.xpose.msra.mxu0 0
    %2382 = vmatprep.subr.bf16.mxu0 0
    %2383 = vmatpush1.bf16.xpose.msra.mxu0 0
    %2384 = vmatprep.subr.bf16.mxu0 0
    %2385 = vmatpush1.bf16.xpose.msra.mxu0 0
    %2386 = vmatprep.subr.bf16.mxu0 0
    %2387 = vmatpush1.bf16.xpose.msra.mxu0 0
    %2388 = vmatprep.mubr.bf16.mxu0 0
    %2389 = vmatmul.mubr.bf16.gmra.mrb[0].mxu0 %v2351
    %v2390 = vpop.f32.mrb[0].mxu0
    %v2391 = vadd.f32 0.0, %v2390
    %v2392 = vpop.f32.mrb[0].mxu0
    %v2393 = vpop.f32.mrb[0].mxu0
    %v2394 = vadd.f32 0.0, %v2393
    %v2395 = vpop.f32.mrb[0].mxu0
    %2396 = vdwg.mxu0
    %2397 = vrot.lane.b32.xlu0 %v197, 100
    %v2398 = vpop.permute.xlu0 %2397
    %2399 = vrot.lane.b32.xlu0 %v197, 68
    %v2400 = vpop.permute.xlu0 %2399
    %v2402 = vsel %vm201, %v2398, 0
    %v2405 = vsel %vm201, %v2400, 0
    %2407 = vmatprep.subr.bf16.mxu0 0
    %2408 = vmatpush1.bf16.xpose.msra.mxu0 %v2405
    %2409 = vmatprep.subr.bf16.mxu0 0
    %2410 = vmatpush1.bf16.xpose.msra.mxu0 0
    %2411 = vmatprep.subr.bf16.mxu0 0
    %2412 = vmatpush1.bf16.xpose.msra.mxu0 0
    %2413 = vmatprep.subr.bf16.mxu0 0
    %2414 = vmatpush1.bf16.xpose.msra.mxu0 0
    %2415 = vmatprep.subr.bf16.mxu0 0
    %2416 = vmatpush1.bf16.xpose.msra.mxu0 0
    %2417 = vmatprep.subr.bf16.mxu0 0
    %2418 = vmatpush1.bf16.xpose.msra.mxu0 0
    %2419 = vmatprep.subr.bf16.mxu0 0
    %2420 = vmatpush1.bf16.xpose.msra.mxu0 0
    %2421 = vmatprep.subr.bf16.mxu0 0
    %2422 = vmatpush1.bf16.xpose.msra.mxu0 0
    %2423 = vmatprep.subr.bf16.mxu0 0
    %2424 = vmatpush1.bf16.xpose.msra.mxu0 0
    %2425 = vmatprep.subr.bf16.mxu0 0
    %2426 = vmatpush1.bf16.xpose.msra.mxu0 0
    %2427 = vmatprep.subr.bf16.mxu0 0
    %2428 = vmatpush1.bf16.xpose.msra.mxu0 0
    %2429 = vmatprep.subr.bf16.mxu0 0
    %2430 = vmatpush1.bf16.xpose.msra.mxu0 0
    %2431 = vmatprep.subr.bf16.mxu0 0
    %2432 = vmatpush1.bf16.xpose.msra.mxu0 0
    %2433 = vmatprep.subr.bf16.mxu0 0
    %2434 = vmatpush1.bf16.xpose.msra.mxu0 0
    %2435 = vmatprep.subr.bf16.mxu0 0
    %2436 = vmatpush1.bf16.xpose.msra.mxu0 0
    %2437 = vmatprep.subr.bf16.mxu0 0
    %2438 = vmatpush1.bf16.xpose.msra.mxu0 0
    %2439 = vmatprep.mubr.bf16.mxu0 0
    %2440 = vmatmul.mubr.bf16.gmra.mrb[0].mxu0 %v2402
    %v2441 = vpop.f32.mrb[0].mxu0
    %v2442 = vadd.f32 0.0, %v2441
    %v2443 = vpop.f32.mrb[0].mxu0
    %v2444 = vpop.f32.mrb[0].mxu0
    %v2445 = vadd.f32 0.0, %v2444
    %v2446 = vpop.f32.mrb[0].mxu0
    %2447 = vdwg.mxu0
    %v2448 = vsel %vm299, %v2391, -inf
    %2449 = vmax.xlane.f32.xlu0 %v2448
    %v2450 = vpop.xlane.xlu0 %2449
    %v2451 = vsel %vm299, %v2394, -inf
    %2452 = vmax.xlane.f32.xlu0 %v2451
    %v2453 = vpop.xlane.xlu0 %2452
    %v2454 = vsel %vm299, %v2442, -inf
    %2455 = vmax.xlane.f32.xlu0 %v2454
    %v2456 = vpop.xlane.xlu0 %2455
    %v2457 = vsel %vm299, %v2445, -inf
    %2458 = vmax.xlane.f32.xlu0 %v2457
    %v2459 = vpop.xlane.xlu0 %2458
    %v2460 = vsub.f32 %v2391, %v2450
    %v2461 = vsub.f32 %v2394, %v2453
    %v2462 = vsub.f32 %v2442, %v2456
    %v2463 = vsub.f32 %v2445, %v2459
    %v2464 = vmul.f32 %v2460, 1.442695
    %v2465 = vpow.pop %v2464
    %v2466 = vmul.f32 %v2461, 1.442695
    %v2467 = vpow.pop %v2466
    %v2468 = vmul.f32 %v2462, 1.442695
    %v2469 = vpow.pop %v2468
    %v2470 = vmul.f32 %v2463, 1.442695
    %v2471 = vpow.pop %v2470
    %v2472 = vsel %vm299, %v2465, 0.0
    %2473 = vadd.xlane.f32.xlu0 %v2472
    %v2474 = vpop.xlane.xlu0 %2473
    %v2475 = vsel %vm299, %v2467, 0.0
    %2476 = vadd.xlane.f32.xlu0 %v2475
    %v2477 = vpop.xlane.xlu0 %2476
    %v2478 = vsel %vm299, %v2469, 0.0
    %2479 = vadd.xlane.f32.xlu0 %v2478
    %v2480 = vpop.xlane.xlu0 %2479
    %v2481 = vsel %vm299, %v2471, 0.0
    %2482 = vadd.xlane.f32.xlu0 %v2481
    %v2483 = vpop.xlane.xlu0 %2482
    %v2484 = vrcp.pop %v2474
    %v2485 = vrcp.pop %v2477
    %v2486 = vrcp.pop %v2480
    %v2487 = vrcp.pop %v2483
    %v2488 = vmul.f32 %v2465, %v2484
    %v2489 = vmul.f32 %v2467, %v2485
    %v2490 = vmul.f32 %v2469, %v2486
    %v2491 = vmul.f32 %v2471, %v2487
    %v2492 = vpack.c.bf16 %v2489, %v2488
    %v2493 = vpack.c.bf16 %v2491, %v2490
    %2494 = vrot.lane.b32.xlu0 %v196, 36
    %v2495 = vpop.permute.xlu0 %2494
    %v2498 = vsel %vm299, %v2492, 0
    %2500 = vmatprep.subr.bf16.mxu0 0
    %2501 = vmatpush1.bf16.msra.mxu0 %v2495
    %2502 = vmatprep.subr.bf16.mxu0 0
    %2503 = vmatpush1.bf16.msra.mxu0 0
    %2504 = vmatprep.subr.bf16.mxu0 0
    %2505 = vmatpush1.bf16.msra.mxu0 0
    %2506 = vmatprep.subr.bf16.mxu0 0
    %2507 = vmatpush1.bf16.msra.mxu0 0
    %2508 = vmatprep.subr.bf16.mxu0 0
    %2509 = vmatpush1.bf16.msra.mxu0 0
    %2510 = vmatprep.subr.bf16.mxu0 0
    %2511 = vmatpush1.bf16.msra.mxu0 0
    %2512 = vmatprep.subr.bf16.mxu0 0
    %2513 = vmatpush1.bf16.msra.mxu0 0
    %2514 = vmatprep.subr.bf16.mxu0 0
    %2515 = vmatpush1.bf16.msra.mxu0 0
    %2516 = vmatprep.subr.bf16.mxu0 0
    %2517 = vmatpush1.bf16.msra.mxu0 0
    %2518 = vmatprep.subr.bf16.mxu0 0
    %2519 = vmatpush1.bf16.msra.mxu0 0
    %2520 = vmatprep.subr.bf16.mxu0 0
    %2521 = vmatpush1.bf16.msra.mxu0 0
    %2522 = vmatprep.subr.bf16.mxu0 0
    %2523 = vmatpush1.bf16.msra.mxu0 0
    %2524 = vmatprep.subr.bf16.mxu0 0
    %2525 = vmatpush1.bf16.msra.mxu0 0
    %2526 = vmatprep.subr.bf16.mxu0 0
    %2527 = vmatpush1.bf16.msra.mxu0 0
    %2528 = vmatprep.subr.bf16.mxu0 0
    %2529 = vmatpush1.bf16.msra.mxu0 0
    %2530 = vmatprep.subr.bf16.mxu0 0
    %2531 = vmatpush1.bf16.msra.mxu0 0
    %2532 = vmatprep.mubr.bf16.mxu0 0
    %2533 = vmatmul.mubr.bf16.gmra.mrb[0].mxu0 %v2498
    %v2534 = vpop.f32.mrb[0].mxu0
    %v2535 = vadd.f32 0.0, %v2534
    %v2536 = vpop.f32.mrb[0].mxu0
    %v2537 = vpop.f32.mrb[0].mxu0
    %v2538 = vadd.f32 0.0, %v2537
    %v2539 = vpop.f32.mrb[0].mxu0
    %2540 = vdwg.mxu0
    %2541 = vrot.lane.b32.xlu0 %v197, 36
    %v2542 = vpop.permute.xlu0 %2541
    %v2545 = vsel %vm299, %v2493, 0
    %2547 = vmatprep.subr.bf16.mxu0 0
    %2548 = vmatpush1.bf16.msra.mxu0 %v2542
    %2549 = vmatprep.subr.bf16.mxu0 0
    %2550 = vmatpush1.bf16.msra.mxu0 0
    %2551 = vmatprep.subr.bf16.mxu0 0
    %2552 = vmatpush1.bf16.msra.mxu0 0
    %2553 = vmatprep.subr.bf16.mxu0 0
    %2554 = vmatpush1.bf16.msra.mxu0 0
    %2555 = vmatprep.subr.bf16.mxu0 0
    %2556 = vmatpush1.bf16.msra.mxu0 0
    %2557 = vmatprep.subr.bf16.mxu0 0
    %2558 = vmatpush1.bf16.msra.mxu0 0
    %2559 = vmatprep.subr.bf16.mxu0 0
    %2560 = vmatpush1.bf16.msra.mxu0 0
    %2561 = vmatprep.subr.bf16.mxu0 0
    %2562 = vmatpush1.bf16.msra.mxu0 0
    %2563 = vmatprep.subr.bf16.mxu0 0
    %2564 = vmatpush1.bf16.msra.mxu0 0
    %2565 = vmatprep.subr.bf16.mxu0 0
    %2566 = vmatpush1.bf16.msra.mxu0 0
    %2567 = vmatprep.subr.bf16.mxu0 0
    %2568 = vmatpush1.bf16.msra.mxu0 0
    %2569 = vmatprep.subr.bf16.mxu0 0
    %2570 = vmatpush1.bf16.msra.mxu0 0
    %2571 = vmatprep.subr.bf16.mxu0 0
    %2572 = vmatpush1.bf16.msra.mxu0 0
    %2573 = vmatprep.subr.bf16.mxu0 0
    %2574 = vmatpush1.bf16.msra.mxu0 0
    %2575 = vmatprep.subr.bf16.mxu0 0
    %2576 = vmatpush1.bf16.msra.mxu0 0
    %2577 = vmatprep.subr.bf16.mxu0 0
    %2578 = vmatpush1.bf16.msra.mxu0 0
    %2579 = vmatprep.mubr.bf16.mxu0 0
    %2580 = vmatmul.mubr.bf16.gmra.mrb[0].mxu0 %v2545
    %v2581 = vpop.f32.mrb[0].mxu0
    %v2582 = vadd.f32 0.0, %v2581
    %v2583 = vpop.f32.mrb[0].mxu0
    %v2584 = vpop.f32.mrb[0].mxu0
    %v2585 = vadd.f32 0.0, %v2584
    %v2586 = vpop.f32.mrb[0].mxu0
    %2587 = vdwg.mxu0
    %v2588 = vpack.c.bf16 %v2538, %v2535
    %v2589 = vpack.c.bf16 %v2585, %v2582
    %s2590 = scalar_lea.vmem %s4, 14
    %v2591 = vld [vmem:[%s2590] sm:$0x3]
    %v2593 = vsel %vm201, %v2588, 0
    %v2596 = vsel %vm201, %v2589, 0
    %v2599 = vsel %vm695, %v2591, 0
    %2601 = vmatprep.subr.bf16.mxu0 0
    %2602 = vmatpush1.bf16.msra.mxu0 %v2599
    %2603 = vmatprep.subr.bf16.mxu0 0
    %2604 = vmatpush1.bf16.msra.mxu0 0
    %2605 = vmatprep.subr.bf16.mxu0 0
    %2606 = vmatpush1.bf16.msra.mxu0 0
    %2607 = vmatprep.subr.bf16.mxu0 0
    %2608 = vmatpush1.bf16.msra.mxu0 0
    %2609 = vmatprep.subr.bf16.mxu0 0
    %2610 = vmatpush1.bf16.msra.mxu0 0
    %2611 = vmatprep.subr.bf16.mxu0 0
    %2612 = vmatpush1.bf16.msra.mxu0 0
    %2613 = vmatprep.subr.bf16.mxu0 0
    %2614 = vmatpush1.bf16.msra.mxu0 0
    %2615 = vmatprep.subr.bf16.mxu0 0
    %2616 = vmatpush1.bf16.msra.mxu0 0
    %2617 = vmatprep.subr.bf16.mxu0 0
    %2618 = vmatpush1.bf16.msra.mxu0 0
    %2619 = vmatprep.subr.bf16.mxu0 0
    %2620 = vmatpush1.bf16.msra.mxu0 0
    %2621 = vmatprep.subr.bf16.mxu0 0
    %2622 = vmatpush1.bf16.msra.mxu0 0
    %2623 = vmatprep.subr.bf16.mxu0 0
    %2624 = vmatpush1.bf16.msra.mxu0 0
    %2625 = vmatprep.subr.bf16.mxu0 0
    %2626 = vmatpush1.bf16.msra.mxu0 0
    %2627 = vmatprep.subr.bf16.mxu0 0
    %2628 = vmatpush1.bf16.msra.mxu0 0
    %2629 = vmatprep.subr.bf16.mxu0 0
    %2630 = vmatpush1.bf16.msra.mxu0 0
    %2631 = vmatprep.subr.bf16.mxu0 0
    %2632 = vmatpush1.bf16.msra.mxu0 0
    %2633 = vmatprep.mubr.bf16.mxu0 0
    %2634 = vmatmul.mubr.bf16.gmra.mrb[0].mxu0 %v2593
    %v2635 = vpop.f32.mrb[0].mxu0
    %v2636 = vadd.f32 0.0, %v2635
    %v2637 = vpop.f32.mrb[0].mxu0
    %v2638 = vpop.f32.mrb[0].mxu0
    %v2639 = vadd.f32 0.0, %v2638
    %v2640 = vpop.f32.mrb[0].mxu0
    %2641 = vmatprep.mubr.bf16.mxu0 0
    %2642 = vmatmul.mubr.bf16.gmra.mrb[0].mxu0 %v2596
    %v2643 = vpop.f32.mrb[0].mxu0
    %v2644 = vadd.f32 0.0, %v2643
    %v2645 = vpop.f32.mrb[0].mxu0
    %v2646 = vpop.f32.mrb[0].mxu0
    %v2647 = vadd.f32 0.0, %v2646
    %v2648 = vpop.f32.mrb[0].mxu0
    %2649 = vdwg.mxu0
    %v2650 = vadd.f32 %v2342, %v2636
    %v2651 = vadd.f32 %v2343, %v2639
    %v2652 = vadd.f32 %v2344, %v2644
    %v2653 = vadd.f32 %v2345, %v2647
    %v2654 = vadd.f32 %v43, %v2650
    %v2655 = vadd.f32 %v44, %v2651
    %v2656 = vadd.f32 %v45, %v2652
    %v2657 = vadd.f32 %v46, %v2653
    %v2658 = vld [vmem:[%s5] sm:$0x1]
    %v2660 = vlaneseq
    %v2661 = vshrl.u32 %v2660, 7
    %v2662 = vsub.s32 0, %v2661
    %v2663 = vrot.slane %v2658, %v2662
    %v2665 = vadd.f32 %v2654, %v2663
    %v2666 = vadd.f32 %v2655, %v2663
    %v2667 = vadd.f32 %v2656, %v2663
    %v2668 = vadd.f32 %v2657, %v2663
    %v2669 = vld [vmem:[%s6] sm:$0x1]
    %v2670 = vld [vmem:[%s7] sm:$0x1]
    %v2671 = vsel %vm49, %v2665, 0.0
    %2672 = vadd.xlane.f32.xlu0 %v2671
    %v2673 = vpop.xlane.xlu0 %2672
    %v2674 = vsel %vm49, %v2666, 0.0
    %2675 = vadd.xlane.f32.xlu0 %v2674
    %v2676 = vpop.xlane.xlu0 %2675
    %v2677 = vsel %vm49, %v2667, 0.0
    %2678 = vadd.xlane.f32.xlu0 %v2677
    %v2679 = vpop.xlane.xlu0 %2678
    %v2680 = vsel %vm49, %v2668, 0.0
    %2681 = vadd.xlane.f32.xlu0 %v2680
    %v2682 = vpop.xlane.xlu0 %2681
    %v2683 = vmul.f32 %v2673, %v62
    %v2684 = vmul.f32 %v2676, %v62
    %v2685 = vmul.f32 %v2679, %v62
    %v2686 = vmul.f32 %v2682, %v62
    %v2687 = vsub.f32 %v2665, %v2683
    %v2688 = vsub.f32 %v2666, %v2684
    %v2689 = vsub.f32 %v2667, %v2685
    %v2690 = vsub.f32 %v2668, %v2686
    %v2691 = vmul.f32 %v2687, %v2687
    %v2692 = vmul.f32 %v2688, %v2688
    %v2693 = vmul.f32 %v2689, %v2689
    %v2694 = vmul.f32 %v2690, %v2690
    %v2695 = vsel %vm49, %v2691, 0.0
    %2696 = vadd.xlane.f32.xlu0 %v2695
    %v2697 = vpop.xlane.xlu0 %2696
    %v2698 = vsel %vm49, %v2692, 0.0
    %2699 = vadd.xlane.f32.xlu0 %v2698
    %v2700 = vpop.xlane.xlu0 %2699
    %v2701 = vsel %vm49, %v2693, 0.0
    %2702 = vadd.xlane.f32.xlu0 %v2701
    %v2703 = vpop.xlane.xlu0 %2702
    %v2704 = vsel %vm49, %v2694, 0.0
    %2705 = vadd.xlane.f32.xlu0 %v2704
    %v2706 = vpop.xlane.xlu0 %2705
    %v2707 = vmul.f32 %v2697, %v62
    %v2708 = vmul.f32 %v2700, %v62
    %v2709 = vmul.f32 %v2703, %v62
    %v2710 = vmul.f32 %v2706, %v62
    %v2711 = vadd.f32 %v2707, 1e-05
    %v2712 = vadd.f32 %v2708, 1e-05
    %v2713 = vadd.f32 %v2709, 1e-05
    %v2714 = vadd.f32 %v2710, 1e-05
    %v2715 = vrsqrt.pop %v2711
    %v2716 = vrsqrt.pop %v2712
    %v2717 = vrsqrt.pop %v2713
    %v2718 = vrsqrt.pop %v2714
    %v2719 = vmul.f32 %v2687, %v2715
    %v2720 = vmul.f32 %v2688, %v2716
    %v2721 = vmul.f32 %v2689, %v2717
    %v2722 = vmul.f32 %v2690, %v2718
    %v2724 = vlaneseq
    %v2725 = vshrl.u32 %v2724, 7
    %v2726 = vsub.s32 0, %v2725
    %v2727 = vrot.slane %v2669, %v2726
    %v2729 = vmul.f32 %v2719, %v2727
    %v2730 = vmul.f32 %v2720, %v2727
    %v2731 = vmul.f32 %v2721, %v2727
    %v2732 = vmul.f32 %v2722, %v2727
    %v2734 = vlaneseq
    %v2735 = vshrl.u32 %v2734, 7
    %v2736 = vsub.s32 0, %v2735
    %v2737 = vrot.slane %v2670, %v2736
    %v2739 = vadd.f32 %v2729, %v2737
    %v2740 = vadd.f32 %v2730, %v2737
    %v2741 = vadd.f32 %v2731, %v2737
    %v2742 = vadd.f32 %v2732, %v2737
    %v2743 = vpack.c.bf16 %v2740, %v2739
    %v2744 = vpack.c.bf16 %v2742, %v2741
    %v2745 = vld [vmem:[%s8] sm:$0xf]
    %v2746 = vld [vmem:[%s8 + $0x4] sm:$0xf]
    %v2747 = vld [vmem:[%s8 + $0x8] sm:$0xf]
    %v2748 = vld [vmem:[%s8 + $0xc] sm:$0xf]
    %v2749 = vld [vmem:[%s9] sm:$0x1]
    %v2751 = vlaneseq
    %v2752 = vshrl.u32 %v2751, 7
    %v2753 = vsub.s32 0, %v2752
    %v2754 = vrot.slane %v2749, %v2753
    %v2760 = vunpack.c.l.b16 %v2745
    %v2761 = vunpack.c.l.b16 %v2746
    %v2762 = vunpack.c.l.b16 %v2747
    %v2763 = vunpack.c.l.b16 %v2748
    %v2764 = vpack.c.b16 %v2761, %v2760
    %v2765 = vpack.c.b16 %v2763, %v2762
    %v2769 = vsel %vm49, %v2743, 0
    %v2772 = vsel %vm49, %v2744, 0
    %2774 = vmatprep.subr.bf16.mxu0 0
    %2775 = vmatpush1.bf16.msra.mxu0 %v2764
    %2776 = vmatprep.subr.bf16.mxu0 0
    %2777 = vmatpush1.bf16.msra.mxu0 %v2765
    %2778 = vmatprep.subr.bf16.mxu0 0
    %2779 = vmatpush1.bf16.msra.mxu0 0
    %2780 = vmatprep.subr.bf16.mxu0 0
    %2781 = vmatpush1.bf16.msra.mxu0 0
    %2782 = vmatprep.subr.bf16.mxu0 0
    %2783 = vmatpush1.bf16.msra.mxu0 0
    %2784 = vmatprep.subr.bf16.mxu0 0
    %2785 = vmatpush1.bf16.msra.mxu0 0
    %2786 = vmatprep.subr.bf16.mxu0 0
    %2787 = vmatpush1.bf16.msra.mxu0 0
    %2788 = vmatprep.subr.bf16.mxu0 0
    %2789 = vmatpush1.bf16.msra.mxu0 0
    %2790 = vmatprep.subr.bf16.mxu0 0
    %2791 = vmatpush1.bf16.msra.mxu0 0
    %2792 = vmatprep.subr.bf16.mxu0 0
    %2793 = vmatpush1.bf16.msra.mxu0 0
    %2794 = vmatprep.subr.bf16.mxu0 0
    %2795 = vmatpush1.bf16.msra.mxu0 0
    %2796 = vmatprep.subr.bf16.mxu0 0
    %2797 = vmatpush1.bf16.msra.mxu0 0
    %2798 = vmatprep.subr.bf16.mxu0 0
    %2799 = vmatpush1.bf16.msra.mxu0 0
    %2800 = vmatprep.subr.bf16.mxu0 0
    %2801 = vmatpush1.bf16.msra.mxu0 0
    %2802 = vmatprep.subr.bf16.mxu0 0
    %2803 = vmatpush1.bf16.msra.mxu0 0
    %2804 = vmatprep.subr.bf16.mxu0 0
    %2805 = vmatpush1.bf16.msra.mxu0 0
    %2806 = vmatprep.mubr.bf16.mxu0 0
    %2807 = vmatmul.mubr.bf16.gmra.mrb[0].mxu0 %v2769
    %v2808 = vpop.f32.mrb[0].mxu0
    %v2809 = vadd.f32 %v2754, %v2808
    %v2810 = vpop.f32.mrb[0].mxu0
    %v2811 = vpop.f32.mrb[0].mxu0
    %v2812 = vadd.f32 %v2754, %v2811
    %v2813 = vpop.f32.mrb[0].mxu0
    %2814 = vmatprep.mubr.bf16.mxu0 0
    %2815 = vmatmul.mubr.bf16.gmra.mrb[0].mxu0 %v2772
    %v2816 = vpop.f32.mrb[0].mxu0
    %v2817 = vadd.f32 %v2754, %v2816
    %v2818 = vpop.f32.mrb[0].mxu0
    %v2819 = vpop.f32.mrb[0].mxu0
    %v2820 = vadd.f32 %v2754, %v2819
    %v2821 = vpop.f32.mrb[0].mxu0
    %2822 = vdwg.mxu0
    %v2823 = vmul.f32 %v2809, 0.5
    %v2824 = vmul.f32 %v2812, 0.5
    %v2825 = vmul.f32 %v2817, 0.5
    %v2826 = vmul.f32 %v2820, 0.5
    %v2827 = vmul.f32 %v2809, 0.044715
    %v2828 = vmul.f32 %v2812, 0.044715
    %v2829 = vmul.f32 %v2817, 0.044715
    %v2830 = vmul.f32 %v2820, 0.044715
    %v2831 = vmul.f32 %v2827, %v2809
    %v2832 = vmul.f32 %v2828, %v2812
    %v2833 = vmul.f32 %v2829, %v2817
    %v2834 = vmul.f32 %v2830, %v2820
    %v2835 = vmul.f32 %v2831, %v2809
    %v2836 = vmul.f32 %v2832, %v2812
    %v2837 = vmul.f32 %v2833, %v2817
    %v2838 = vmul.f32 %v2834, %v2820
    %v2839 = vadd.f32 %v2809, %v2835
    %v2840 = vadd.f32 %v2812, %v2836
    %v2841 = vadd.f32 %v2817, %v2837
    %v2842 = vadd.f32 %v2820, %v2838
    %v2843 = vmul.f32 %v2839, 0.7978846
    %v2844 = vmul.f32 %v2840, 0.7978846
    %v2845 = vmul.f32 %v2841, 0.7978846
    %v2846 = vmul.f32 %v2842, 0.7978846
    %v2847 = vtanh.pop %v2843
    %v2848 = vtanh.pop %v2844
    %v2849 = vtanh.pop %v2845
    %v2850 = vtanh.pop %v2846
    %v2851 = vadd.f32 %v2847, 1.0
    %v2852 = vadd.f32 %v2848, 1.0
    %v2853 = vadd.f32 %v2849, 1.0
    %v2854 = vadd.f32 %v2850, 1.0
    %v2855 = vmul.f32 %v2823, %v2851
    %v2856 = vmul.f32 %v2824, %v2852
    %v2857 = vmul.f32 %v2825, %v2853
    %v2858 = vmul.f32 %v2826, %v2854
    %v2859 = vpack.c.bf16 %v2856, %v2855
    %v2860 = vpack.c.bf16 %v2858, %v2857
    %v2861 = vld [vmem:[%s10] sm:$0xf]
    %v2862 = vld [vmem:[%s10 + $0x4] sm:$0xf]
    %v2863 = vld [vmem:[%s10 + $0x8] sm:$0xf]
    %v2864 = vld [vmem:[%s10 + $0xc] sm:$0xf]
    %v2865 = vld [vmem:[%s10 + $0x10] sm:$0xf]
    %v2866 = vld [vmem:[%s10 + $0x14] sm:$0xf]
    %v2867 = vld [vmem:[%s10 + $0x18] sm:$0xf]
    %v2868 = vld [vmem:[%s10 + $0x1c] sm:$0xf]
    %v2869 = vld [vmem:[%s10 + $0x20] sm:$0xf]
    %v2870 = vld [vmem:[%s10 + $0x24] sm:$0xf]
    %v2871 = vld [vmem:[%s10 + $0x28] sm:$0xf]
    %v2872 = vld [vmem:[%s10 + $0x2c] sm:$0xf]
    %v2873 = vld [vmem:[%s10 + $0x30] sm:$0xf]
    %v2874 = vld [vmem:[%s10 + $0x34] sm:$0xf]
    %v2875 = vld [vmem:[%s10 + $0x38] sm:$0xf]
    %v2876 = vld [vmem:[%s10 + $0x3c] sm:$0xf]
    %v2877 = vld [vmem:[%s11] sm:$0x1]
    %v2879 = vlaneseq
    %v2880 = vshrl.u32 %v2879, 7
    %v2881 = vsub.s32 0, %v2880
    %v2882 = vrot.slane %v2877, %v2881
    %v2900 = vunpack.c.l.b16 %v2861
    %v2901 = vunpack.c.l.b16 %v2862
    %v2902 = vunpack.c.l.b16 %v2863
    %v2903 = vunpack.c.l.b16 %v2864
    %v2904 = vunpack.c.l.b16 %v2865
    %v2905 = vunpack.c.l.b16 %v2866
    %v2906 = vunpack.c.l.b16 %v2867
    %v2907 = vunpack.c.l.b16 %v2868
    %v2908 = vunpack.c.l.b16 %v2869
    %v2909 = vunpack.c.l.b16 %v2870
    %v2910 = vunpack.c.l.b16 %v2871
    %v2911 = vunpack.c.l.b16 %v2872
    %v2912 = vunpack.c.l.b16 %v2873
    %v2913 = vunpack.c.l.b16 %v2874
    %v2914 = vunpack.c.l.b16 %v2875
    %v2915 = vunpack.c.l.b16 %v2876
    %v2916 = vpack.c.b16 %v2901, %v2900
    %v2917 = vpack.c.b16 %v2903, %v2902
    %v2918 = vpack.c.b16 %v2905, %v2904
    %v2919 = vpack.c.b16 %v2907, %v2906
    %v2920 = vpack.c.b16 %v2909, %v2908
    %v2921 = vpack.c.b16 %v2911, %v2910
    %v2922 = vpack.c.b16 %v2913, %v2912
    %v2923 = vpack.c.b16 %v2915, %v2914
    %2932 = vmatprep.subr.bf16.mxu0 0
    %2933 = vmatpush1.bf16.msra.mxu0 %v2916
    %2934 = vmatprep.subr.bf16.mxu0 0
    %2935 = vmatpush1.bf16.msra.mxu0 %v2917
    %2936 = vmatprep.subr.bf16.mxu0 0
    %2937 = vmatpush1.bf16.msra.mxu0 %v2918
    %2938 = vmatprep.subr.bf16.mxu0 0
    %2939 = vmatpush1.bf16.msra.mxu0 %v2919
    %2940 = vmatprep.subr.bf16.mxu0 0
    %2941 = vmatpush1.bf16.msra.mxu0 %v2920
    %2942 = vmatprep.subr.bf16.mxu0 0
    %2943 = vmatpush1.bf16.msra.mxu0 %v2921
    %2944 = vmatprep.subr.bf16.mxu0 0
    %2945 = vmatpush1.bf16.msra.mxu0 %v2922
    %2946 = vmatprep.subr.bf16.mxu0 0
    %2947 = vmatpush1.bf16.msra.mxu0 %v2923
    %2948 = vmatprep.subr.bf16.mxu0 0
    %2949 = vmatpush1.bf16.msra.mxu0 0
    %2950 = vmatprep.subr.bf16.mxu0 0
    %2951 = vmatpush1.bf16.msra.mxu0 0
    %2952 = vmatprep.subr.bf16.mxu0 0
    %2953 = vmatpush1.bf16.msra.mxu0 0
    %2954 = vmatprep.subr.bf16.mxu0 0
    %2955 = vmatpush1.bf16.msra.mxu0 0
    %2956 = vmatprep.subr.bf16.mxu0 0
    %2957 = vmatpush1.bf16.msra.mxu0 0
    %2958 = vmatprep.subr.bf16.mxu0 0
    %2959 = vmatpush1.bf16.msra.mxu0 0
    %2960 = vmatprep.subr.bf16.mxu0 0
    %2961 = vmatpush1.bf16.msra.mxu0 0
    %2962 = vmatprep.subr.bf16.mxu0 0
    %2963 = vmatpush1.bf16.msra.mxu0 0
    %2964 = vmatprep.mubr.bf16.mxu0 0
    %2965 = vmatmul.mubr.bf16.gmra.mrb[0].mxu0 %v2859
    %v2966 = vpop.f32.mrb[0].mxu0
    %v2967 = vadd.f32 %v2882, %v2966
    %v2968 = vpop.f32.mrb[0].mxu0
    %v2969 = vpop.f32.mrb[0].mxu0
    %v2970 = vadd.f32 %v2882, %v2969
    %v2971 = vpop.f32.mrb[0].mxu0
    %2972 = vmatprep.mubr.bf16.mxu0 0
    %2973 = vmatmul.mubr.bf16.gmra.mrb[0].mxu0 %v2860
    %v2974 = vpop.f32.mrb[0].mxu0
    %v2975 = vadd.f32 %v2882, %v2974
    %v2976 = vpop.f32.mrb[0].mxu0
    %v2977 = vpop.f32.mrb[0].mxu0
    %v2978 = vadd.f32 %v2882, %v2977
    %v2979 = vpop.f32.mrb[0].mxu0
    %2980 = vdwg.mxu0
    %v2981 = vadd.f32 %v2665, %v2967
    %v2982 = vadd.f32 %v2666, %v2970
    %v2983 = vadd.f32 %v2667, %v2975
    %v2984 = vadd.f32 %v2668, %v2978
    %2985 = vst.msk [vmem:[#allocation2] sm:$0xff] %vm49, %v2981
    %2986 = vst.msk [vmem:[#allocation2 + $0x8] sm:$0xff] %vm49, %v2982
    %2987 = vst.msk [vmem:[#allocation2 + $0x10] sm:$0xff] %vm49, %v2983
    %2988 = vst.msk [vmem:[#allocation2 + $0x18] sm:$0xff] %vm49, %v2984
    // Predicated region
    $region50: #{transformer_block.1} parent=1 // pred_check
      _
    $region51: #{transformer_block.1} parent=1 // pred_check_branch
      %2990 = sbr.rel (0) target = $region53
    $region52: #{transformer_block.1} parent=1 // pred_region
      %s2992 = ssub.s32 512, 512
      %2993 = vsyncadd [#allocation3], %s2992
      %s2994 = sshll.u32 [#allocation2], 4
      %s2995 = int_to_ptr.vmem [resolvable:$true] %s2994
      %3000 = dma.vmem_to_hbm [thread:$0]  %s2995, 512, %s12, [#allocation3], 128, 128, 8
    $region53: #{transformer_block.1} parent=1 // pred_fallthru
      _
    // Predicated region
    $region54: #{transformer_block.1} parent=1 // pred_check
      _
    $region55: #{transformer_block.1} parent=1 // pred_check_branch
      %3002 = sbr.rel (0) target = $region57
    $region56: #{transformer_block.1} parent=1 // pred_region
      %3003 = dma.done [#allocation3], 512
    $region57: #{transformer_block.1} parent=1 // pred_fallthru
      _
    %3004 = vsyncpa [#allocation3], 1

</llo_original>
